<compile_context>
chip_gen: v7x
topology: tpu7x:2x2x1
jax: 0.10.0
libtpu: 0.0.40
codegen_flags: <defaults>
</compile_context>

<pallas_src>
import numpy as np
import jax
import jax.numpy as jnp
from jax.experimental import pallas as pl
from jax.experimental.pallas import tpu as pltpu

WIDTH = 3            # AugMix width (number of chains)
MAX_DEPTH = 3        # np.random.randint(1, 4) -> depth in {1, 2, 3}
LANES = 512          # lane-dense slab width (multiple of 128)
TILE_ROWS_CAP = 512  # 512 rows x 512 lanes == 2048 x 128 equivalent tile

# op kinds inside the kernel (brightness/contrast merged host-side):
#   0 = affine  clip(a * p0 + p1)      (brightness: p1=0, contrast: p1=(1-f)*mean)
#   1 = solarize (invert pixels >= threshold p0)
#   2 = posterize (floor(a * p1) * p0, with p1 = 1/p0)


def _augmix_kernel(depth_ref, kind_ref, p0_ref, p1_ref, cw_ref, mw_ref,
                   img_ref, out_ref, aug_ref, acc_ref):
    # img_ref / out_ref: (TILE_ROWS, LANES) uint8 tiles in VMEM.
    # Widening cast chained via int32 (u8 -> i32 -> f32) kept as the robust
    # Mosaic lowering path (direct u8->f32 would save 1 op/pixel).
    img = img_ref[...].astype(jnp.int32).astype(jnp.float32)

    mw = mw_ref[0]                                   # hoisted loop-invariant scalar

    for chain in range(WIDTH):                       # static unroll (width = 3)
        d = depth_ref[chain]                         # scalar from SMEM
        for step in range(MAX_DEPTH):                # static unroll, gated by depth
            kind = kind_ref[chain, step]             # scalars from SMEM
            p0 = p0_ref[chain, step]
            p1 = p1_ref[chain, step]

            if step == 0:
                # depth >= 1, so step 0 always runs: read the f32 image value
                # directly instead of first copying it into aug_ref.
                src = lambda: img
                gate = lambda k: kind == k
            else:
                src = lambda: aug_ref[...]
                gate = lambda k: jnp.logical_and(step < d, kind == k)

            # Only the selected op's branch executes at runtime (scf.if).
            @pl.when(gate(0))
            def _():  # affine: brightness/contrast merged -> clip(a*scale + bias)
                aug_ref[...] = jnp.clip(src() * p0 + p1, 0.0, 255.0)

            @pl.when(gate(1))
            def _():  # solarize: invert pixels >= threshold p0
                a = src()
                aug_ref[...] = jnp.where(a < p0, a, 255.0 - a)

            @pl.when(gate(2))
            def _():  # posterize: quantize to multiples of p0 (p1 = 1/p0)
                aug_ref[...] = jnp.floor(src() * p1) * p0

        # augmented_combination += chain_weights[chain] * augmented_image
        contrib = cw_ref[chain] * aug_ref[...]
        partial = contrib if chain == 0 else acc_ref[...] + contrib
        if chain == WIDTH - 1:
            # Fuse the last chain's accumulate into the final mix (one fewer
            # full-tile store+load).  np.uint8() truncates, so no rounding.
            mixed = (1.0 - mw) * img + mw * partial
            q = jnp.clip(mixed, 0.0, 255.0)
            out_ref[...] = q.astype(jnp.int32).astype(jnp.uint8)
        else:
            acc_ref[...] = partial


def augment_and_mix_pallas(img_hwc, depths, op_ids, params, inv_params,
                           chain_w, mix_w):
    """img_hwc: (H, W, C) uint8 image.  depths in {1..MAX_DEPTH}.  Returns uint8."""
    H, W, C = img_hwc.shape
    total = H * W * C

    # --- tiny scalar packing (traced, negligible) ---------------------------
    # Merge brightness (op 0) and contrast (op 1) into one affine kind:
    #   contrast: (a - mean) * f + mean == a * f + (1 - f) * mean.
    # Contrast mean precomputed once on the original image (accepted
    # approximation of PIL's grayscale mean of the running augmented image).
    mean = jnp.mean(img_hwc.astype(jnp.float32))
    kind = jnp.where(op_ids <= 1, 0, op_ids - 1).astype(jnp.int32)
    p0 = params.astype(jnp.float32)
    p1 = jnp.where(op_ids == 1, (1.0 - p0) * mean,
                   jnp.where(op_ids == 3, inv_params, 0.0)).astype(jnp.float32)

    # --- lane-dense slab layout ---------------------------------------------
    rows = pl.cdiv(total, LANES)
    rows_aligned = max(32, pl.cdiv(rows, 32) * 32)       # uint8 sublane tiling
    if rows_aligned <= TILE_ROWS_CAP:
        if rows_aligned >= 64:
            # Split into >= 2 tiles so both v7x TensorCores / megacore get work.
            tile_rows = pl.cdiv(rows_aligned // 2, 32) * 32
        else:
            tile_rows = rows_aligned
    else:
        tile_rows = TILE_ROWS_CAP
    padded_rows = pl.cdiv(rows, tile_rows) * tile_rows
    n_tiles = padded_rows // tile_rows

    flat = img_hwc.reshape(-1)
    pad = padded_rows * LANES - total
    if pad:
        # TODO(synk): pad + trailing slice are two extra XLA copies; an
        # in-kernel masked tail store would remove them.
        flat = jnp.pad(flat, (0, pad))
    img2d = flat.reshape(padded_rows, LANES)

    grid_spec = pltpu.PrefetchScalarGridSpec(
        num_scalar_prefetch=6,           # depths, kind, p0, p1, chain_w, mix_w
        grid=(n_tiles,),
        in_specs=[pl.BlockSpec((tile_rows, LANES), lambda i, *_: (i, 0))],
        out_specs=pl.BlockSpec((tile_rows, LANES), lambda i, *_: (i, 0)),
        scratch_shapes=[pltpu.VMEM((tile_rows, LANES), jnp.float32),   # aug
                        pltpu.VMEM((tile_rows, LANES), jnp.float32)],  # acc
    )

    out2d = pl.pallas_call(
        _augmix_kernel,
        out_shape=jax.ShapeDtypeStruct((padded_rows, LANES), jnp.uint8),
        grid_spec=grid_spec,
        compiler_params=pltpu.CompilerParams(
            dimension_semantics=("parallel",),           # row tiles independent
            vmem_limit_bytes=32 * 1024 * 1024),
    )(depths, kind, p0, p1, chain_w, mix_w, img2d)

    return out2d.reshape(-1)[:total].reshape(H, W, C)


if __name__ == "__main__":
    severity, depth_cfg, width, alpha = 3, -1, WIDTH, 1.0

    key = jax.random.PRNGKey(0)
    k_img, k_dir, k_beta, k_depth, k_op = jax.random.split(key, 5)

    # deterministic small input image (HWC uint8), consistent with a PIL image
    H, W, C = 16, 16, 3
    img = jax.random.randint(k_img, (H, W, C), 0, 256, dtype=jnp.int32).astype(jnp.uint8)

    # chain_weights ~ Dirichlet([alpha] * width)
    chain_w = jax.random.dirichlet(k_dir, jnp.full((width,), alpha)).astype(jnp.float32)
    # mixing_weight ~ Beta(alpha, alpha)
    mix_w = jax.random.beta(k_beta, alpha, alpha, shape=(1,)).astype(jnp.float32)
    # per-chain depth: randint(1, 4) when depth <= 0
    if depth_cfg > 0:
        depths = jnp.full((width,), depth_cfg, dtype=jnp.int32)
    else:
        depths = jax.random.randint(k_depth, (width,), 1, 4, dtype=jnp.int32)
    # random augmentation choice per (chain, step):
    # 0=brightness, 1=contrast, 2=solarize, 3=posterize
    op_ids = jax.random.randint(k_op, (width, MAX_DEPTH), 0, 4, dtype=jnp.int32)

    # severity-dependent per-op parameters (deterministic host-side sampling)
    rng = np.random.RandomState(0)
    lvl = rng.uniform(0.1, float(severity), size=(width, MAX_DEPTH)).astype(np.float32)
    sign = np.where(rng.rand(width, MAX_DEPTH) < 0.5, -1.0, 1.0).astype(np.float32)
    factor = 1.0 + sign * lvl * 1.8 / 10.0            # brightness / contrast factor
    sol_thr = 256.0 - lvl / 10.0 * 256.0              # solarize threshold
    bits = np.clip(8 - np.floor(lvl).astype(np.int32), 1, 8)
    post_p = (2.0 ** (8 - bits)).astype(np.float32)   # posterize quantization step
    op_np = np.asarray(op_ids)
    params = np.where(op_np <= 1, factor,
             np.where(op_np == 2, sol_thr, post_p)).astype(np.float32)
    inv_params = np.where(op_np == 3, 1.0 / post_p, 1.0).astype(np.float32)

    out = augment_and_mix_pallas(img, depths, op_ids,
                                 jnp.asarray(params), jnp.asarray(inv_params),
                                 chain_w, mix_w)
    out = jax.block_until_ready(out)

    assert out.shape == (H, W, C) and out.dtype == jnp.uint8
    print("KERNEL_OK")
</pallas_src>

<mosaic_0001>
module attributes {stable_mosaic.version = 11 : i64} {
  func.func @_augmix_kernel(%arg0: i32, %arg1: memref<3xi32, #tpu.memory_space<smem>>, %arg2: memref<3x3xi32, #tpu.memory_space<smem>>, %arg3: memref<3x3xf32, #tpu.memory_space<smem>>, %arg4: memref<3x3xf32, #tpu.memory_space<smem>>, %arg5: memref<3xf32, #tpu.memory_space<smem>>, %arg6: memref<1xf32, #tpu.memory_space<smem>>, %arg7: memref<32x512xi8, #tpu.memory_space<vmem>>, %arg8: memref<32x512xi8, #tpu.memory_space<vmem>>, %arg9: memref<32x512xf32, #tpu.memory_space<vmem>>, %arg10: memref<32x512xf32, #tpu.memory_space<vmem>>) attributes {dimension_semantics = [#tpu.dimension_semantics<parallel>], iteration_bounds = array<i64: 1>, scalar_prefetch = 6 : i64, scratch_operands = 2 : i64, tpu.core_type = #tpu.core_type<tc>, window_params = [{transform_indices = @transform_0, window_bounds = array<i64: 32, 512>}, {transform_indices = @transform_1, window_bounds = array<i64: 32, 512>}]} {
    %c0 = arith.constant 0 : index
    %c0_0 = arith.constant 0 : index
    %0 = vector.load %arg7[%c0, %c0_0] : memref<32x512xi8, #tpu.memory_space<vmem>>, vector<32x512xi8>
    %1 = arith.extui %0 : vector<32x512xi8> to vector<32x512xi32>
    %2 = arith.sitofp %1 : vector<32x512xi32> to vector<32x512xf32>
    %c0_1 = arith.constant 0 : index
    %3 = memref.load %arg6[%c0_1] : memref<1xf32, #tpu.memory_space<smem>>
    %c0_2 = arith.constant 0 : index
    %4 = memref.load %arg1[%c0_2] : memref<3xi32, #tpu.memory_space<smem>>
    %c0_3 = arith.constant 0 : index
    %c0_4 = arith.constant 0 : index
    %5 = memref.load %arg2[%c0_3, %c0_4] : memref<3x3xi32, #tpu.memory_space<smem>>
    %c0_5 = arith.constant 0 : index
    %c0_6 = arith.constant 0 : index
    %6 = memref.load %arg3[%c0_5, %c0_6] : memref<3x3xf32, #tpu.memory_space<smem>>
    %c0_7 = arith.constant 0 : index
    %c0_8 = arith.constant 0 : index
    %7 = memref.load %arg4[%c0_7, %c0_8] : memref<3x3xf32, #tpu.memory_space<smem>>
    %c0_i32 = arith.constant 0 : i32
    %8 = arith.cmpi eq, %5, %c0_i32 : i32
    %9 = arith.extui %8 : i1 to i32
    %c0_i32_9 = arith.constant 0 : i32
    %10 = arith.cmpi ne, %9, %c0_i32_9 : i32
    scf.if %10 {
      %182 = vector.broadcast %6 : f32 to vector<32x512xf32>
      %183 = arith.mulf %2, %182 : vector<32x512xf32>
      %184 = vector.broadcast %7 : f32 to vector<32x512xf32>
      %185 = arith.addf %183, %184 : vector<32x512xf32>
      %cst_147 = arith.constant 0.000000e+00 : f32
      %cst_148 = arith.constant 2.550000e+02 : f32
      %186 = vector.broadcast %cst_147 : f32 to vector<32x512xf32>
      %187 = arith.maximumf %186, %185 : vector<32x512xf32>
      %188 = vector.broadcast %cst_148 : f32 to vector<32x512xf32>
      %189 = arith.minimumf %188, %187 : vector<32x512xf32>
      %c0_149 = arith.constant 0 : index
      %c0_150 = arith.constant 0 : index
      %190 = vector.load %arg9[%c0_149, %c0_150] : memref<32x512xf32, #tpu.memory_space<vmem>>, vector<32x512xf32>
      tpu.vector_store %arg9[%c0_149, %c0_150], %189 {strides = array<i32>} : memref<32x512xf32, #tpu.memory_space<vmem>>, vector<32x512xf32>,
    } else {
    }
    %c1_i32 = arith.constant 1 : i32
    %11 = arith.cmpi eq, %5, %c1_i32 : i32
    %12 = arith.extui %11 : i1 to i32
    %c0_i32_10 = arith.constant 0 : i32
    %13 = arith.cmpi ne, %12, %c0_i32_10 : i32
    scf.if %13 {
      %182 = vector.broadcast %6 : f32 to vector<32x512xf32>
      %183 = arith.cmpf olt, %2, %182 : vector<32x512xf32>
      %cst_147 = arith.constant 2.550000e+02 : f32
      %184 = vector.broadcast %cst_147 : f32 to vector<32x512xf32>
      %185 = arith.subf %184, %2 : vector<32x512xf32>
      %186 = arith.select %183, %2, %185 : vector<32x512xi1>, vector<32x512xf32>
      %c0_148 = arith.constant 0 : index
      %c0_149 = arith.constant 0 : index
      %187 = vector.load %arg9[%c0_148, %c0_149] : memref<32x512xf32, #tpu.memory_space<vmem>>, vector<32x512xf32>
      tpu.vector_store %arg9[%c0_148, %c0_149], %186 {strides = array<i32>} : memref<32x512xf32, #tpu.memory_space<vmem>>, vector<32x512xf32>,
    } else {
    }
    %c2_i32 = arith.constant 2 : i32
    %14 = arith.cmpi eq, %5, %c2_i32 : i32
    %15 = arith.extui %14 : i1 to i32
    %c0_i32_11 = arith.constant 0 : i32
    %16 = arith.cmpi ne, %15, %c0_i32_11 : i32
    scf.if %16 {
      %182 = vector.broadcast %7 : f32 to vector<32x512xf32>
      %183 = arith.mulf %2, %182 : vector<32x512xf32>
      %184 = math.floor %183 : vector<32x512xf32>
      %185 = vector.broadcast %6 : f32 to vector<32x512xf32>
      %186 = arith.mulf %184, %185 : vector<32x512xf32>
      %c0_147 = arith.constant 0 : index
      %c0_148 = arith.constant 0 : index
      %187 = vector.load %arg9[%c0_147, %c0_148] : memref<32x512xf32, #tpu.memory_space<vmem>>, vector<32x512xf32>
      tpu.vector_store %arg9[%c0_147, %c0_148], %186 {strides = array<i32>} : memref<32x512xf32, #tpu.memory_space<vmem>>, vector<32x512xf32>,
    } else {
    }
    %c0_12 = arith.constant 0 : index
    %c1 = arith.constant 1 : index
    %17 = memref.load %arg2[%c0_12, %c1] : memref<3x3xi32, #tpu.memory_space<smem>>
    %c0_13 = arith.constant 0 : index
    %c1_14 = arith.constant 1 : index
    %18 = memref.load %arg3[%c0_13, %c1_14] : memref<3x3xf32, #tpu.memory_space<smem>>
    %c0_15 = arith.constant 0 : index
    %c1_16 = arith.constant 1 : index
    %19 = memref.load %arg4[%c0_15, %c1_16] : memref<3x3xf32, #tpu.memory_space<smem>>
    %c1_i32_17 = arith.constant 1 : i32
    %20 = arith.cmpi sgt, %4, %c1_i32_17 : i32
    %c0_i32_18 = arith.constant 0 : i32
    %21 = arith.cmpi eq, %17, %c0_i32_18 : i32
    %22 = arith.andi %20, %21 : i1
    %23 = arith.extui %22 : i1 to i32
    %c0_i32_19 = arith.constant 0 : i32
    %24 = arith.cmpi ne, %23, %c0_i32_19 : i32
    scf.if %24 {
      %c0_147 = arith.constant 0 : index
      %c0_148 = arith.constant 0 : index
      %182 = vector.load %arg9[%c0_147, %c0_148] : memref<32x512xf32, #tpu.memory_space<vmem>>, vector<32x512xf32>
      %183 = vector.broadcast %18 : f32 to vector<32x512xf32>
      %184 = arith.mulf %182, %183 : vector<32x512xf32>
      %185 = vector.broadcast %19 : f32 to vector<32x512xf32>
      %186 = arith.addf %184, %185 : vector<32x512xf32>
      %cst_149 = arith.constant 0.000000e+00 : f32
      %cst_150 = arith.constant 2.550000e+02 : f32
      %187 = vector.broadcast %cst_149 : f32 to vector<32x512xf32>
      %188 = arith.maximumf %187, %186 : vector<32x512xf32>
      %189 = vector.broadcast %cst_150 : f32 to vector<32x512xf32>
      %190 = arith.minimumf %189, %188 : vector<32x512xf32>
      %c0_151 = arith.constant 0 : index
      %c0_152 = arith.constant 0 : index
      %191 = vector.load %arg9[%c0_151, %c0_152] : memref<32x512xf32, #tpu.memory_space<vmem>>, vector<32x512xf32>
      tpu.vector_store %arg9[%c0_151, %c0_152], %190 {strides = array<i32>} : memref<32x512xf32, #tpu.memory_space<vmem>>, vector<32x512xf32>,
    } else {
    }
    %c1_i32_20 = arith.constant 1 : i32
    %25 = arith.cmpi sgt, %4, %c1_i32_20 : i32
    %c1_i32_21 = arith.constant 1 : i32
    %26 = arith.cmpi eq, %17, %c1_i32_21 : i32
    %27 = arith.andi %25, %26 : i1
    %28 = arith.extui %27 : i1 to i32
    %c0_i32_22 = arith.constant 0 : i32
    %29 = arith.cmpi ne, %28, %c0_i32_22 : i32
    scf.if %29 {
      %c0_147 = arith.constant 0 : index
      %c0_148 = arith.constant 0 : index
      %182 = vector.load %arg9[%c0_147, %c0_148] : memref<32x512xf32, #tpu.memory_space<vmem>>, vector<32x512xf32>
      %183 = vector.broadcast %18 : f32 to vector<32x512xf32>
      %184 = arith.cmpf olt, %182, %183 : vector<32x512xf32>
      %cst_149 = arith.constant 2.550000e+02 : f32
      %185 = vector.broadcast %cst_149 : f32 to vector<32x512xf32>
      %186 = arith.subf %185, %182 : vector<32x512xf32>
      %187 = arith.select %184, %182, %186 : vector<32x512xi1>, vector<32x512xf32>
      %c0_150 = arith.constant 0 : index
      %c0_151 = arith.constant 0 : index
      %188 = vector.load %arg9[%c0_150, %c0_151] : memref<32x512xf32, #tpu.memory_space<vmem>>, vector<32x512xf32>
      tpu.vector_store %arg9[%c0_150, %c0_151], %187 {strides = array<i32>} : memref<32x512xf32, #tpu.memory_space<vmem>>, vector<32x512xf32>,
    } else {
    }
    %c1_i32_23 = arith.constant 1 : i32
    %30 = arith.cmpi sgt, %4, %c1_i32_23 : i32
    %c2_i32_24 = arith.constant 2 : i32
    %31 = arith.cmpi eq, %17, %c2_i32_24 : i32
    %32 = arith.andi %30, %31 : i1
    %33 = arith.extui %32 : i1 to i32
    %c0_i32_25 = arith.constant 0 : i32
    %34 = arith.cmpi ne, %33, %c0_i32_25 : i32
    scf.if %34 {
      %c0_147 = arith.constant 0 : index
      %c0_148 = arith.constant 0 : index
      %182 = vector.load %arg9[%c0_147, %c0_148] : memref<32x512xf32, #tpu.memory_space<vmem>>, vector<32x512xf32>
      %183 = vector.broadcast %19 : f32 to vector<32x512xf32>
      %184 = arith.mulf %182, %183 : vector<32x512xf32>
      %185 = math.floor %184 : vector<32x512xf32>
      %186 = vector.broadcast %18 : f32 to vector<32x512xf32>
      %187 = arith.mulf %185, %186 : vector<32x512xf32>
      %c0_149 = arith.constant 0 : index
      %c0_150 = arith.constant 0 : index
      %188 = vector.load %arg9[%c0_149, %c0_150] : memref<32x512xf32, #tpu.memory_space<vmem>>, vector<32x512xf32>
      tpu.vector_store %arg9[%c0_149, %c0_150], %187 {strides = array<i32>} : memref<32x512xf32, #tpu.memory_space<vmem>>, vector<32x512xf32>,
    } else {
    }
    %c0_26 = arith.constant 0 : index
    %c2 = arith.constant 2 : index
    %35 = memref.load %arg2[%c0_26, %c2] : memref<3x3xi32, #tpu.memory_space<smem>>
    %c0_27 = arith.constant 0 : index
    %c2_28 = arith.constant 2 : index
    %36 = memref.load %arg3[%c0_27, %c2_28] : memref<3x3xf32, #tpu.memory_space<smem>>
    %c0_29 = arith.constant 0 : index
    %c2_30 = arith.constant 2 : index
    %37 = memref.load %arg4[%c0_29, %c2_30] : memref<3x3xf32, #tpu.memory_space<smem>>
    %c2_i32_31 = arith.constant 2 : i32
    %38 = arith.cmpi sgt, %4, %c2_i32_31 : i32
    %c0_i32_32 = arith.constant 0 : i32
    %39 = arith.cmpi eq, %35, %c0_i32_32 : i32
    %40 = arith.andi %38, %39 : i1
    %41 = arith.extui %40 : i1 to i32
    %c0_i32_33 = arith.constant 0 : i32
    %42 = arith.cmpi ne, %41, %c0_i32_33 : i32
    scf.if %42 {
      %c0_147 = arith.constant 0 : index
      %c0_148 = arith.constant 0 : index
      %182 = vector.load %arg9[%c0_147, %c0_148] : memref<32x512xf32, #tpu.memory_space<vmem>>, vector<32x512xf32>
      %183 = vector.broadcast %36 : f32 to vector<32x512xf32>
      %184 = arith.mulf %182, %183 : vector<32x512xf32>
      %185 = vector.broadcast %37 : f32 to vector<32x512xf32>
      %186 = arith.addf %184, %185 : vector<32x512xf32>
      %cst_149 = arith.constant 0.000000e+00 : f32
      %cst_150 = arith.constant 2.550000e+02 : f32
      %187 = vector.broadcast %cst_149 : f32 to vector<32x512xf32>
      %188 = arith.maximumf %187, %186 : vector<32x512xf32>
      %189 = vector.broadcast %cst_150 : f32 to vector<32x512xf32>
      %190 = arith.minimumf %189, %188 : vector<32x512xf32>
      %c0_151 = arith.constant 0 : index
      %c0_152 = arith.constant 0 : index
      %191 = vector.load %arg9[%c0_151, %c0_152] : memref<32x512xf32, #tpu.memory_space<vmem>>, vector<32x512xf32>
      tpu.vector_store %arg9[%c0_151, %c0_152], %190 {strides = array<i32>} : memref<32x512xf32, #tpu.memory_space<vmem>>, vector<32x512xf32>,
    } else {
    }
    %c2_i32_34 = arith.constant 2 : i32
    %43 = arith.cmpi sgt, %4, %c2_i32_34 : i32
    %c1_i32_35 = arith.constant 1 : i32
    %44 = arith.cmpi eq, %35, %c1_i32_35 : i32
    %45 = arith.andi %43, %44 : i1
    %46 = arith.extui %45 : i1 to i32
    %c0_i32_36 = arith.constant 0 : i32
    %47 = arith.cmpi ne, %46, %c0_i32_36 : i32
    scf.if %47 {
      %c0_147 = arith.constant 0 : index
      %c0_148 = arith.constant 0 : index
      %182 = vector.load %arg9[%c0_147, %c0_148] : memref<32x512xf32, #tpu.memory_space<vmem>>, vector<32x512xf32>
      %183 = vector.broadcast %36 : f32 to vector<32x512xf32>
      %184 = arith.cmpf olt, %182, %183 : vector<32x512xf32>
      %cst_149 = arith.constant 2.550000e+02 : f32
      %185 = vector.broadcast %cst_149 : f32 to vector<32x512xf32>
      %186 = arith.subf %185, %182 : vector<32x512xf32>
      %187 = arith.select %184, %182, %186 : vector<32x512xi1>, vector<32x512xf32>
      %c0_150 = arith.constant 0 : index
      %c0_151 = arith.constant 0 : index
      %188 = vector.load %arg9[%c0_150, %c0_151] : memref<32x512xf32, #tpu.memory_space<vmem>>, vector<32x512xf32>
      tpu.vector_store %arg9[%c0_150, %c0_151], %187 {strides = array<i32>} : memref<32x512xf32, #tpu.memory_space<vmem>>, vector<32x512xf32>,
    } else {
    }
    %c2_i32_37 = arith.constant 2 : i32
    %48 = arith.cmpi sgt, %4, %c2_i32_37 : i32
    %c2_i32_38 = arith.constant 2 : i32
    %49 = arith.cmpi eq, %35, %c2_i32_38 : i32
    %50 = arith.andi %48, %49 : i1
    %51 = arith.extui %50 : i1 to i32
    %c0_i32_39 = arith.constant 0 : i32
    %52 = arith.cmpi ne, %51, %c0_i32_39 : i32
    scf.if %52 {
      %c0_147 = arith.constant 0 : index
      %c0_148 = arith.constant 0 : index
      %182 = vector.load %arg9[%c0_147, %c0_148] : memref<32x512xf32, #tpu.memory_space<vmem>>, vector<32x512xf32>
      %183 = vector.broadcast %37 : f32 to vector<32x512xf32>
      %184 = arith.mulf %182, %183 : vector<32x512xf32>
      %185 = math.floor %184 : vector<32x512xf32>
      %186 = vector.broadcast %36 : f32 to vector<32x512xf32>
      %187 = arith.mulf %185, %186 : vector<32x512xf32>
      %c0_149 = arith.constant 0 : index
      %c0_150 = arith.constant 0 : index
      %188 = vector.load %arg9[%c0_149, %c0_150] : memref<32x512xf32, #tpu.memory_space<vmem>>, vector<32x512xf32>
      tpu.vector_store %arg9[%c0_149, %c0_150], %187 {strides = array<i32>} : memref<32x512xf32, #tpu.memory_space<vmem>>, vector<32x512xf32>,
    } else {
    }
    %c0_40 = arith.constant 0 : index
    %53 = memref.load %arg5[%c0_40] : memref<3xf32, #tpu.memory_space<smem>>
    %c0_41 = arith.constant 0 : index
    %c0_42 = arith.constant 0 : index
    %54 = vector.load %arg9[%c0_41, %c0_42] : memref<32x512xf32, #tpu.memory_space<vmem>>, vector<32x512xf32>
    %55 = vector.broadcast %53 : f32 to vector<32x512xf32>
    %56 = arith.mulf %55, %54 : vector<32x512xf32>
    %c0_43 = arith.constant 0 : index
    %c0_44 = arith.constant 0 : index
    %57 = vector.load %arg10[%c0_43, %c0_44] : memref<32x512xf32, #tpu.memory_space<vmem>>, vector<32x512xf32>
    tpu.vector_store %arg10[%c0_43, %c0_44], %56 {strides = array<i32>} : memref<32x512xf32, #tpu.memory_space<vmem>>, vector<32x512xf32>,
    %c1_45 = arith.constant 1 : index
    %58 = memref.load %arg1[%c1_45] : memref<3xi32, #tpu.memory_space<smem>>
    %c1_46 = arith.constant 1 : index
    %c0_47 = arith.constant 0 : index
    %59 = memref.load %arg2[%c1_46, %c0_47] : memref<3x3xi32, #tpu.memory_space<smem>>
    %c1_48 = arith.constant 1 : index
    %c0_49 = arith.constant 0 : index
    %60 = memref.load %arg3[%c1_48, %c0_49] : memref<3x3xf32, #tpu.memory_space<smem>>
    %c1_50 = arith.constant 1 : index
    %c0_51 = arith.constant 0 : index
    %61 = memref.load %arg4[%c1_50, %c0_51] : memref<3x3xf32, #tpu.memory_space<smem>>
    %c0_i32_52 = arith.constant 0 : i32
    %62 = arith.cmpi eq, %59, %c0_i32_52 : i32
    %63 = arith.extui %62 : i1 to i32
    %c0_i32_53 = arith.constant 0 : i32
    %64 = arith.cmpi ne, %63, %c0_i32_53 : i32
    scf.if %64 {
      %182 = vector.broadcast %60 : f32 to vector<32x512xf32>
      %183 = arith.mulf %2, %182 : vector<32x512xf32>
      %184 = vector.broadcast %61 : f32 to vector<32x512xf32>
      %185 = arith.addf %183, %184 : vector<32x512xf32>
      %cst_147 = arith.constant 0.000000e+00 : f32
      %cst_148 = arith.constant 2.550000e+02 : f32
      %186 = vector.broadcast %cst_147 : f32 to vector<32x512xf32>
      %187 = arith.maximumf %186, %185 : vector<32x512xf32>
      %188 = vector.broadcast %cst_148 : f32 to vector<32x512xf32>
      %189 = arith.minimumf %188, %187 : vector<32x512xf32>
      %c0_149 = arith.constant 0 : index
      %c0_150 = arith.constant 0 : index
      %190 = vector.load %arg9[%c0_149, %c0_150] : memref<32x512xf32, #tpu.memory_space<vmem>>, vector<32x512xf32>
      tpu.vector_store %arg9[%c0_149, %c0_150], %189 {strides = array<i32>} : memref<32x512xf32, #tpu.memory_space<vmem>>, vector<32x512xf32>,
    } else {
    }
    %c1_i32_54 = arith.constant 1 : i32
    %65 = arith.cmpi eq, %59, %c1_i32_54 : i32
    %66 = arith.extui %65 : i1 to i32
    %c0_i32_55 = arith.constant 0 : i32
    %67 = arith.cmpi ne, %66, %c0_i32_55 : i32
    scf.if %67 {
      %182 = vector.broadcast %60 : f32 to vector<32x512xf32>
      %183 = arith.cmpf olt, %2, %182 : vector<32x512xf32>
      %cst_147 = arith.constant 2.550000e+02 : f32
      %184 = vector.broadcast %cst_147 : f32 to vector<32x512xf32>
      %185 = arith.subf %184, %2 : vector<32x512xf32>
      %186 = arith.select %183, %2, %185 : vector<32x512xi1>, vector<32x512xf32>
      %c0_148 = arith.constant 0 : index
      %c0_149 = arith.constant 0 : index
      %187 = vector.load %arg9[%c0_148, %c0_149] : memref<32x512xf32, #tpu.memory_space<vmem>>, vector<32x512xf32>
      tpu.vector_store %arg9[%c0_148, %c0_149], %186 {strides = array<i32>} : memref<32x512xf32, #tpu.memory_space<vmem>>, vector<32x512xf32>,
    } else {
    }
    %c2_i32_56 = arith.constant 2 : i32
    %68 = arith.cmpi eq, %59, %c2_i32_56 : i32
    %69 = arith.extui %68 : i1 to i32
    %c0_i32_57 = arith.constant 0 : i32
    %70 = arith.cmpi ne, %69, %c0_i32_57 : i32
    scf.if %70 {
      %182 = vector.broadcast %61 : f32 to vector<32x512xf32>
      %183 = arith.mulf %2, %182 : vector<32x512xf32>
      %184 = math.floor %183 : vector<32x512xf32>
      %185 = vector.broadcast %60 : f32 to vector<32x512xf32>
      %186 = arith.mulf %184, %185 : vector<32x512xf32>
      %c0_147 = arith.constant 0 : index
      %c0_148 = arith.constant 0 : index
      %187 = vector.load %arg9[%c0_147, %c0_148] : memref<32x512xf32, #tpu.memory_space<vmem>>, vector<32x512xf32>
      tpu.vector_store %arg9[%c0_147, %c0_148], %186 {strides = array<i32>} : memref<32x512xf32, #tpu.memory_space<vmem>>, vector<32x512xf32>,
    } else {
    }
    %c1_58 = arith.constant 1 : index
    %c1_59 = arith.constant 1 : index
    %71 = memref.load %arg2[%c1_58, %c1_59] : memref<3x3xi32, #tpu.memory_space<smem>>
    %c1_60 = arith.constant 1 : index
    %c1_61 = arith.constant 1 : index
    %72 = memref.load %arg3[%c1_60, %c1_61] : memref<3x3xf32, #tpu.memory_space<smem>>
    %c1_62 = arith.constant 1 : index
    %c1_63 = arith.constant 1 : index
    %73 = memref.load %arg4[%c1_62, %c1_63] : memref<3x3xf32, #tpu.memory_space<smem>>
    %c1_i32_64 = arith.constant 1 : i32
    %74 = arith.cmpi sgt, %58, %c1_i32_64 : i32
    %c0_i32_65 = arith.constant 0 : i32
    %75 = arith.cmpi eq, %71, %c0_i32_65 : i32
    %76 = arith.andi %74, %75 : i1
    %77 = arith.extui %76 : i1 to i32
    %c0_i32_66 = arith.constant 0 : i32
    %78 = arith.cmpi ne, %77, %c0_i32_66 : i32
    scf.if %78 {
      %c0_147 = arith.constant 0 : index
      %c0_148 = arith.constant 0 : index
      %182 = vector.load %arg9[%c0_147, %c0_148] : memref<32x512xf32, #tpu.memory_space<vmem>>, vector<32x512xf32>
      %183 = vector.broadcast %72 : f32 to vector<32x512xf32>
      %184 = arith.mulf %182, %183 : vector<32x512xf32>
      %185 = vector.broadcast %73 : f32 to vector<32x512xf32>
      %186 = arith.addf %184, %185 : vector<32x512xf32>
      %cst_149 = arith.constant 0.000000e+00 : f32
      %cst_150 = arith.constant 2.550000e+02 : f32
      %187 = vector.broadcast %cst_149 : f32 to vector<32x512xf32>
      %188 = arith.maximumf %187, %186 : vector<32x512xf32>
      %189 = vector.broadcast %cst_150 : f32 to vector<32x512xf32>
      %190 = arith.minimumf %189, %188 : vector<32x512xf32>
      %c0_151 = arith.constant 0 : index
      %c0_152 = arith.constant 0 : index
      %191 = vector.load %arg9[%c0_151, %c0_152] : memref<32x512xf32, #tpu.memory_space<vmem>>, vector<32x512xf32>
      tpu.vector_store %arg9[%c0_151, %c0_152], %190 {strides = array<i32>} : memref<32x512xf32, #tpu.memory_space<vmem>>, vector<32x512xf32>,
    } else {
    }
    %c1_i32_67 = arith.constant 1 : i32
    %79 = arith.cmpi sgt, %58, %c1_i32_67 : i32
    %c1_i32_68 = arith.constant 1 : i32
    %80 = arith.cmpi eq, %71, %c1_i32_68 : i32
    %81 = arith.andi %79, %80 : i1
    %82 = arith.extui %81 : i1 to i32
    %c0_i32_69 = arith.constant 0 : i32
    %83 = arith.cmpi ne, %82, %c0_i32_69 : i32
    scf.if %83 {
      %c0_147 = arith.constant 0 : index
      %c0_148 = arith.constant 0 : index
      %182 = vector.load %arg9[%c0_147, %c0_148] : memref<32x512xf32, #tpu.memory_space<vmem>>, vector<32x512xf32>
      %183 = vector.broadcast %72 : f32 to vector<32x512xf32>
      %184 = arith.cmpf olt, %182, %183 : vector<32x512xf32>
      %cst_149 = arith.constant 2.550000e+02 : f32
      %185 = vector.broadcast %cst_149 : f32 to vector<32x512xf32>
      %186 = arith.subf %185, %182 : vector<32x512xf32>
      %187 = arith.select %184, %182, %186 : vector<32x512xi1>, vector<32x512xf32>
      %c0_150 = arith.constant 0 : index
      %c0_151 = arith.constant 0 : index
      %188 = vector.load %arg9[%c0_150, %c0_151] : memref<32x512xf32, #tpu.memory_space<vmem>>, vector<32x512xf32>
      tpu.vector_store %arg9[%c0_150, %c0_151], %187 {strides = array<i32>} : memref<32x512xf32, #tpu.memory_space<vmem>>, vector<32x512xf32>,
    } else {
    }
    %c1_i32_70 = arith.constant 1 : i32
    %84 = arith.cmpi sgt, %58, %c1_i32_70 : i32
    %c2_i32_71 = arith.constant 2 : i32
    %85 = arith.cmpi eq, %71, %c2_i32_71 : i32
    %86 = arith.andi %84, %85 : i1
    %87 = arith.extui %86 : i1 to i32
    %c0_i32_72 = arith.constant 0 : i32
    %88 = arith.cmpi ne, %87, %c0_i32_72 : i32
    scf.if %88 {
      %c0_147 = arith.constant 0 : index
      %c0_148 = arith.constant 0 : index
      %182 = vector.load %arg9[%c0_147, %c0_148] : memref<32x512xf32, #tpu.memory_space<vmem>>, vector<32x512xf32>
      %183 = vector.broadcast %73 : f32 to vector<32x512xf32>
      %184 = arith.mulf %182, %183 : vector<32x512xf32>
      %185 = math.floor %184 : vector<32x512xf32>
      %186 = vector.broadcast %72 : f32 to vector<32x512xf32>
      %187 = arith.mulf %185, %186 : vector<32x512xf32>
      %c0_149 = arith.constant 0 : index
      %c0_150 = arith.constant 0 : index
      %188 = vector.load %arg9[%c0_149, %c0_150] : memref<32x512xf32, #tpu.memory_space<vmem>>, vector<32x512xf32>
      tpu.vector_store %arg9[%c0_149, %c0_150], %187 {strides = array<i32>} : memref<32x512xf32, #tpu.memory_space<vmem>>, vector<32x512xf32>,
    } else {
    }
    %c1_73 = arith.constant 1 : index
    %c2_74 = arith.constant 2 : index
    %89 = memref.load %arg2[%c1_73, %c2_74] : memref<3x3xi32, #tpu.memory_space<smem>>
    %c1_75 = arith.constant 1 : index
    %c2_76 = arith.constant 2 : index
    %90 = memref.load %arg3[%c1_75, %c2_76] : memref<3x3xf32, #tpu.memory_space<smem>>
    %c1_77 = arith.constant 1 : index
    %c2_78 = arith.constant 2 : index
    %91 = memref.load %arg4[%c1_77, %c2_78] : memref<3x3xf32, #tpu.memory_space<smem>>
    %c2_i32_79 = arith.constant 2 : i32
    %92 = arith.cmpi sgt, %58, %c2_i32_79 : i32
    %c0_i32_80 = arith.constant 0 : i32
    %93 = arith.cmpi eq, %89, %c0_i32_80 : i32
    %94 = arith.andi %92, %93 : i1
    %95 = arith.extui %94 : i1 to i32
    %c0_i32_81 = arith.constant 0 : i32
    %96 = arith.cmpi ne, %95, %c0_i32_81 : i32
    scf.if %96 {
      %c0_147 = arith.constant 0 : index
      %c0_148 = arith.constant 0 : index
      %182 = vector.load %arg9[%c0_147, %c0_148] : memref<32x512xf32, #tpu.memory_space<vmem>>, vector<32x512xf32>
      %183 = vector.broadcast %90 : f32 to vector<32x512xf32>
      %184 = arith.mulf %182, %183 : vector<32x512xf32>
      %185 = vector.broadcast %91 : f32 to vector<32x512xf32>
      %186 = arith.addf %184, %185 : vector<32x512xf32>
      %cst_149 = arith.constant 0.000000e+00 : f32
      %cst_150 = arith.constant 2.550000e+02 : f32
      %187 = vector.broadcast %cst_149 : f32 to vector<32x512xf32>
      %188 = arith.maximumf %187, %186 : vector<32x512xf32>
      %189 = vector.broadcast %cst_150 : f32 to vector<32x512xf32>
      %190 = arith.minimumf %189, %188 : vector<32x512xf32>
      %c0_151 = arith.constant 0 : index
      %c0_152 = arith.constant 0 : index
      %191 = vector.load %arg9[%c0_151, %c0_152] : memref<32x512xf32, #tpu.memory_space<vmem>>, vector<32x512xf32>
      tpu.vector_store %arg9[%c0_151, %c0_152], %190 {strides = array<i32>} : memref<32x512xf32, #tpu.memory_space<vmem>>, vector<32x512xf32>,
    } else {
    }
    %c2_i32_82 = arith.constant 2 : i32
    %97 = arith.cmpi sgt, %58, %c2_i32_82 : i32
    %c1_i32_83 = arith.constant 1 : i32
    %98 = arith.cmpi eq, %89, %c1_i32_83 : i32
    %99 = arith.andi %97, %98 : i1
    %100 = arith.extui %99 : i1 to i32
    %c0_i32_84 = arith.constant 0 : i32
    %101 = arith.cmpi ne, %100, %c0_i32_84 : i32
    scf.if %101 {
      %c0_147 = arith.constant 0 : index
      %c0_148 = arith.constant 0 : index
      %182 = vector.load %arg9[%c0_147, %c0_148] : memref<32x512xf32, #tpu.memory_space<vmem>>, vector<32x512xf32>
      %183 = vector.broadcast %90 : f32 to vector<32x512xf32>
      %184 = arith.cmpf olt, %182, %183 : vector<32x512xf32>
      %cst_149 = arith.constant 2.550000e+02 : f32
      %185 = vector.broadcast %cst_149 : f32 to vector<32x512xf32>
      %186 = arith.subf %185, %182 : vector<32x512xf32>
      %187 = arith.select %184, %182, %186 : vector<32x512xi1>, vector<32x512xf32>
      %c0_150 = arith.constant 0 : index
      %c0_151 = arith.constant 0 : index
      %188 = vector.load %arg9[%c0_150, %c0_151] : memref<32x512xf32, #tpu.memory_space<vmem>>, vector<32x512xf32>
      tpu.vector_store %arg9[%c0_150, %c0_151], %187 {strides = array<i32>} : memref<32x512xf32, #tpu.memory_space<vmem>>, vector<32x512xf32>,
    } else {
    }
    %c2_i32_85 = arith.constant 2 : i32
    %102 = arith.cmpi sgt, %58, %c2_i32_85 : i32
    %c2_i32_86 = arith.constant 2 : i32
    %103 = arith.cmpi eq, %89, %c2_i32_86 : i32
    %104 = arith.andi %102, %103 : i1
    %105 = arith.extui %104 : i1 to i32
    %c0_i32_87 = arith.constant 0 : i32
    %106 = arith.cmpi ne, %105, %c0_i32_87 : i32
    scf.if %106 {
      %c0_147 = arith.constant 0 : index
      %c0_148 = arith.constant 0 : index
      %182 = vector.load %arg9[%c0_147, %c0_148] : memref<32x512xf32, #tpu.memory_space<vmem>>, vector<32x512xf32>
      %183 = vector.broadcast %91 : f32 to vector<32x512xf32>
      %184 = arith.mulf %182, %183 : vector<32x512xf32>
      %185 = math.floor %184 : vector<32x512xf32>
      %186 = vector.broadcast %90 : f32 to vector<32x512xf32>
      %187 = arith.mulf %185, %186 : vector<32x512xf32>
      %c0_149 = arith.constant 0 : index
      %c0_150 = arith.constant 0 : index
      %188 = vector.load %arg9[%c0_149, %c0_150] : memref<32x512xf32, #tpu.memory_space<vmem>>, vector<32x512xf32>
      tpu.vector_store %arg9[%c0_149, %c0_150], %187 {strides = array<i32>} : memref<32x512xf32, #tpu.memory_space<vmem>>, vector<32x512xf32>,
    } else {
    }
    %c1_88 = arith.constant 1 : index
    %107 = memref.load %arg5[%c1_88] : memref<3xf32, #tpu.memory_space<smem>>
    %c0_89 = arith.constant 0 : index
    %c0_90 = arith.constant 0 : index
    %108 = vector.load %arg9[%c0_89, %c0_90] : memref<32x512xf32, #tpu.memory_space<vmem>>, vector<32x512xf32>
    %109 = vector.broadcast %107 : f32 to vector<32x512xf32>
    %110 = arith.mulf %109, %108 : vector<32x512xf32>
    %c0_91 = arith.constant 0 : index
    %c0_92 = arith.constant 0 : index
    %111 = vector.load %arg10[%c0_91, %c0_92] : memref<32x512xf32, #tpu.memory_space<vmem>>, vector<32x512xf32>
    %112 = arith.addf %111, %110 : vector<32x512xf32>
    %c0_93 = arith.constant 0 : index
    %c0_94 = arith.constant 0 : index
    %113 = vector.load %arg10[%c0_93, %c0_94] : memref<32x512xf32, #tpu.memory_space<vmem>>, vector<32x512xf32>
    tpu.vector_store %arg10[%c0_93, %c0_94], %112 {strides = array<i32>} : memref<32x512xf32, #tpu.memory_space<vmem>>, vector<32x512xf32>,
    %c2_95 = arith.constant 2 : index
    %114 = memref.load %arg1[%c2_95] : memref<3xi32, #tpu.memory_space<smem>>
    %c2_96 = arith.constant 2 : index
    %c0_97 = arith.constant 0 : index
    %115 = memref.load %arg2[%c2_96, %c0_97] : memref<3x3xi32, #tpu.memory_space<smem>>
    %c2_98 = arith.constant 2 : index
    %c0_99 = arith.constant 0 : index
    %116 = memref.load %arg3[%c2_98, %c0_99] : memref<3x3xf32, #tpu.memory_space<smem>>
    %c2_100 = arith.constant 2 : index
    %c0_101 = arith.constant 0 : index
    %117 = memref.load %arg4[%c2_100, %c0_101] : memref<3x3xf32, #tpu.memory_space<smem>>
    %c0_i32_102 = arith.constant 0 : i32
    %118 = arith.cmpi eq, %115, %c0_i32_102 : i32
    %119 = arith.extui %118 : i1 to i32
    %c0_i32_103 = arith.constant 0 : i32
    %120 = arith.cmpi ne, %119, %c0_i32_103 : i32
    scf.if %120 {
      %182 = vector.broadcast %116 : f32 to vector<32x512xf32>
      %183 = arith.mulf %2, %182 : vector<32x512xf32>
      %184 = vector.broadcast %117 : f32 to vector<32x512xf32>
      %185 = arith.addf %183, %184 : vector<32x512xf32>
      %cst_147 = arith.constant 0.000000e+00 : f32
      %cst_148 = arith.constant 2.550000e+02 : f32
      %186 = vector.broadcast %cst_147 : f32 to vector<32x512xf32>
      %187 = arith.maximumf %186, %185 : vector<32x512xf32>
      %188 = vector.broadcast %cst_148 : f32 to vector<32x512xf32>
      %189 = arith.minimumf %188, %187 : vector<32x512xf32>
      %c0_149 = arith.constant 0 : index
      %c0_150 = arith.constant 0 : index
      %190 = vector.load %arg9[%c0_149, %c0_150] : memref<32x512xf32, #tpu.memory_space<vmem>>, vector<32x512xf32>
      tpu.vector_store %arg9[%c0_149, %c0_150], %189 {strides = array<i32>} : memref<32x512xf32, #tpu.memory_space<vmem>>, vector<32x512xf32>,
    } else {
    }
    %c1_i32_104 = arith.constant 1 : i32
    %121 = arith.cmpi eq, %115, %c1_i32_104 : i32
    %122 = arith.extui %121 : i1 to i32
    %c0_i32_105 = arith.constant 0 : i32
    %123 = arith.cmpi ne, %122, %c0_i32_105 : i32
    scf.if %123 {
      %182 = vector.broadcast %116 : f32 to vector<32x512xf32>
      %183 = arith.cmpf olt, %2, %182 : vector<32x512xf32>
      %cst_147 = arith.constant 2.550000e+02 : f32
      %184 = vector.broadcast %cst_147 : f32 to vector<32x512xf32>
      %185 = arith.subf %184, %2 : vector<32x512xf32>
      %186 = arith.select %183, %2, %185 : vector<32x512xi1>, vector<32x512xf32>
      %c0_148 = arith.constant 0 : index
      %c0_149 = arith.constant 0 : index
      %187 = vector.load %arg9[%c0_148, %c0_149] : memref<32x512xf32, #tpu.memory_space<vmem>>, vector<32x512xf32>
      tpu.vector_store %arg9[%c0_148, %c0_149], %186 {strides = array<i32>} : memref<32x512xf32, #tpu.memory_space<vmem>>, vector<32x512xf32>,
    } else {
    }
    %c2_i32_106 = arith.constant 2 : i32
    %124 = arith.cmpi eq, %115, %c2_i32_106 : i32
    %125 = arith.extui %124 : i1 to i32
    %c0_i32_107 = arith.constant 0 : i32
    %126 = arith.cmpi ne, %125, %c0_i32_107 : i32
    scf.if %126 {
      %182 = vector.broadcast %117 : f32 to vector<32x512xf32>
      %183 = arith.mulf %2, %182 : vector<32x512xf32>
      %184 = math.floor %183 : vector<32x512xf32>
      %185 = vector.broadcast %116 : f32 to vector<32x512xf32>
      %186 = arith.mulf %184, %185 : vector<32x512xf32>
      %c0_147 = arith.constant 0 : index
      %c0_148 = arith.constant 0 : index
      %187 = vector.load %arg9[%c0_147, %c0_148] : memref<32x512xf32, #tpu.memory_space<vmem>>, vector<32x512xf32>
      tpu.vector_store %arg9[%c0_147, %c0_148], %186 {strides = array<i32>} : memref<32x512xf32, #tpu.memory_space<vmem>>, vector<32x512xf32>,
    } else {
    }
    %c2_108 = arith.constant 2 : index
    %c1_109 = arith.constant 1 : index
    %127 = memref.load %arg2[%c2_108, %c1_109] : memref<3x3xi32, #tpu.memory_space<smem>>
    %c2_110 = arith.constant 2 : index
    %c1_111 = arith.constant 1 : index
    %128 = memref.load %arg3[%c2_110, %c1_111] : memref<3x3xf32, #tpu.memory_space<smem>>
    %c2_112 = arith.constant 2 : index
    %c1_113 = arith.constant 1 : index
    %129 = memref.load %arg4[%c2_112, %c1_113] : memref<3x3xf32, #tpu.memory_space<smem>>
    %c1_i32_114 = arith.constant 1 : i32
    %130 = arith.cmpi sgt, %114, %c1_i32_114 : i32
    %c0_i32_115 = arith.constant 0 : i32
    %131 = arith.cmpi eq, %127, %c0_i32_115 : i32
    %132 = arith.andi %130, %131 : i1
    %133 = arith.extui %132 : i1 to i32
    %c0_i32_116 = arith.constant 0 : i32
    %134 = arith.cmpi ne, %133, %c0_i32_116 : i32
    scf.if %134 {
      %c0_147 = arith.constant 0 : index
      %c0_148 = arith.constant 0 : index
      %182 = vector.load %arg9[%c0_147, %c0_148] : memref<32x512xf32, #tpu.memory_space<vmem>>, vector<32x512xf32>
      %183 = vector.broadcast %128 : f32 to vector<32x512xf32>
      %184 = arith.mulf %182, %183 : vector<32x512xf32>
      %185 = vector.broadcast %129 : f32 to vector<32x512xf32>
      %186 = arith.addf %184, %185 : vector<32x512xf32>
      %cst_149 = arith.constant 0.000000e+00 : f32
      %cst_150 = arith.constant 2.550000e+02 : f32
      %187 = vector.broadcast %cst_149 : f32 to vector<32x512xf32>
      %188 = arith.maximumf %187, %186 : vector<32x512xf32>
      %189 = vector.broadcast %cst_150 : f32 to vector<32x512xf32>
      %190 = arith.minimumf %189, %188 : vector<32x512xf32>
      %c0_151 = arith.constant 0 : index
      %c0_152 = arith.constant 0 : index
      %191 = vector.load %arg9[%c0_151, %c0_152] : memref<32x512xf32, #tpu.memory_space<vmem>>, vector<32x512xf32>
      tpu.vector_store %arg9[%c0_151, %c0_152], %190 {strides = array<i32>} : memref<32x512xf32, #tpu.memory_space<vmem>>, vector<32x512xf32>,
    } else {
    }
    %c1_i32_117 = arith.constant 1 : i32
    %135 = arith.cmpi sgt, %114, %c1_i32_117 : i32
    %c1_i32_118 = arith.constant 1 : i32
    %136 = arith.cmpi eq, %127, %c1_i32_118 : i32
    %137 = arith.andi %135, %136 : i1
    %138 = arith.extui %137 : i1 to i32
    %c0_i32_119 = arith.constant 0 : i32
    %139 = arith.cmpi ne, %138, %c0_i32_119 : i32
    scf.if %139 {
      %c0_147 = arith.constant 0 : index
      %c0_148 = arith.constant 0 : index
      %182 = vector.load %arg9[%c0_147, %c0_148] : memref<32x512xf32, #tpu.memory_space<vmem>>, vector<32x512xf32>
      %183 = vector.broadcast %128 : f32 to vector<32x512xf32>
      %184 = arith.cmpf olt, %182, %183 : vector<32x512xf32>
      %cst_149 = arith.constant 2.550000e+02 : f32
      %185 = vector.broadcast %cst_149 : f32 to vector<32x512xf32>
      %186 = arith.subf %185, %182 : vector<32x512xf32>
      %187 = arith.select %184, %182, %186 : vector<32x512xi1>, vector<32x512xf32>
      %c0_150 = arith.constant 0 : index
      %c0_151 = arith.constant 0 : index
      %188 = vector.load %arg9[%c0_150, %c0_151] : memref<32x512xf32, #tpu.memory_space<vmem>>, vector<32x512xf32>
      tpu.vector_store %arg9[%c0_150, %c0_151], %187 {strides = array<i32>} : memref<32x512xf32, #tpu.memory_space<vmem>>, vector<32x512xf32>,
    } else {
    }
    %c1_i32_120 = arith.constant 1 : i32
    %140 = arith.cmpi sgt, %114, %c1_i32_120 : i32
    %c2_i32_121 = arith.constant 2 : i32
    %141 = arith.cmpi eq, %127, %c2_i32_121 : i32
    %142 = arith.andi %140, %141 : i1
    %143 = arith.extui %142 : i1 to i32
    %c0_i32_122 = arith.constant 0 : i32
    %144 = arith.cmpi ne, %143, %c0_i32_122 : i32
    scf.if %144 {
      %c0_147 = arith.constant 0 : index
      %c0_148 = arith.constant 0 : index
      %182 = vector.load %arg9[%c0_147, %c0_148] : memref<32x512xf32, #tpu.memory_space<vmem>>, vector<32x512xf32>
      %183 = vector.broadcast %129 : f32 to vector<32x512xf32>
      %184 = arith.mulf %182, %183 : vector<32x512xf32>
      %185 = math.floor %184 : vector<32x512xf32>
      %186 = vector.broadcast %128 : f32 to vector<32x512xf32>
      %187 = arith.mulf %185, %186 : vector<32x512xf32>
      %c0_149 = arith.constant 0 : index
      %c0_150 = arith.constant 0 : index
      %188 = vector.load %arg9[%c0_149, %c0_150] : memref<32x512xf32, #tpu.memory_space<vmem>>, vector<32x512xf32>
      tpu.vector_store %arg9[%c0_149, %c0_150], %187 {strides = array<i32>} : memref<32x512xf32, #tpu.memory_space<vmem>>, vector<32x512xf32>,
    } else {
    }
    %c2_123 = arith.constant 2 : index
    %c2_124 = arith.constant 2 : index
    %145 = memref.load %arg2[%c2_123, %c2_124] : memref<3x3xi32, #tpu.memory_space<smem>>
    %c2_125 = arith.constant 2 : index
    %c2_126 = arith.constant 2 : index
    %146 = memref.load %arg3[%c2_125, %c2_126] : memref<3x3xf32, #tpu.memory_space<smem>>
    %c2_127 = arith.constant 2 : index
    %c2_128 = arith.constant 2 : index
    %147 = memref.load %arg4[%c2_127, %c2_128] : memref<3x3xf32, #tpu.memory_space<smem>>
    %c2_i32_129 = arith.constant 2 : i32
    %148 = arith.cmpi sgt, %114, %c2_i32_129 : i32
    %c0_i32_130 = arith.constant 0 : i32
    %149 = arith.cmpi eq, %145, %c0_i32_130 : i32
    %150 = arith.andi %148, %149 : i1
    %151 = arith.extui %150 : i1 to i32
    %c0_i32_131 = arith.constant 0 : i32
    %152 = arith.cmpi ne, %151, %c0_i32_131 : i32
    scf.if %152 {
      %c0_147 = arith.constant 0 : index
      %c0_148 = arith.constant 0 : index
      %182 = vector.load %arg9[%c0_147, %c0_148] : memref<32x512xf32, #tpu.memory_space<vmem>>, vector<32x512xf32>
      %183 = vector.broadcast %146 : f32 to vector<32x512xf32>
      %184 = arith.mulf %182, %183 : vector<32x512xf32>
      %185 = vector.broadcast %147 : f32 to vector<32x512xf32>
      %186 = arith.addf %184, %185 : vector<32x512xf32>
      %cst_149 = arith.constant 0.000000e+00 : f32
      %cst_150 = arith.constant 2.550000e+02 : f32
      %187 = vector.broadcast %cst_149 : f32 to vector<32x512xf32>
      %188 = arith.maximumf %187, %186 : vector<32x512xf32>
      %189 = vector.broadcast %cst_150 : f32 to vector<32x512xf32>
      %190 = arith.minimumf %189, %188 : vector<32x512xf32>
      %c0_151 = arith.constant 0 : index
      %c0_152 = arith.constant 0 : index
      %191 = vector.load %arg9[%c0_151, %c0_152] : memref<32x512xf32, #tpu.memory_space<vmem>>, vector<32x512xf32>
      tpu.vector_store %arg9[%c0_151, %c0_152], %190 {strides = array<i32>} : memref<32x512xf32, #tpu.memory_space<vmem>>, vector<32x512xf32>,
    } else {
    }
    %c2_i32_132 = arith.constant 2 : i32
    %153 = arith.cmpi sgt, %114, %c2_i32_132 : i32
    %c1_i32_133 = arith.constant 1 : i32
    %154 = arith.cmpi eq, %145, %c1_i32_133 : i32
    %155 = arith.andi %153, %154 : i1
    %156 = arith.extui %155 : i1 to i32
    %c0_i32_134 = arith.constant 0 : i32
    %157 = arith.cmpi ne, %156, %c0_i32_134 : i32
    scf.if %157 {
      %c0_147 = arith.constant 0 : index
      %c0_148 = arith.constant 0 : index
      %182 = vector.load %arg9[%c0_147, %c0_148] : memref<32x512xf32, #tpu.memory_space<vmem>>, vector<32x512xf32>
      %183 = vector.broadcast %146 : f32 to vector<32x512xf32>
      %184 = arith.cmpf olt, %182, %183 : vector<32x512xf32>
      %cst_149 = arith.constant 2.550000e+02 : f32
      %185 = vector.broadcast %cst_149 : f32 to vector<32x512xf32>
      %186 = arith.subf %185, %182 : vector<32x512xf32>
      %187 = arith.select %184, %182, %186 : vector<32x512xi1>, vector<32x512xf32>
      %c0_150 = arith.constant 0 : index
      %c0_151 = arith.constant 0 : index
      %188 = vector.load %arg9[%c0_150, %c0_151] : memref<32x512xf32, #tpu.memory_space<vmem>>, vector<32x512xf32>
      tpu.vector_store %arg9[%c0_150, %c0_151], %187 {strides = array<i32>} : memref<32x512xf32, #tpu.memory_space<vmem>>, vector<32x512xf32>,
    } else {
    }
    %c2_i32_135 = arith.constant 2 : i32
    %158 = arith.cmpi sgt, %114, %c2_i32_135 : i32
    %c2_i32_136 = arith.constant 2 : i32
    %159 = arith.cmpi eq, %145, %c2_i32_136 : i32
    %160 = arith.andi %158, %159 : i1
    %161 = arith.extui %160 : i1 to i32
    %c0_i32_137 = arith.constant 0 : i32
    %162 = arith.cmpi ne, %161, %c0_i32_137 : i32
    scf.if %162 {
      %c0_147 = arith.constant 0 : index
      %c0_148 = arith.constant 0 : index
      %182 = vector.load %arg9[%c0_147, %c0_148] : memref<32x512xf32, #tpu.memory_space<vmem>>, vector<32x512xf32>
      %183 = vector.broadcast %147 : f32 to vector<32x512xf32>
      %184 = arith.mulf %182, %183 : vector<32x512xf32>
      %185 = math.floor %184 : vector<32x512xf32>
      %186 = vector.broadcast %146 : f32 to vector<32x512xf32>
      %187 = arith.mulf %185, %186 : vector<32x512xf32>
      %c0_149 = arith.constant 0 : index
      %c0_150 = arith.constant 0 : index
      %188 = vector.load %arg9[%c0_149, %c0_150] : memref<32x512xf32, #tpu.memory_space<vmem>>, vector<32x512xf32>
      tpu.vector_store %arg9[%c0_149, %c0_150], %187 {strides = array<i32>} : memref<32x512xf32, #tpu.memory_space<vmem>>, vector<32x512xf32>,
    } else {
    }
    %c2_138 = arith.constant 2 : index
    %163 = memref.load %arg5[%c2_138] : memref<3xf32, #tpu.memory_space<smem>>
    %c0_139 = arith.constant 0 : index
    %c0_140 = arith.constant 0 : index
    %164 = vector.load %arg9[%c0_139, %c0_140] : memref<32x512xf32, #tpu.memory_space<vmem>>, vector<32x512xf32>
    %165 = vector.broadcast %163 : f32 to vector<32x512xf32>
    %166 = arith.mulf %165, %164 : vector<32x512xf32>
    %c0_141 = arith.constant 0 : index
    %c0_142 = arith.constant 0 : index
    %167 = vector.load %arg10[%c0_141, %c0_142] : memref<32x512xf32, #tpu.memory_space<vmem>>, vector<32x512xf32>
    %168 = arith.addf %167, %166 : vector<32x512xf32>
    %cst = arith.constant 1.000000e+00 : f32
    %169 = arith.subf %cst, %3 : f32
    %170 = vector.broadcast %169 : f32 to vector<32x512xf32>
    %171 = arith.mulf %170, %2 : vector<32x512xf32>
    %172 = vector.broadcast %3 : f32 to vector<32x512xf32>
    %173 = arith.mulf %172, %168 : vector<32x512xf32>
    %174 = arith.addf %171, %173 : vector<32x512xf32>
    %cst_143 = arith.constant 0.000000e+00 : f32
    %cst_144 = arith.constant 2.550000e+02 : f32
    %175 = vector.broadcast %cst_143 : f32 to vector<32x512xf32>
    %176 = arith.maximumf %175, %174 : vector<32x512xf32>
    %177 = vector.broadcast %cst_144 : f32 to vector<32x512xf32>
    %178 = arith.minimumf %177, %176 : vector<32x512xf32>
    %179 = arith.fptosi %178 : vector<32x512xf32> to vector<32x512xi32>
    %180 = arith.trunci %179 : vector<32x512xi32> to vector<32x512xi8>
    %c0_145 = arith.constant 0 : index
    %c0_146 = arith.constant 0 : index
    %181 = vector.load %arg8[%c0_145, %c0_146] : memref<32x512xi8, #tpu.memory_space<vmem>>, vector<32x512xi8>
    tpu.vector_store %arg8[%c0_145, %c0_146], %180 {strides = array<i32>} : memref<32x512xi8, #tpu.memory_space<vmem>>, vector<32x512xi8>,
    return
  }
  func.func @transform_0(%arg0: i32, %arg1: memref<3xi32, #tpu.memory_space<smem>>, %arg2: memref<3x3xi32, #tpu.memory_space<smem>>, %arg3: memref<3x3xf32, #tpu.memory_space<smem>>, %arg4: memref<3x3xf32, #tpu.memory_space<smem>>, %arg5: memref<3xf32, #tpu.memory_space<smem>>, %arg6: memref<1xf32, #tpu.memory_space<smem>>) -> (i32, i32) {
    %c0_i32 = arith.constant 0 : i32
    %c0_i32_0 = arith.constant 0 : i32
    return %arg0, %c0_i32 : i32, i32
  }
  func.func @transform_1(%arg0: i32, %arg1: memref<3xi32, #tpu.memory_space<smem>>, %arg2: memref<3x3xi32, #tpu.memory_space<smem>>, %arg3: memref<3x3xf32, #tpu.memory_space<smem>>, %arg4: memref<3x3xf32, #tpu.memory_space<smem>>, %arg5: memref<3xf32, #tpu.memory_space<smem>>, %arg6: memref<1xf32, #tpu.memory_space<smem>>) -> (i32, i32) {
    %c0_i32 = arith.constant 0 : i32
    %c0_i32_0 = arith.constant 0 : i32
    return %arg0, %c0_i32 : i32, i32
  }
}

</mosaic_0001>

<llo_original>
// kernel: tpu_custom_call.1
$region0: #{tpu_custom_call.1}
  #allocation0 [shape = 'u32[]', space=smem, size = 0x4, offset = 0x4, fixed_abs, tag = 'smem constant byte address 0x4 - core index']
  #allocation1 [shape = 'u32[144,128]{1,0:T(1,128)}', space=vmem, size = 0x12000, scoped, tag = 'internal scratch']
  #allocation2 [shape = 'f32[32,512]{1,0:T(8,128)}', space=vmem, size = 0x10000, scoped, tag = 'scratch operand']
  #allocation3 [shape = 'f32[32,512]{1,0:T(8,128)}', space=vmem, size = 0x10000, scoped, tag = 'scratch operand']
  #allocation4 [shape = 's32[1]{0}', space=sflag, size = 0x4, scoped, tag = 'scoped memory for tpu_custom_call.1']
  #allocation5 [shape = 'u8[512]{0}', space=smem, size = 0x200, scoped, tag = 'prefetched SMEM operand 0']
  #allocation6 [shape = 'u8[2048]{0}', space=smem, size = 0x800, scoped, tag = 'prefetched SMEM operand 1']
  #allocation7 [shape = 'u8[2048]{0}', space=smem, size = 0x800, scoped, tag = 'prefetched SMEM operand 2']
  #allocation8 [shape = 'u8[2048]{0}', space=smem, size = 0x800, scoped, tag = 'prefetched SMEM operand 3']
  #allocation9 [shape = 'u8[512]{0}', space=smem, size = 0x200, scoped, tag = 'prefetched SMEM operand 4']
  #allocation10 [shape = 'f32[1]{0:T(128)S(6)}', space=smem, size = 0x200, scoped, tag = 'prefetched SMEM operand 5']
  %s0 = inlined_call_operand.vmem [shape: s32[3], index: 0, kind: input, shape index: {}]
  %s1 = inlined_call_operand.vmem [shape: s32[3,3], index: 1, kind: input, shape index: {}]
  %s2 = inlined_call_operand.vmem [shape: f32[3,3], index: 2, kind: input, shape index: {}]
  %s3 = inlined_call_operand.vmem [shape: f32[3,3], index: 3, kind: input, shape index: {}]
  %s4 = inlined_call_operand.vmem [shape: f32[3], index: 4, kind: input, shape index: {}]
  %s5 = inlined_call_operand.<no memory space> [shape: f32[1], index: 5, kind: input, shape index: {}]
  %s6 = inlined_call_operand.hbm [shape: u8[32,512], index: 6, kind: input, shape index: {}]
  %s7 = inlined_call_operand.hbm [shape: u8[32,512], index: 7, kind: output, shape index: {}]
  %s8 = sld [smem:[#allocation0]]
  $region126: #{tpu_custom_call.1} parent=0
    _
  %s10 = ssub.s32 1, %s8
  %s11 = scalar_select 0, %s10, %s8
  %s12 = sshll.u32 %s0, 4
  %s13 = int_to_ptr.vmem [resolvable:$true] %s12
  %15 = dma.vmem_to_smem %s13, 16, [#allocation5], [#allocation4]
  %s16 = sshll.u32 %s1, 4
  %s17 = int_to_ptr.vmem [resolvable:$true] %s16
  %19 = dma.vmem_to_smem %s17, 64, [#allocation6], [#allocation4]
  %s20 = sshll.u32 %s2, 4
  %s21 = int_to_ptr.vmem [resolvable:$true] %s20
  %23 = dma.vmem_to_smem %s21, 64, [#allocation7], [#allocation4]
  %s24 = sshll.u32 %s3, 4
  %s25 = int_to_ptr.vmem [resolvable:$true] %s24
  %27 = dma.vmem_to_smem %s25, 64, [#allocation8], [#allocation4]
  %s28 = sshll.u32 %s4, 4
  %s29 = int_to_ptr.vmem [resolvable:$true] %s28
  %31 = dma.vmem_to_smem %s29, 16, [#allocation9], [#allocation4]
  %32 = sst [smem:[#allocation10]] %s5
  %33 = dma.done [#allocation4], 224
  %34 = sfence
  $region1: #{tpu_custom_call.1} parent=0
    #allocation11 [shape = 'u8[16384]{0}', space=vmem, size = 0x4000, scoped, tag = 'input window, operand 6, single buffered']
    #allocation12 [shape = 's32[1]{0}', space=sflag, size = 0x4, scoped, tag = 'scoped memory for tpu_custom_call.1']
    #allocation13 [shape = 's32[1]{0}', space=sflag, size = 0x4, scoped, tag = 'scoped memory for tpu_custom_call.1']
    #allocation14 [shape = 'u8[16384]{0}', space=vmem, size = 0x4000, scoped, tag = 'output window, operand 0, single buffered']
    %35 = vsyncpa [#allocation12], 0
    %36 = vsyncpa [#allocation13], 0
    // Predicated region
    $region2: #{tpu_custom_call.1} parent=1 // pred_check
      _
    $region3: #{tpu_custom_call.1} parent=1 // pred_check_branch
      %38 = sbr.rel (0) target = $region5
    $region4: #{tpu_custom_call.1} parent=1 // pred_region
      %s40 = ssub.s32 512, 512
      %41 = vsyncadd [#allocation12], %s40
      %s43 = sshll.u32 [#allocation11], 4
      %s44 = int_to_ptr.vmem [resolvable:$true] %s43
      %46 = dma.hbm_to_vmem [thread:$0]  %s6, 512, %s44, [#allocation12]
    $region5: #{tpu_custom_call.1} parent=1 // pred_fallthru
      _
    // Predicated region
    $region6: #{tpu_custom_call.1} parent=1 // pred_check
      _
    $region7: #{tpu_custom_call.1} parent=1 // pred_check_branch
      %48 = sbr.rel (0) target = $region9
    $region8: #{tpu_custom_call.1} parent=1 // pred_region
      %49 = dma.done [#allocation12], 512
    $region9: #{tpu_custom_call.1} parent=1 // pred_fallthru
      _
    %v50 = vld [vmem:[#allocation11] sm:$0xff]
    %v51 = vld [vmem:[#allocation11 + $0x8] sm:$0xff]
    %v52 = vld [vmem:[#allocation11 + $0x10] sm:$0xff]
    %v53 = vld [vmem:[#allocation11 + $0x18] sm:$0xff]
    %v54 = vunpack.c.0.s8 %v50
    %v55 = vunpack.c.0.s8 %v51
    %v56 = vunpack.c.0.s8 %v52
    %v57 = vunpack.c.0.s8 %v53
    %v58 = vunpack.c.1.s8 %v50
    %v59 = vunpack.c.1.s8 %v51
    %v60 = vunpack.c.1.s8 %v52
    %v61 = vunpack.c.1.s8 %v53
    %v62 = vunpack.c.2.s8 %v50
    %v63 = vunpack.c.2.s8 %v51
    %v64 = vunpack.c.2.s8 %v52
    %v65 = vunpack.c.2.s8 %v53
    %v66 = vunpack.c.3.s8 %v50
    %v67 = vunpack.c.3.s8 %v51
    %v68 = vunpack.c.3.s8 %v52
    %v69 = vunpack.c.3.s8 %v53
    %v70 = vand.u32 %v54, 255
    %v71 = vand.u32 %v55, 255
    %v72 = vand.u32 %v56, 255
    %v73 = vand.u32 %v57, 255
    %v74 = vand.u32 %v58, 255
    %v75 = vand.u32 %v59, 255
    %v76 = vand.u32 %v60, 255
    %v77 = vand.u32 %v61, 255
    %v78 = vand.u32 %v62, 255
    %v79 = vand.u32 %v63, 255
    %v80 = vand.u32 %v64, 255
    %v81 = vand.u32 %v65, 255
    %v82 = vand.u32 %v66, 255
    %v83 = vand.u32 %v67, 255
    %v84 = vand.u32 %v68, 255
    %v85 = vand.u32 %v69, 255
    %v86 = vcvt.s32.f32 %v70
    %v87 = vcvt.s32.f32 %v71
    %v88 = vcvt.s32.f32 %v72
    %v89 = vcvt.s32.f32 %v73
    %v90 = vcvt.s32.f32 %v74
    %v91 = vcvt.s32.f32 %v75
    %v92 = vcvt.s32.f32 %v76
    %v93 = vcvt.s32.f32 %v77
    %v94 = vcvt.s32.f32 %v78
    %v95 = vcvt.s32.f32 %v79
    %v96 = vcvt.s32.f32 %v80
    %v97 = vcvt.s32.f32 %v81
    %v98 = vcvt.s32.f32 %v82
    %v99 = vcvt.s32.f32 %v83
    %v100 = vcvt.s32.f32 %v84
    %v101 = vcvt.s32.f32 %v85
    %s102 = sld [smem:[#allocation10]]
    %s103 = sld [smem:[#allocation5]]
    %s104 = sld [smem:[#allocation6]]
    %s105 = sld [smem:[#allocation7]]
    %s106 = sld [smem:[#allocation8]]
    %p107 = scmp.eq.s32.totalorder %s104, 0
    // Predicated region
    $region10: #{tpu_custom_call.1} parent=1 // pred_check
      %p108 = pneg %p107
    $region11: #{tpu_custom_call.1} parent=1 // pred_check_branch
      %110 = sbr.rel (%p108) target = $region13
    $region12: #{tpu_custom_call.1} parent=1 // pred_region
      %v111 = vstv %s105
      %v112 = vmul.f32 %v86, %v111
      %v113 = vmul.f32 %v87, %v111
      %v114 = vmul.f32 %v88, %v111
      %v115 = vmul.f32 %v89, %v111
      %v116 = vmul.f32 %v90, %v111
      %v117 = vmul.f32 %v91, %v111
      %v118 = vmul.f32 %v92, %v111
      %v119 = vmul.f32 %v93, %v111
      %v120 = vmul.f32 %v94, %v111
      %v121 = vmul.f32 %v95, %v111
      %v122 = vmul.f32 %v96, %v111
      %v123 = vmul.f32 %v97, %v111
      %v124 = vmul.f32 %v98, %v111
      %v125 = vmul.f32 %v99, %v111
      %v126 = vmul.f32 %v100, %v111
      %v127 = vmul.f32 %v101, %v111
      %v128 = vstv %s106
      %v129 = vadd.f32 %v112, %v128
      %v130 = vadd.f32 %v113, %v128
      %v131 = vadd.f32 %v114, %v128
      %v132 = vadd.f32 %v115, %v128
      %v133 = vadd.f32 %v116, %v128
      %v134 = vadd.f32 %v117, %v128
      %v135 = vadd.f32 %v118, %v128
      %v136 = vadd.f32 %v119, %v128
      %v137 = vadd.f32 %v120, %v128
      %v138 = vadd.f32 %v121, %v128
      %v139 = vadd.f32 %v122, %v128
      %v140 = vadd.f32 %v123, %v128
      %v141 = vadd.f32 %v124, %v128
      %v142 = vadd.f32 %v125, %v128
      %v143 = vadd.f32 %v126, %v128
      %v144 = vadd.f32 %v127, %v128
      %v145 = vmax.f32 %v129, 0.0
      %v146 = vmax.f32 %v130, 0.0
      %v147 = vmax.f32 %v131, 0.0
      %v148 = vmax.f32 %v132, 0.0
      %v149 = vmax.f32 %v133, 0.0
      %v150 = vmax.f32 %v134, 0.0
      %v151 = vmax.f32 %v135, 0.0
      %v152 = vmax.f32 %v136, 0.0
      %v153 = vmax.f32 %v137, 0.0
      %v154 = vmax.f32 %v138, 0.0
      %v155 = vmax.f32 %v139, 0.0
      %v156 = vmax.f32 %v140, 0.0
      %v157 = vmax.f32 %v141, 0.0
      %v158 = vmax.f32 %v142, 0.0
      %v159 = vmax.f32 %v143, 0.0
      %v160 = vmax.f32 %v144, 0.0
      %v161 = vmin.f32 %v145, 255.0
      %v162 = vmin.f32 %v146, 255.0
      %v163 = vmin.f32 %v147, 255.0
      %v164 = vmin.f32 %v148, 255.0
      %v165 = vmin.f32 %v149, 255.0
      %v166 = vmin.f32 %v150, 255.0
      %v167 = vmin.f32 %v151, 255.0
      %v168 = vmin.f32 %v152, 255.0
      %v169 = vmin.f32 %v153, 255.0
      %v170 = vmin.f32 %v154, 255.0
      %v171 = vmin.f32 %v155, 255.0
      %v172 = vmin.f32 %v156, 255.0
      %v173 = vmin.f32 %v157, 255.0
      %v174 = vmin.f32 %v158, 255.0
      %v175 = vmin.f32 %v159, 255.0
      %v176 = vmin.f32 %v160, 255.0
      %177 = vst [vmem:[#allocation2] sm:$0xff] %v161
      %178 = vst [vmem:[#allocation2 + $0x8] sm:$0xff] %v162
      %179 = vst [vmem:[#allocation2 + $0x10] sm:$0xff] %v163
      %180 = vst [vmem:[#allocation2 + $0x18] sm:$0xff] %v164
      %181 = vst [vmem:[#allocation2 + $0x20] sm:$0xff] %v165
      %182 = vst [vmem:[#allocation2 + $0x28] sm:$0xff] %v166
      %183 = vst [vmem:[#allocation2 + $0x30] sm:$0xff] %v167
      %184 = vst [vmem:[#allocation2 + $0x38] sm:$0xff] %v168
      %185 = vst [vmem:[#allocation2 + $0x40] sm:$0xff] %v169
      %186 = vst [vmem:[#allocation2 + $0x48] sm:$0xff] %v170
      %187 = vst [vmem:[#allocation2 + $0x50] sm:$0xff] %v171
      %188 = vst [vmem:[#allocation2 + $0x58] sm:$0xff] %v172
      %189 = vst [vmem:[#allocation2 + $0x60] sm:$0xff] %v173
      %190 = vst [vmem:[#allocation2 + $0x68] sm:$0xff] %v174
      %191 = vst [vmem:[#allocation2 + $0x70] sm:$0xff] %v175
      %192 = vst [vmem:[#allocation2 + $0x78] sm:$0xff] %v176
    $region13: #{tpu_custom_call.1} parent=1 // pred_fallthru
      _
    %p193 = scmp.eq.s32.totalorder %s104, 1
    // Predicated region
    $region14: #{tpu_custom_call.1} parent=1 // pred_check
      %p194 = pneg %p193
    $region15: #{tpu_custom_call.1} parent=1 // pred_check_branch
      %196 = sbr.rel (%p194) target = $region17
    $region16: #{tpu_custom_call.1} parent=1 // pred_region
      %v197 = vstv %s105
      %vm198 = vcmp.lt.f32.partialorder %v86, %v197
      %vm199 = vcmp.lt.f32.partialorder %v87, %v197
      %vm200 = vcmp.lt.f32.partialorder %v88, %v197
      %vm201 = vcmp.lt.f32.partialorder %v89, %v197
      %vm202 = vcmp.lt.f32.partialorder %v90, %v197
      %vm203 = vcmp.lt.f32.partialorder %v91, %v197
      %vm204 = vcmp.lt.f32.partialorder %v92, %v197
      %vm205 = vcmp.lt.f32.partialorder %v93, %v197
      %vm206 = vcmp.lt.f32.partialorder %v94, %v197
      %vm207 = vcmp.lt.f32.partialorder %v95, %v197
      %vm208 = vcmp.lt.f32.partialorder %v96, %v197
      %vm209 = vcmp.lt.f32.partialorder %v97, %v197
      %vm210 = vcmp.lt.f32.partialorder %v98, %v197
      %vm211 = vcmp.lt.f32.partialorder %v99, %v197
      %vm212 = vcmp.lt.f32.partialorder %v100, %v197
      %vm213 = vcmp.lt.f32.partialorder %v101, %v197
      %v214 = vsub.f32 255.0, %v86
      %v215 = vsub.f32 255.0, %v87
      %v216 = vsub.f32 255.0, %v88
      %v217 = vsub.f32 255.0, %v89
      %v218 = vsub.f32 255.0, %v90
      %v219 = vsub.f32 255.0, %v91
      %v220 = vsub.f32 255.0, %v92
      %v221 = vsub.f32 255.0, %v93
      %v222 = vsub.f32 255.0, %v94
      %v223 = vsub.f32 255.0, %v95
      %v224 = vsub.f32 255.0, %v96
      %v225 = vsub.f32 255.0, %v97
      %v226 = vsub.f32 255.0, %v98
      %v227 = vsub.f32 255.0, %v99
      %v228 = vsub.f32 255.0, %v100
      %v229 = vsub.f32 255.0, %v101
      %v230 = vsel %vm198, %v86, %v214
      %v231 = vsel %vm199, %v87, %v215
      %v232 = vsel %vm200, %v88, %v216
      %v233 = vsel %vm201, %v89, %v217
      %v234 = vsel %vm202, %v90, %v218
      %v235 = vsel %vm203, %v91, %v219
      %v236 = vsel %vm204, %v92, %v220
      %v237 = vsel %vm205, %v93, %v221
      %v238 = vsel %vm206, %v94, %v222
      %v239 = vsel %vm207, %v95, %v223
      %v240 = vsel %vm208, %v96, %v224
      %v241 = vsel %vm209, %v97, %v225
      %v242 = vsel %vm210, %v98, %v226
      %v243 = vsel %vm211, %v99, %v227
      %v244 = vsel %vm212, %v100, %v228
      %v245 = vsel %vm213, %v101, %v229
      %246 = vst [vmem:[#allocation2] sm:$0xff] %v230
      %247 = vst [vmem:[#allocation2 + $0x8] sm:$0xff] %v231
      %248 = vst [vmem:[#allocation2 + $0x10] sm:$0xff] %v232
      %249 = vst [vmem:[#allocation2 + $0x18] sm:$0xff] %v233
      %250 = vst [vmem:[#allocation2 + $0x20] sm:$0xff] %v234
      %251 = vst [vmem:[#allocation2 + $0x28] sm:$0xff] %v235
      %252 = vst [vmem:[#allocation2 + $0x30] sm:$0xff] %v236
      %253 = vst [vmem:[#allocation2 + $0x38] sm:$0xff] %v237
      %254 = vst [vmem:[#allocation2 + $0x40] sm:$0xff] %v238
      %255 = vst [vmem:[#allocation2 + $0x48] sm:$0xff] %v239
      %256 = vst [vmem:[#allocation2 + $0x50] sm:$0xff] %v240
      %257 = vst [vmem:[#allocation2 + $0x58] sm:$0xff] %v241
      %258 = vst [vmem:[#allocation2 + $0x60] sm:$0xff] %v242
      %259 = vst [vmem:[#allocation2 + $0x68] sm:$0xff] %v243
      %260 = vst [vmem:[#allocation2 + $0x70] sm:$0xff] %v244
      %261 = vst [vmem:[#allocation2 + $0x78] sm:$0xff] %v245
    $region17: #{tpu_custom_call.1} parent=1 // pred_fallthru
      _
    %p262 = scmp.eq.s32.totalorder %s104, 2
    // Predicated region
    $region18: #{tpu_custom_call.1} parent=1 // pred_check
      %p263 = pneg %p262
    $region19: #{tpu_custom_call.1} parent=1 // pred_check_branch
      %265 = sbr.rel (%p263) target = $region21
    $region20: #{tpu_custom_call.1} parent=1 // pred_region
      %v266 = vstv %s106
      %v267 = vmul.f32 %v86, %v266
      %v268 = vmul.f32 %v87, %v266
      %v269 = vmul.f32 %v88, %v266
      %v270 = vmul.f32 %v89, %v266
      %v271 = vmul.f32 %v90, %v266
      %v272 = vmul.f32 %v91, %v266
      %v273 = vmul.f32 %v92, %v266
      %v274 = vmul.f32 %v93, %v266
      %v275 = vmul.f32 %v94, %v266
      %v276 = vmul.f32 %v95, %v266
      %v277 = vmul.f32 %v96, %v266
      %v278 = vmul.f32 %v97, %v266
      %v279 = vmul.f32 %v98, %v266
      %v280 = vmul.f32 %v99, %v266
      %v281 = vmul.f32 %v100, %v266
      %v282 = vmul.f32 %v101, %v266
      %v283 = vfloor.f32 %v267
      %v284 = vfloor.f32 %v268
      %v285 = vfloor.f32 %v269
      %v286 = vfloor.f32 %v270
      %v287 = vfloor.f32 %v271
      %v288 = vfloor.f32 %v272
      %v289 = vfloor.f32 %v273
      %v290 = vfloor.f32 %v274
      %v291 = vfloor.f32 %v275
      %v292 = vfloor.f32 %v276
      %v293 = vfloor.f32 %v277
      %v294 = vfloor.f32 %v278
      %v295 = vfloor.f32 %v279
      %v296 = vfloor.f32 %v280
      %v297 = vfloor.f32 %v281
      %v298 = vfloor.f32 %v282
      %v299 = vstv %s105
      %v300 = vmul.f32 %v283, %v299
      %v301 = vmul.f32 %v284, %v299
      %v302 = vmul.f32 %v285, %v299
      %v303 = vmul.f32 %v286, %v299
      %v304 = vmul.f32 %v287, %v299
      %v305 = vmul.f32 %v288, %v299
      %v306 = vmul.f32 %v289, %v299
      %v307 = vmul.f32 %v290, %v299
      %v308 = vmul.f32 %v291, %v299
      %v309 = vmul.f32 %v292, %v299
      %v310 = vmul.f32 %v293, %v299
      %v311 = vmul.f32 %v294, %v299
      %v312 = vmul.f32 %v295, %v299
      %v313 = vmul.f32 %v296, %v299
      %v314 = vmul.f32 %v297, %v299
      %v315 = vmul.f32 %v298, %v299
      %316 = vst [vmem:[#allocation2] sm:$0xff] %v300
      %317 = vst [vmem:[#allocation2 + $0x8] sm:$0xff] %v301
      %318 = vst [vmem:[#allocation2 + $0x10] sm:$0xff] %v302
      %319 = vst [vmem:[#allocation2 + $0x18] sm:$0xff] %v303
      %320 = vst [vmem:[#allocation2 + $0x20] sm:$0xff] %v304
      %321 = vst [vmem:[#allocation2 + $0x28] sm:$0xff] %v305
      %322 = vst [vmem:[#allocation2 + $0x30] sm:$0xff] %v306
      %323 = vst [vmem:[#allocation2 + $0x38] sm:$0xff] %v307
      %324 = vst [vmem:[#allocation2 + $0x40] sm:$0xff] %v308
      %325 = vst [vmem:[#allocation2 + $0x48] sm:$0xff] %v309
      %326 = vst [vmem:[#allocation2 + $0x50] sm:$0xff] %v310
      %327 = vst [vmem:[#allocation2 + $0x58] sm:$0xff] %v311
      %328 = vst [vmem:[#allocation2 + $0x60] sm:$0xff] %v312
      %329 = vst [vmem:[#allocation2 + $0x68] sm:$0xff] %v313
      %330 = vst [vmem:[#allocation2 + $0x70] sm:$0xff] %v314
      %331 = vst [vmem:[#allocation2 + $0x78] sm:$0xff] %v315
    $region21: #{tpu_custom_call.1} parent=1 // pred_fallthru
      _
    %s332 = sld [smem:[#allocation6 + $0x1]]
    %s333 = sld [smem:[#allocation7 + $0x1]]
    %s334 = sld [smem:[#allocation8 + $0x1]]
    %p335 = scmp.gt.s32.totalorder %s103, 1
    %p336 = scmp.eq.s32.totalorder %s332, 0
    %p337 = pnand %p335, %p336
    %p338 = pneg %p337
    // Predicated region
    $region22: #{tpu_custom_call.1} parent=1 // pred_check
      _
    $region23: #{tpu_custom_call.1} parent=1 // pred_check_branch
      %340 = sbr.rel (%p337) target = $region25
    $region24: #{tpu_custom_call.1} parent=1 // pred_region
      %v341 = vld [vmem:[#allocation2] sm:$0xff]
      %v342 = vld [vmem:[#allocation2 + $0x8] sm:$0xff]
      %v343 = vld [vmem:[#allocation2 + $0x10] sm:$0xff]
      %v344 = vld [vmem:[#allocation2 + $0x18] sm:$0xff]
      %v345 = vld [vmem:[#allocation2 + $0x20] sm:$0xff]
      %v346 = vld [vmem:[#allocation2 + $0x28] sm:$0xff]
      %v347 = vld [vmem:[#allocation2 + $0x30] sm:$0xff]
      %v348 = vld [vmem:[#allocation2 + $0x38] sm:$0xff]
      %v349 = vld [vmem:[#allocation2 + $0x40] sm:$0xff]
      %v350 = vld [vmem:[#allocation2 + $0x48] sm:$0xff]
      %v351 = vld [vmem:[#allocation2 + $0x50] sm:$0xff]
      %v352 = vld [vmem:[#allocation2 + $0x58] sm:$0xff]
      %v353 = vld [vmem:[#allocation2 + $0x60] sm:$0xff]
      %v354 = vld [vmem:[#allocation2 + $0x68] sm:$0xff]
      %v355 = vld [vmem:[#allocation2 + $0x70] sm:$0xff]
      %v356 = vld [vmem:[#allocation2 + $0x78] sm:$0xff]
      %v357 = vstv %s333
      %v358 = vmul.f32 %v341, %v357
      %v359 = vmul.f32 %v342, %v357
      %v360 = vmul.f32 %v343, %v357
      %v361 = vmul.f32 %v344, %v357
      %v362 = vmul.f32 %v345, %v357
      %v363 = vmul.f32 %v346, %v357
      %v364 = vmul.f32 %v347, %v357
      %v365 = vmul.f32 %v348, %v357
      %v366 = vmul.f32 %v349, %v357
      %v367 = vmul.f32 %v350, %v357
      %v368 = vmul.f32 %v351, %v357
      %v369 = vmul.f32 %v352, %v357
      %v370 = vmul.f32 %v353, %v357
      %v371 = vmul.f32 %v354, %v357
      %v372 = vmul.f32 %v355, %v357
      %v373 = vmul.f32 %v356, %v357
      %v374 = vstv %s334
      %v375 = vadd.f32 %v358, %v374
      %v376 = vadd.f32 %v359, %v374
      %v377 = vadd.f32 %v360, %v374
      %v378 = vadd.f32 %v361, %v374
      %v379 = vadd.f32 %v362, %v374
      %v380 = vadd.f32 %v363, %v374
      %v381 = vadd.f32 %v364, %v374
      %v382 = vadd.f32 %v365, %v374
      %v383 = vadd.f32 %v366, %v374
      %v384 = vadd.f32 %v367, %v374
      %v385 = vadd.f32 %v368, %v374
      %v386 = vadd.f32 %v369, %v374
      %v387 = vadd.f32 %v370, %v374
      %v388 = vadd.f32 %v371, %v374
      %v389 = vadd.f32 %v372, %v374
      %v390 = vadd.f32 %v373, %v374
      %v391 = vmax.f32 %v375, 0.0
      %v392 = vmax.f32 %v376, 0.0
      %v393 = vmax.f32 %v377, 0.0
      %v394 = vmax.f32 %v378, 0.0
      %v395 = vmax.f32 %v379, 0.0
      %v396 = vmax.f32 %v380, 0.0
      %v397 = vmax.f32 %v381, 0.0
      %v398 = vmax.f32 %v382, 0.0
      %v399 = vmax.f32 %v383, 0.0
      %v400 = vmax.f32 %v384, 0.0
      %v401 = vmax.f32 %v385, 0.0
      %v402 = vmax.f32 %v386, 0.0
      %v403 = vmax.f32 %v387, 0.0
      %v404 = vmax.f32 %v388, 0.0
      %v405 = vmax.f32 %v389, 0.0
      %v406 = vmax.f32 %v390, 0.0
      %v407 = vmin.f32 %v391, 255.0
      %v408 = vmin.f32 %v392, 255.0
      %v409 = vmin.f32 %v393, 255.0
      %v410 = vmin.f32 %v394, 255.0
      %v411 = vmin.f32 %v395, 255.0
      %v412 = vmin.f32 %v396, 255.0
      %v413 = vmin.f32 %v397, 255.0
      %v414 = vmin.f32 %v398, 255.0
      %v415 = vmin.f32 %v399, 255.0
      %v416 = vmin.f32 %v400, 255.0
      %v417 = vmin.f32 %v401, 255.0
      %v418 = vmin.f32 %v402, 255.0
      %v419 = vmin.f32 %v403, 255.0
      %v420 = vmin.f32 %v404, 255.0
      %v421 = vmin.f32 %v405, 255.0
      %v422 = vmin.f32 %v406, 255.0
      %423 = vst [vmem:[#allocation2] sm:$0xff] %v407
      %424 = vst [vmem:[#allocation2 + $0x8] sm:$0xff] %v408
      %425 = vst [vmem:[#allocation2 + $0x10] sm:$0xff] %v409
      %426 = vst [vmem:[#allocation2 + $0x18] sm:$0xff] %v410
      %427 = vst [vmem:[#allocation2 + $0x20] sm:$0xff] %v411
      %428 = vst [vmem:[#allocation2 + $0x28] sm:$0xff] %v412
      %429 = vst [vmem:[#allocation2 + $0x30] sm:$0xff] %v413
      %430 = vst [vmem:[#allocation2 + $0x38] sm:$0xff] %v414
      %431 = vst [vmem:[#allocation2 + $0x40] sm:$0xff] %v415
      %432 = vst [vmem:[#allocation2 + $0x48] sm:$0xff] %v416
      %433 = vst [vmem:[#allocation2 + $0x50] sm:$0xff] %v417
      %434 = vst [vmem:[#allocation2 + $0x58] sm:$0xff] %v418
      %435 = vst [vmem:[#allocation2 + $0x60] sm:$0xff] %v419
      %436 = vst [vmem:[#allocation2 + $0x68] sm:$0xff] %v420
      %437 = vst [vmem:[#allocation2 + $0x70] sm:$0xff] %v421
      %438 = vst [vmem:[#allocation2 + $0x78] sm:$0xff] %v422
    $region25: #{tpu_custom_call.1} parent=1 // pred_fallthru
      _
    %p439 = scmp.eq.s32.totalorder %s332, 1
    %p440 = pnand %p335, %p439
    %p441 = pneg %p440
    // Predicated region
    $region26: #{tpu_custom_call.1} parent=1 // pred_check
      _
    $region27: #{tpu_custom_call.1} parent=1 // pred_check_branch
      %443 = sbr.rel (%p440) target = $region29
    $region28: #{tpu_custom_call.1} parent=1 // pred_region
      %v444 = vld [vmem:[#allocation2] sm:$0xff]
      %v445 = vld [vmem:[#allocation2 + $0x8] sm:$0xff]
      %v446 = vld [vmem:[#allocation2 + $0x10] sm:$0xff]
      %v447 = vld [vmem:[#allocation2 + $0x18] sm:$0xff]
      %v448 = vld [vmem:[#allocation2 + $0x20] sm:$0xff]
      %v449 = vld [vmem:[#allocation2 + $0x28] sm:$0xff]
      %v450 = vld [vmem:[#allocation2 + $0x30] sm:$0xff]
      %v451 = vld [vmem:[#allocation2 + $0x38] sm:$0xff]
      %v452 = vld [vmem:[#allocation2 + $0x40] sm:$0xff]
      %v453 = vld [vmem:[#allocation2 + $0x48] sm:$0xff]
      %v454 = vld [vmem:[#allocation2 + $0x50] sm:$0xff]
      %v455 = vld [vmem:[#allocation2 + $0x58] sm:$0xff]
      %v456 = vld [vmem:[#allocation2 + $0x60] sm:$0xff]
      %v457 = vld [vmem:[#allocation2 + $0x68] sm:$0xff]
      %v458 = vld [vmem:[#allocation2 + $0x70] sm:$0xff]
      %v459 = vld [vmem:[#allocation2 + $0x78] sm:$0xff]
      %v460 = vstv %s333
      %vm461 = vcmp.lt.f32.partialorder %v444, %v460
      %vm462 = vcmp.lt.f32.partialorder %v445, %v460
      %vm463 = vcmp.lt.f32.partialorder %v446, %v460
      %vm464 = vcmp.lt.f32.partialorder %v447, %v460
      %vm465 = vcmp.lt.f32.partialorder %v448, %v460
      %vm466 = vcmp.lt.f32.partialorder %v449, %v460
      %vm467 = vcmp.lt.f32.partialorder %v450, %v460
      %vm468 = vcmp.lt.f32.partialorder %v451, %v460
      %vm469 = vcmp.lt.f32.partialorder %v452, %v460
      %vm470 = vcmp.lt.f32.partialorder %v453, %v460
      %vm471 = vcmp.lt.f32.partialorder %v454, %v460
      %vm472 = vcmp.lt.f32.partialorder %v455, %v460
      %vm473 = vcmp.lt.f32.partialorder %v456, %v460
      %vm474 = vcmp.lt.f32.partialorder %v457, %v460
      %vm475 = vcmp.lt.f32.partialorder %v458, %v460
      %vm476 = vcmp.lt.f32.partialorder %v459, %v460
      %v477 = vsub.f32 255.0, %v444
      %v478 = vsub.f32 255.0, %v445
      %v479 = vsub.f32 255.0, %v446
      %v480 = vsub.f32 255.0, %v447
      %v481 = vsub.f32 255.0, %v448
      %v482 = vsub.f32 255.0, %v449
      %v483 = vsub.f32 255.0, %v450
      %v484 = vsub.f32 255.0, %v451
      %v485 = vsub.f32 255.0, %v452
      %v486 = vsub.f32 255.0, %v453
      %v487 = vsub.f32 255.0, %v454
      %v488 = vsub.f32 255.0, %v455
      %v489 = vsub.f32 255.0, %v456
      %v490 = vsub.f32 255.0, %v457
      %v491 = vsub.f32 255.0, %v458
      %v492 = vsub.f32 255.0, %v459
      %v493 = vsel %vm461, %v444, %v477
      %v494 = vsel %vm462, %v445, %v478
      %v495 = vsel %vm463, %v446, %v479
      %v496 = vsel %vm464, %v447, %v480
      %v497 = vsel %vm465, %v448, %v481
      %v498 = vsel %vm466, %v449, %v482
      %v499 = vsel %vm467, %v450, %v483
      %v500 = vsel %vm468, %v451, %v484
      %v501 = vsel %vm469, %v452, %v485
      %v502 = vsel %vm470, %v453, %v486
      %v503 = vsel %vm471, %v454, %v487
      %v504 = vsel %vm472, %v455, %v488
      %v505 = vsel %vm473, %v456, %v489
      %v506 = vsel %vm474, %v457, %v490
      %v507 = vsel %vm475, %v458, %v491
      %v508 = vsel %vm476, %v459, %v492
      %509 = vst [vmem:[#allocation2] sm:$0xff] %v493
      %510 = vst [vmem:[#allocation2 + $0x8] sm:$0xff] %v494
      %511 = vst [vmem:[#allocation2 + $0x10] sm:$0xff] %v495
      %512 = vst [vmem:[#allocation2 + $0x18] sm:$0xff] %v496
      %513 = vst [vmem:[#allocation2 + $0x20] sm:$0xff] %v497
      %514 = vst [vmem:[#allocation2 + $0x28] sm:$0xff] %v498
      %515 = vst [vmem:[#allocation2 + $0x30] sm:$0xff] %v499
      %516 = vst [vmem:[#allocation2 + $0x38] sm:$0xff] %v500
      %517 = vst [vmem:[#allocation2 + $0x40] sm:$0xff] %v501
      %518 = vst [vmem:[#allocation2 + $0x48] sm:$0xff] %v502
      %519 = vst [vmem:[#allocation2 + $0x50] sm:$0xff] %v503
      %520 = vst [vmem:[#allocation2 + $0x58] sm:$0xff] %v504
      %521 = vst [vmem:[#allocation2 + $0x60] sm:$0xff] %v505
      %522 = vst [vmem:[#allocation2 + $0x68] sm:$0xff] %v506
      %523 = vst [vmem:[#allocation2 + $0x70] sm:$0xff] %v507
      %524 = vst [vmem:[#allocation2 + $0x78] sm:$0xff] %v508
    $region29: #{tpu_custom_call.1} parent=1 // pred_fallthru
      _
    %p525 = scmp.eq.s32.totalorder %s332, 2
    %p526 = pnand %p335, %p525
    %p527 = pneg %p526
    // Predicated region
    $region30: #{tpu_custom_call.1} parent=1 // pred_check
      _
    $region31: #{tpu_custom_call.1} parent=1 // pred_check_branch
      %529 = sbr.rel (%p526) target = $region33
    $region32: #{tpu_custom_call.1} parent=1 // pred_region
      %v530 = vld [vmem:[#allocation2] sm:$0xff]
      %v531 = vld [vmem:[#allocation2 + $0x8] sm:$0xff]
      %v532 = vld [vmem:[#allocation2 + $0x10] sm:$0xff]
      %v533 = vld [vmem:[#allocation2 + $0x18] sm:$0xff]
      %v534 = vld [vmem:[#allocation2 + $0x20] sm:$0xff]
      %v535 = vld [vmem:[#allocation2 + $0x28] sm:$0xff]
      %v536 = vld [vmem:[#allocation2 + $0x30] sm:$0xff]
      %v537 = vld [vmem:[#allocation2 + $0x38] sm:$0xff]
      %v538 = vld [vmem:[#allocation2 + $0x40] sm:$0xff]
      %v539 = vld [vmem:[#allocation2 + $0x48] sm:$0xff]
      %v540 = vld [vmem:[#allocation2 + $0x50] sm:$0xff]
      %v541 = vld [vmem:[#allocation2 + $0x58] sm:$0xff]
      %v542 = vld [vmem:[#allocation2 + $0x60] sm:$0xff]
      %v543 = vld [vmem:[#allocation2 + $0x68] sm:$0xff]
      %v544 = vld [vmem:[#allocation2 + $0x70] sm:$0xff]
      %v545 = vld [vmem:[#allocation2 + $0x78] sm:$0xff]
      %v546 = vstv %s334
      %v547 = vmul.f32 %v530, %v546
      %v548 = vmul.f32 %v531, %v546
      %v549 = vmul.f32 %v532, %v546
      %v550 = vmul.f32 %v533, %v546
      %v551 = vmul.f32 %v534, %v546
      %v552 = vmul.f32 %v535, %v546
      %v553 = vmul.f32 %v536, %v546
      %v554 = vmul.f32 %v537, %v546
      %v555 = vmul.f32 %v538, %v546
      %v556 = vmul.f32 %v539, %v546
      %v557 = vmul.f32 %v540, %v546
      %v558 = vmul.f32 %v541, %v546
      %v559 = vmul.f32 %v542, %v546
      %v560 = vmul.f32 %v543, %v546
      %v561 = vmul.f32 %v544, %v546
      %v562 = vmul.f32 %v545, %v546
      %v563 = vfloor.f32 %v547
      %v564 = vfloor.f32 %v548
      %v565 = vfloor.f32 %v549
      %v566 = vfloor.f32 %v550
      %v567 = vfloor.f32 %v551
      %v568 = vfloor.f32 %v552
      %v569 = vfloor.f32 %v553
      %v570 = vfloor.f32 %v554
      %v571 = vfloor.f32 %v555
      %v572 = vfloor.f32 %v556
      %v573 = vfloor.f32 %v557
      %v574 = vfloor.f32 %v558
      %v575 = vfloor.f32 %v559
      %v576 = vfloor.f32 %v560
      %v577 = vfloor.f32 %v561
      %v578 = vfloor.f32 %v562
      %v579 = vstv %s333
      %v580 = vmul.f32 %v563, %v579
      %v581 = vmul.f32 %v564, %v579
      %v582 = vmul.f32 %v565, %v579
      %v583 = vmul.f32 %v566, %v579
      %v584 = vmul.f32 %v567, %v579
      %v585 = vmul.f32 %v568, %v579
      %v586 = vmul.f32 %v569, %v579
      %v587 = vmul.f32 %v570, %v579
      %v588 = vmul.f32 %v571, %v579
      %v589 = vmul.f32 %v572, %v579
      %v590 = vmul.f32 %v573, %v579
      %v591 = vmul.f32 %v574, %v579
      %v592 = vmul.f32 %v575, %v579
      %v593 = vmul.f32 %v576, %v579
      %v594 = vmul.f32 %v577, %v579
      %v595 = vmul.f32 %v578, %v579
      %596 = vst [vmem:[#allocation2] sm:$0xff] %v580
      %597 = vst [vmem:[#allocation2 + $0x8] sm:$0xff] %v581
      %598 = vst [vmem:[#allocation2 + $0x10] sm:$0xff] %v582
      %599 = vst [vmem:[#allocation2 + $0x18] sm:$0xff] %v583
      %600 = vst [vmem:[#allocation2 + $0x20] sm:$0xff] %v584
      %601 = vst [vmem:[#allocation2 + $0x28] sm:$0xff] %v585
      %602 = vst [vmem:[#allocation2 + $0x30] sm:$0xff] %v586
      %603 = vst [vmem:[#allocation2 + $0x38] sm:$0xff] %v587
      %604 = vst [vmem:[#allocation2 + $0x40] sm:$0xff] %v588
      %605 = vst [vmem:[#allocation2 + $0x48] sm:$0xff] %v589
      %606 = vst [vmem:[#allocation2 + $0x50] sm:$0xff] %v590
      %607 = vst [vmem:[#allocation2 + $0x58] sm:$0xff] %v591
      %608 = vst [vmem:[#allocation2 + $0x60] sm:$0xff] %v592
      %609 = vst [vmem:[#allocation2 + $0x68] sm:$0xff] %v593
      %610 = vst [vmem:[#allocation2 + $0x70] sm:$0xff] %v594
      %611 = vst [vmem:[#allocation2 + $0x78] sm:$0xff] %v595
    $region33: #{tpu_custom_call.1} parent=1 // pred_fallthru
      _
    %s612 = sld [smem:[#allocation6 + $0x2]]
    %s613 = sld [smem:[#allocation7 + $0x2]]
    %s614 = sld [smem:[#allocation8 + $0x2]]
    %p615 = scmp.gt.s32.totalorder %s103, 2
    %p616 = scmp.eq.s32.totalorder %s612, 0
    %p617 = pnand %p615, %p616
    %p618 = pneg %p617
    // Predicated region
    $region34: #{tpu_custom_call.1} parent=1 // pred_check
      _
    $region35: #{tpu_custom_call.1} parent=1 // pred_check_branch
      %620 = sbr.rel (%p617) target = $region37
    $region36: #{tpu_custom_call.1} parent=1 // pred_region
      %v621 = vld [vmem:[#allocation2] sm:$0xff]
      %v622 = vld [vmem:[#allocation2 + $0x8] sm:$0xff]
      %v623 = vld [vmem:[#allocation2 + $0x10] sm:$0xff]
      %v624 = vld [vmem:[#allocation2 + $0x18] sm:$0xff]
      %v625 = vld [vmem:[#allocation2 + $0x20] sm:$0xff]
      %v626 = vld [vmem:[#allocation2 + $0x28] sm:$0xff]
      %v627 = vld [vmem:[#allocation2 + $0x30] sm:$0xff]
      %v628 = vld [vmem:[#allocation2 + $0x38] sm:$0xff]
      %v629 = vld [vmem:[#allocation2 + $0x40] sm:$0xff]
      %v630 = vld [vmem:[#allocation2 + $0x48] sm:$0xff]
      %v631 = vld [vmem:[#allocation2 + $0x50] sm:$0xff]
      %v632 = vld [vmem:[#allocation2 + $0x58] sm:$0xff]
      %v633 = vld [vmem:[#allocation2 + $0x60] sm:$0xff]
      %v634 = vld [vmem:[#allocation2 + $0x68] sm:$0xff]
      %v635 = vld [vmem:[#allocation2 + $0x70] sm:$0xff]
      %v636 = vld [vmem:[#allocation2 + $0x78] sm:$0xff]
      %v637 = vstv %s613
      %v638 = vmul.f32 %v621, %v637
      %v639 = vmul.f32 %v622, %v637
      %v640 = vmul.f32 %v623, %v637
      %v641 = vmul.f32 %v624, %v637
      %v642 = vmul.f32 %v625, %v637
      %v643 = vmul.f32 %v626, %v637
      %v644 = vmul.f32 %v627, %v637
      %v645 = vmul.f32 %v628, %v637
      %v646 = vmul.f32 %v629, %v637
      %v647 = vmul.f32 %v630, %v637
      %v648 = vmul.f32 %v631, %v637
      %v649 = vmul.f32 %v632, %v637
      %v650 = vmul.f32 %v633, %v637
      %v651 = vmul.f32 %v634, %v637
      %v652 = vmul.f32 %v635, %v637
      %v653 = vmul.f32 %v636, %v637
      %v654 = vstv %s614
      %v655 = vadd.f32 %v638, %v654
      %v656 = vadd.f32 %v639, %v654
      %v657 = vadd.f32 %v640, %v654
      %v658 = vadd.f32 %v641, %v654
      %v659 = vadd.f32 %v642, %v654
      %v660 = vadd.f32 %v643, %v654
      %v661 = vadd.f32 %v644, %v654
      %v662 = vadd.f32 %v645, %v654
      %v663 = vadd.f32 %v646, %v654
      %v664 = vadd.f32 %v647, %v654
      %v665 = vadd.f32 %v648, %v654
      %v666 = vadd.f32 %v649, %v654
      %v667 = vadd.f32 %v650, %v654
      %v668 = vadd.f32 %v651, %v654
      %v669 = vadd.f32 %v652, %v654
      %v670 = vadd.f32 %v653, %v654
      %v671 = vmax.f32 %v655, 0.0
      %v672 = vmax.f32 %v656, 0.0
      %v673 = vmax.f32 %v657, 0.0
      %v674 = vmax.f32 %v658, 0.0
      %v675 = vmax.f32 %v659, 0.0
      %v676 = vmax.f32 %v660, 0.0
      %v677 = vmax.f32 %v661, 0.0
      %v678 = vmax.f32 %v662, 0.0
      %v679 = vmax.f32 %v663, 0.0
      %v680 = vmax.f32 %v664, 0.0
      %v681 = vmax.f32 %v665, 0.0
      %v682 = vmax.f32 %v666, 0.0
      %v683 = vmax.f32 %v667, 0.0
      %v684 = vmax.f32 %v668, 0.0
      %v685 = vmax.f32 %v669, 0.0
      %v686 = vmax.f32 %v670, 0.0
      %v687 = vmin.f32 %v671, 255.0
      %v688 = vmin.f32 %v672, 255.0
      %v689 = vmin.f32 %v673, 255.0
      %v690 = vmin.f32 %v674, 255.0
      %v691 = vmin.f32 %v675, 255.0
      %v692 = vmin.f32 %v676, 255.0
      %v693 = vmin.f32 %v677, 255.0
      %v694 = vmin.f32 %v678, 255.0
      %v695 = vmin.f32 %v679, 255.0
      %v696 = vmin.f32 %v680, 255.0
      %v697 = vmin.f32 %v681, 255.0
      %v698 = vmin.f32 %v682, 255.0
      %v699 = vmin.f32 %v683, 255.0
      %v700 = vmin.f32 %v684, 255.0
      %v701 = vmin.f32 %v685, 255.0
      %v702 = vmin.f32 %v686, 255.0
      %703 = vst [vmem:[#allocation2] sm:$0xff] %v687
      %704 = vst [vmem:[#allocation2 + $0x8] sm:$0xff] %v688
      %705 = vst [vmem:[#allocation2 + $0x10] sm:$0xff] %v689
      %706 = vst [vmem:[#allocation2 + $0x18] sm:$0xff] %v690
      %707 = vst [vmem:[#allocation2 + $0x20] sm:$0xff] %v691
      %708 = vst [vmem:[#allocation2 + $0x28] sm:$0xff] %v692
      %709 = vst [vmem:[#allocation2 + $0x30] sm:$0xff] %v693
      %710 = vst [vmem:[#allocation2 + $0x38] sm:$0xff] %v694
      %711 = vst [vmem:[#allocation2 + $0x40] sm:$0xff] %v695
      %712 = vst [vmem:[#allocation2 + $0x48] sm:$0xff] %v696
      %713 = vst [vmem:[#allocation2 + $0x50] sm:$0xff] %v697
      %714 = vst [vmem:[#allocation2 + $0x58] sm:$0xff] %v698
      %715 = vst [vmem:[#allocation2 + $0x60] sm:$0xff] %v699
      %716 = vst [vmem:[#allocation2 + $0x68] sm:$0xff] %v700
      %717 = vst [vmem:[#allocation2 + $0x70] sm:$0xff] %v701
      %718 = vst [vmem:[#allocation2 + $0x78] sm:$0xff] %v702
    $region37: #{tpu_custom_call.1} parent=1 // pred_fallthru
      _
    %p719 = scmp.eq.s32.totalorder %s612, 1
    %p720 = pnand %p615, %p719
    %p721 = pneg %p720
    // Predicated region
    $region38: #{tpu_custom_call.1} parent=1 // pred_check
      _
    $region39: #{tpu_custom_call.1} parent=1 // pred_check_branch
      %723 = sbr.rel (%p720) target = $region41
    $region40: #{tpu_custom_call.1} parent=1 // pred_region
      %v724 = vld [vmem:[#allocation2] sm:$0xff]
      %v725 = vld [vmem:[#allocation2 + $0x8] sm:$0xff]
      %v726 = vld [vmem:[#allocation2 + $0x10] sm:$0xff]
      %v727 = vld [vmem:[#allocation2 + $0x18] sm:$0xff]
      %v728 = vld [vmem:[#allocation2 + $0x20] sm:$0xff]
      %v729 = vld [vmem:[#allocation2 + $0x28] sm:$0xff]
      %v730 = vld [vmem:[#allocation2 + $0x30] sm:$0xff]
      %v731 = vld [vmem:[#allocation2 + $0x38] sm:$0xff]
      %v732 = vld [vmem:[#allocation2 + $0x40] sm:$0xff]
      %v733 = vld [vmem:[#allocation2 + $0x48] sm:$0xff]
      %v734 = vld [vmem:[#allocation2 + $0x50] sm:$0xff]
      %v735 = vld [vmem:[#allocation2 + $0x58] sm:$0xff]
      %v736 = vld [vmem:[#allocation2 + $0x60] sm:$0xff]
      %v737 = vld [vmem:[#allocation2 + $0x68] sm:$0xff]
      %v738 = vld [vmem:[#allocation2 + $0x70] sm:$0xff]
      %v739 = vld [vmem:[#allocation2 + $0x78] sm:$0xff]
      %v740 = vstv %s613
      %vm741 = vcmp.lt.f32.partialorder %v724, %v740
      %vm742 = vcmp.lt.f32.partialorder %v725, %v740
      %vm743 = vcmp.lt.f32.partialorder %v726, %v740
      %vm744 = vcmp.lt.f32.partialorder %v727, %v740
      %vm745 = vcmp.lt.f32.partialorder %v728, %v740
      %vm746 = vcmp.lt.f32.partialorder %v729, %v740
      %vm747 = vcmp.lt.f32.partialorder %v730, %v740
      %vm748 = vcmp.lt.f32.partialorder %v731, %v740
      %vm749 = vcmp.lt.f32.partialorder %v732, %v740
      %vm750 = vcmp.lt.f32.partialorder %v733, %v740
      %vm751 = vcmp.lt.f32.partialorder %v734, %v740
      %vm752 = vcmp.lt.f32.partialorder %v735, %v740
      %vm753 = vcmp.lt.f32.partialorder %v736, %v740
      %vm754 = vcmp.lt.f32.partialorder %v737, %v740
      %vm755 = vcmp.lt.f32.partialorder %v738, %v740
      %vm756 = vcmp.lt.f32.partialorder %v739, %v740
      %v757 = vsub.f32 255.0, %v724
      %v758 = vsub.f32 255.0, %v725
      %v759 = vsub.f32 255.0, %v726
      %v760 = vsub.f32 255.0, %v727
      %v761 = vsub.f32 255.0, %v728
      %v762 = vsub.f32 255.0, %v729
      %v763 = vsub.f32 255.0, %v730
      %v764 = vsub.f32 255.0, %v731
      %v765 = vsub.f32 255.0, %v732
      %v766 = vsub.f32 255.0, %v733
      %v767 = vsub.f32 255.0, %v734
      %v768 = vsub.f32 255.0, %v735
      %v769 = vsub.f32 255.0, %v736
      %v770 = vsub.f32 255.0, %v737
      %v771 = vsub.f32 255.0, %v738
      %v772 = vsub.f32 255.0, %v739
      %v773 = vsel %vm741, %v724, %v757
      %v774 = vsel %vm742, %v725, %v758
      %v775 = vsel %vm743, %v726, %v759
      %v776 = vsel %vm744, %v727, %v760
      %v777 = vsel %vm745, %v728, %v761
      %v778 = vsel %vm746, %v729, %v762
      %v779 = vsel %vm747, %v730, %v763
      %v780 = vsel %vm748, %v731, %v764
      %v781 = vsel %vm749, %v732, %v765
      %v782 = vsel %vm750, %v733, %v766
      %v783 = vsel %vm751, %v734, %v767
      %v784 = vsel %vm752, %v735, %v768
      %v785 = vsel %vm753, %v736, %v769
      %v786 = vsel %vm754, %v737, %v770
      %v787 = vsel %vm755, %v738, %v771
      %v788 = vsel %vm756, %v739, %v772
      %789 = vst [vmem:[#allocation2] sm:$0xff] %v773
      %790 = vst [vmem:[#allocation2 + $0x8] sm:$0xff] %v774
      %791 = vst [vmem:[#allocation2 + $0x10] sm:$0xff] %v775
      %792 = vst [vmem:[#allocation2 + $0x18] sm:$0xff] %v776
      %793 = vst [vmem:[#allocation2 + $0x20] sm:$0xff] %v777
      %794 = vst [vmem:[#allocation2 + $0x28] sm:$0xff] %v778
      %795 = vst [vmem:[#allocation2 + $0x30] sm:$0xff] %v779
      %796 = vst [vmem:[#allocation2 + $0x38] sm:$0xff] %v780
      %797 = vst [vmem:[#allocation2 + $0x40] sm:$0xff] %v781
      %798 = vst [vmem:[#allocation2 + $0x48] sm:$0xff] %v782
      %799 = vst [vmem:[#allocation2 + $0x50] sm:$0xff] %v783
      %800 = vst [vmem:[#allocation2 + $0x58] sm:$0xff] %v784
      %801 = vst [vmem:[#allocation2 + $0x60] sm:$0xff] %v785
      %802 = vst [vmem:[#allocation2 + $0x68] sm:$0xff] %v786
      %803 = vst [vmem:[#allocation2 + $0x70] sm:$0xff] %v787
      %804 = vst [vmem:[#allocation2 + $0x78] sm:$0xff] %v788
    $region41: #{tpu_custom_call.1} parent=1 // pred_fallthru
      _
    %p805 = scmp.eq.s32.totalorder %s612, 2
    %p806 = pnand %p615, %p805
    %p807 = pneg %p806
    // Predicated region
    $region42: #{tpu_custom_call.1} parent=1 // pred_check
      _
    $region43: #{tpu_custom_call.1} parent=1 // pred_check_branch
      %809 = sbr.rel (%p806) target = $region45
    $region44: #{tpu_custom_call.1} parent=1 // pred_region
      %v810 = vld [vmem:[#allocation2] sm:$0xff]
      %v811 = vld [vmem:[#allocation2 + $0x8] sm:$0xff]
      %v812 = vld [vmem:[#allocation2 + $0x10] sm:$0xff]
      %v813 = vld [vmem:[#allocation2 + $0x18] sm:$0xff]
      %v814 = vld [vmem:[#allocation2 + $0x20] sm:$0xff]
      %v815 = vld [vmem:[#allocation2 + $0x28] sm:$0xff]
      %v816 = vld [vmem:[#allocation2 + $0x30] sm:$0xff]
      %v817 = vld [vmem:[#allocation2 + $0x38] sm:$0xff]
      %v818 = vld [vmem:[#allocation2 + $0x40] sm:$0xff]
      %v819 = vld [vmem:[#allocation2 + $0x48] sm:$0xff]
      %v820 = vld [vmem:[#allocation2 + $0x50] sm:$0xff]
      %v821 = vld [vmem:[#allocation2 + $0x58] sm:$0xff]
      %v822 = vld [vmem:[#allocation2 + $0x60] sm:$0xff]
      %v823 = vld [vmem:[#allocation2 + $0x68] sm:$0xff]
      %v824 = vld [vmem:[#allocation2 + $0x70] sm:$0xff]
      %v825 = vld [vmem:[#allocation2 + $0x78] sm:$0xff]
      %v826 = vstv %s614
      %v827 = vmul.f32 %v810, %v826
      %v828 = vmul.f32 %v811, %v826
      %v829 = vmul.f32 %v812, %v826
      %v830 = vmul.f32 %v813, %v826
      %v831 = vmul.f32 %v814, %v826
      %v832 = vmul.f32 %v815, %v826
      %v833 = vmul.f32 %v816, %v826
      %v834 = vmul.f32 %v817, %v826
      %v835 = vmul.f32 %v818, %v826
      %v836 = vmul.f32 %v819, %v826
      %v837 = vmul.f32 %v820, %v826
      %v838 = vmul.f32 %v821, %v826
      %v839 = vmul.f32 %v822, %v826
      %v840 = vmul.f32 %v823, %v826
      %v841 = vmul.f32 %v824, %v826
      %v842 = vmul.f32 %v825, %v826
      %v843 = vfloor.f32 %v827
      %v844 = vfloor.f32 %v828
      %v845 = vfloor.f32 %v829
      %v846 = vfloor.f32 %v830
      %v847 = vfloor.f32 %v831
      %v848 = vfloor.f32 %v832
      %v849 = vfloor.f32 %v833
      %v850 = vfloor.f32 %v834
      %v851 = vfloor.f32 %v835
      %v852 = vfloor.f32 %v836
      %v853 = vfloor.f32 %v837
      %v854 = vfloor.f32 %v838
      %v855 = vfloor.f32 %v839
      %v856 = vfloor.f32 %v840
      %v857 = vfloor.f32 %v841
      %v858 = vfloor.f32 %v842
      %v859 = vstv %s613
      %v860 = vmul.f32 %v843, %v859
      %v861 = vmul.f32 %v844, %v859
      %v862 = vmul.f32 %v845, %v859
      %v863 = vmul.f32 %v846, %v859
      %v864 = vmul.f32 %v847, %v859
      %v865 = vmul.f32 %v848, %v859
      %v866 = vmul.f32 %v849, %v859
      %v867 = vmul.f32 %v850, %v859
      %v868 = vmul.f32 %v851, %v859
      %v869 = vmul.f32 %v852, %v859
      %v870 = vmul.f32 %v853, %v859
      %v871 = vmul.f32 %v854, %v859
      %v872 = vmul.f32 %v855, %v859
      %v873 = vmul.f32 %v856, %v859
      %v874 = vmul.f32 %v857, %v859
      %v875 = vmul.f32 %v858, %v859
      %876 = vst [vmem:[#allocation2] sm:$0xff] %v860
      %877 = vst [vmem:[#allocation2 + $0x8] sm:$0xff] %v861
      %878 = vst [vmem:[#allocation2 + $0x10] sm:$0xff] %v862
      %879 = vst [vmem:[#allocation2 + $0x18] sm:$0xff] %v863
      %880 = vst [vmem:[#allocation2 + $0x20] sm:$0xff] %v864
      %881 = vst [vmem:[#allocation2 + $0x28] sm:$0xff] %v865
      %882 = vst [vmem:[#allocation2 + $0x30] sm:$0xff] %v866
      %883 = vst [vmem:[#allocation2 + $0x38] sm:$0xff] %v867
      %884 = vst [vmem:[#allocation2 + $0x40] sm:$0xff] %v868
      %885 = vst [vmem:[#allocation2 + $0x48] sm:$0xff] %v869
      %886 = vst [vmem:[#allocation2 + $0x50] sm:$0xff] %v870
      %887 = vst [vmem:[#allocation2 + $0x58] sm:$0xff] %v871
      %888 = vst [vmem:[#allocation2 + $0x60] sm:$0xff] %v872
      %889 = vst [vmem:[#allocation2 + $0x68] sm:$0xff] %v873
      %890 = vst [vmem:[#allocation2 + $0x70] sm:$0xff] %v874
      %891 = vst [vmem:[#allocation2 + $0x78] sm:$0xff] %v875
    $region45: #{tpu_custom_call.1} parent=1 // pred_fallthru
      _
    %s892 = sld [smem:[#allocation9]]
    %v893 = vld [vmem:[#allocation2] sm:$0xff]
    %v894 = vld [vmem:[#allocation2 + $0x8] sm:$0xff]
    %v895 = vld [vmem:[#allocation2 + $0x10] sm:$0xff]
    %v896 = vld [vmem:[#allocation2 + $0x18] sm:$0xff]
    %v897 = vld [vmem:[#allocation2 + $0x20] sm:$0xff]
    %v898 = vld [vmem:[#allocation2 + $0x28] sm:$0xff]
    %v899 = vld [vmem:[#allocation2 + $0x30] sm:$0xff]
    %v900 = vld [vmem:[#allocation2 + $0x38] sm:$0xff]
    %v901 = vld [vmem:[#allocation2 + $0x40] sm:$0xff]
    %v902 = vld [vmem:[#allocation2 + $0x48] sm:$0xff]
    %v903 = vld [vmem:[#allocation2 + $0x50] sm:$0xff]
    %v904 = vld [vmem:[#allocation2 + $0x58] sm:$0xff]
    %v905 = vld [vmem:[#allocation2 + $0x60] sm:$0xff]
    %v906 = vld [vmem:[#allocation2 + $0x68] sm:$0xff]
    %v907 = vld [vmem:[#allocation2 + $0x70] sm:$0xff]
    %v908 = vld [vmem:[#allocation2 + $0x78] sm:$0xff]
    %v909 = vstv %s892
    %v910 = vmul.f32 %v909, %v893
    %v911 = vmul.f32 %v909, %v894
    %v912 = vmul.f32 %v909, %v895
    %v913 = vmul.f32 %v909, %v896
    %v914 = vmul.f32 %v909, %v897
    %v915 = vmul.f32 %v909, %v898
    %v916 = vmul.f32 %v909, %v899
    %v917 = vmul.f32 %v909, %v900
    %v918 = vmul.f32 %v909, %v901
    %v919 = vmul.f32 %v909, %v902
    %v920 = vmul.f32 %v909, %v903
    %v921 = vmul.f32 %v909, %v904
    %v922 = vmul.f32 %v909, %v905
    %v923 = vmul.f32 %v909, %v906
    %v924 = vmul.f32 %v909, %v907
    %v925 = vmul.f32 %v909, %v908
    %926 = vst [vmem:[#allocation3] sm:$0xff] %v910
    %927 = vst [vmem:[#allocation3 + $0x8] sm:$0xff] %v911
    %928 = vst [vmem:[#allocation3 + $0x10] sm:$0xff] %v912
    %929 = vst [vmem:[#allocation3 + $0x18] sm:$0xff] %v913
    %930 = vst [vmem:[#allocation3 + $0x20] sm:$0xff] %v914
    %931 = vst [vmem:[#allocation3 + $0x28] sm:$0xff] %v915
    %932 = vst [vmem:[#allocation3 + $0x30] sm:$0xff] %v916
    %933 = vst [vmem:[#allocation3 + $0x38] sm:$0xff] %v917
    %934 = vst [vmem:[#allocation3 + $0x40] sm:$0xff] %v918
    %935 = vst [vmem:[#allocation3 + $0x48] sm:$0xff] %v919
    %936 = vst [vmem:[#allocation3 + $0x50] sm:$0xff] %v920
    %937 = vst [vmem:[#allocation3 + $0x58] sm:$0xff] %v921
    %938 = vst [vmem:[#allocation3 + $0x60] sm:$0xff] %v922
    %939 = vst [vmem:[#allocation3 + $0x68] sm:$0xff] %v923
    %940 = vst [vmem:[#allocation3 + $0x70] sm:$0xff] %v924
    %941 = vst [vmem:[#allocation3 + $0x78] sm:$0xff] %v925
    %s942 = sld [smem:[#allocation5 + $0x1]]
    %s943 = sld [smem:[#allocation6 + $0x80]]
    %s944 = sld [smem:[#allocation7 + $0x80]]
    %s945 = sld [smem:[#allocation8 + $0x80]]
    %p946 = scmp.eq.s32.totalorder %s943, 0
    // Predicated region
    $region46: #{tpu_custom_call.1} parent=1 // pred_check
      %p947 = pneg %p946
    $region47: #{tpu_custom_call.1} parent=1 // pred_check_branch
      %949 = sbr.rel (%p947) target = $region49
    $region48: #{tpu_custom_call.1} parent=1 // pred_region
      %v950 = vstv %s944
      %v951 = vmul.f32 %v86, %v950
      %v952 = vmul.f32 %v87, %v950
      %v953 = vmul.f32 %v88, %v950
      %v954 = vmul.f32 %v89, %v950
      %v955 = vmul.f32 %v90, %v950
      %v956 = vmul.f32 %v91, %v950
      %v957 = vmul.f32 %v92, %v950
      %v958 = vmul.f32 %v93, %v950
      %v959 = vmul.f32 %v94, %v950
      %v960 = vmul.f32 %v95, %v950
      %v961 = vmul.f32 %v96, %v950
      %v962 = vmul.f32 %v97, %v950
      %v963 = vmul.f32 %v98, %v950
      %v964 = vmul.f32 %v99, %v950
      %v965 = vmul.f32 %v100, %v950
      %v966 = vmul.f32 %v101, %v950
      %v967 = vstv %s945
      %v968 = vadd.f32 %v951, %v967
      %v969 = vadd.f32 %v952, %v967
      %v970 = vadd.f32 %v953, %v967
      %v971 = vadd.f32 %v954, %v967
      %v972 = vadd.f32 %v955, %v967
      %v973 = vadd.f32 %v956, %v967
      %v974 = vadd.f32 %v957, %v967
      %v975 = vadd.f32 %v958, %v967
      %v976 = vadd.f32 %v959, %v967
      %v977 = vadd.f32 %v960, %v967
      %v978 = vadd.f32 %v961, %v967
      %v979 = vadd.f32 %v962, %v967
      %v980 = vadd.f32 %v963, %v967
      %v981 = vadd.f32 %v964, %v967
      %v982 = vadd.f32 %v965, %v967
      %v983 = vadd.f32 %v966, %v967
      %v984 = vmax.f32 %v968, 0.0
      %v985 = vmax.f32 %v969, 0.0
      %v986 = vmax.f32 %v970, 0.0
      %v987 = vmax.f32 %v971, 0.0
      %v988 = vmax.f32 %v972, 0.0
      %v989 = vmax.f32 %v973, 0.0
      %v990 = vmax.f32 %v974, 0.0
      %v991 = vmax.f32 %v975, 0.0
      %v992 = vmax.f32 %v976, 0.0
      %v993 = vmax.f32 %v977, 0.0
      %v994 = vmax.f32 %v978, 0.0
      %v995 = vmax.f32 %v979, 0.0
      %v996 = vmax.f32 %v980, 0.0
      %v997 = vmax.f32 %v981, 0.0
      %v998 = vmax.f32 %v982, 0.0
      %v999 = vmax.f32 %v983, 0.0
      %v1000 = vmin.f32 %v984, 255.0
      %v1001 = vmin.f32 %v985, 255.0
      %v1002 = vmin.f32 %v986, 255.0
      %v1003 = vmin.f32 %v987, 255.0
      %v1004 = vmin.f32 %v988, 255.0
      %v1005 = vmin.f32 %v989, 255.0
      %v1006 = vmin.f32 %v990, 255.0
      %v1007 = vmin.f32 %v991, 255.0
      %v1008 = vmin.f32 %v992, 255.0
      %v1009 = vmin.f32 %v993, 255.0
      %v1010 = vmin.f32 %v994, 255.0
      %v1011 = vmin.f32 %v995, 255.0
      %v1012 = vmin.f32 %v996, 255.0
      %v1013 = vmin.f32 %v997, 255.0
      %v1014 = vmin.f32 %v998, 255.0
      %v1015 = vmin.f32 %v999, 255.0
      %1016 = vst [vmem:[#allocation2] sm:$0xff] %v1000
      %1017 = vst [vmem:[#allocation2 + $0x8] sm:$0xff] %v1001
      %1018 = vst [vmem:[#allocation2 + $0x10] sm:$0xff] %v1002
      %1019 = vst [vmem:[#allocation2 + $0x18] sm:$0xff] %v1003
      %1020 = vst [vmem:[#allocation2 + $0x20] sm:$0xff] %v1004
      %1021 = vst [vmem:[#allocation2 + $0x28] sm:$0xff] %v1005
      %1022 = vst [vmem:[#allocation2 + $0x30] sm:$0xff] %v1006
      %1023 = vst [vmem:[#allocation2 + $0x38] sm:$0xff] %v1007
      %1024 = vst [vmem:[#allocation2 + $0x40] sm:$0xff] %v1008
      %1025 = vst [vmem:[#allocation2 + $0x48] sm:$0xff] %v1009
      %1026 = vst [vmem:[#allocation2 + $0x50] sm:$0xff] %v1010
      %1027 = vst [vmem:[#allocation2 + $0x58] sm:$0xff] %v1011
      %1028 = vst [vmem:[#allocation2 + $0x60] sm:$0xff] %v1012
      %1029 = vst [vmem:[#allocation2 + $0x68] sm:$0xff] %v1013
      %1030 = vst [vmem:[#allocation2 + $0x70] sm:$0xff] %v1014
      %1031 = vst [vmem:[#allocation2 + $0x78] sm:$0xff] %v1015
    $region49: #{tpu_custom_call.1} parent=1 // pred_fallthru
      _
    %p1032 = scmp.eq.s32.totalorder %s943, 1
    // Predicated region
    $region50: #{tpu_custom_call.1} parent=1 // pred_check
      %p1033 = pneg %p1032
    $region51: #{tpu_custom_call.1} parent=1 // pred_check_branch
      %1035 = sbr.rel (%p1033) target = $region53
    $region52: #{tpu_custom_call.1} parent=1 // pred_region
      %v1036 = vstv %s944
      %vm1037 = vcmp.lt.f32.partialorder %v86, %v1036
      %vm1038 = vcmp.lt.f32.partialorder %v87, %v1036
      %vm1039 = vcmp.lt.f32.partialorder %v88, %v1036
      %vm1040 = vcmp.lt.f32.partialorder %v89, %v1036
      %vm1041 = vcmp.lt.f32.partialorder %v90, %v1036
      %vm1042 = vcmp.lt.f32.partialorder %v91, %v1036
      %vm1043 = vcmp.lt.f32.partialorder %v92, %v1036
      %vm1044 = vcmp.lt.f32.partialorder %v93, %v1036
      %vm1045 = vcmp.lt.f32.partialorder %v94, %v1036
      %vm1046 = vcmp.lt.f32.partialorder %v95, %v1036
      %vm1047 = vcmp.lt.f32.partialorder %v96, %v1036
      %vm1048 = vcmp.lt.f32.partialorder %v97, %v1036
      %vm1049 = vcmp.lt.f32.partialorder %v98, %v1036
      %vm1050 = vcmp.lt.f32.partialorder %v99, %v1036
      %vm1051 = vcmp.lt.f32.partialorder %v100, %v1036
      %vm1052 = vcmp.lt.f32.partialorder %v101, %v1036
      %v1053 = vsub.f32 255.0, %v86
      %v1054 = vsub.f32 255.0, %v87
      %v1055 = vsub.f32 255.0, %v88
      %v1056 = vsub.f32 255.0, %v89
      %v1057 = vsub.f32 255.0, %v90
      %v1058 = vsub.f32 255.0, %v91
      %v1059 = vsub.f32 255.0, %v92
      %v1060 = vsub.f32 255.0, %v93
      %v1061 = vsub.f32 255.0, %v94
      %v1062 = vsub.f32 255.0, %v95
      %v1063 = vsub.f32 255.0, %v96
      %v1064 = vsub.f32 255.0, %v97
      %v1065 = vsub.f32 255.0, %v98
      %v1066 = vsub.f32 255.0, %v99
      %v1067 = vsub.f32 255.0, %v100
      %v1068 = vsub.f32 255.0, %v101
      %v1069 = vsel %vm1037, %v86, %v1053
      %v1070 = vsel %vm1038, %v87, %v1054
      %v1071 = vsel %vm1039, %v88, %v1055
      %v1072 = vsel %vm1040, %v89, %v1056
      %v1073 = vsel %vm1041, %v90, %v1057
      %v1074 = vsel %vm1042, %v91, %v1058
      %v1075 = vsel %vm1043, %v92, %v1059
      %v1076 = vsel %vm1044, %v93, %v1060
      %v1077 = vsel %vm1045, %v94, %v1061
      %v1078 = vsel %vm1046, %v95, %v1062
      %v1079 = vsel %vm1047, %v96, %v1063
      %v1080 = vsel %vm1048, %v97, %v1064
      %v1081 = vsel %vm1049, %v98, %v1065
      %v1082 = vsel %vm1050, %v99, %v1066
      %v1083 = vsel %vm1051, %v100, %v1067
      %v1084 = vsel %vm1052, %v101, %v1068
      %1085 = vst [vmem:[#allocation2] sm:$0xff] %v1069
      %1086 = vst [vmem:[#allocation2 + $0x8] sm:$0xff] %v1070
      %1087 = vst [vmem:[#allocation2 + $0x10] sm:$0xff] %v1071
      %1088 = vst [vmem:[#allocation2 + $0x18] sm:$0xff] %v1072
      %1089 = vst [vmem:[#allocation2 + $0x20] sm:$0xff] %v1073
      %1090 = vst [vmem:[#allocation2 + $0x28] sm:$0xff] %v1074
      %1091 = vst [vmem:[#allocation2 + $0x30] sm:$0xff] %v1075
      %1092 = vst [vmem:[#allocation2 + $0x38] sm:$0xff] %v1076
      %1093 = vst [vmem:[#allocation2 + $0x40] sm:$0xff] %v1077
      %1094 = vst [vmem:[#allocation2 + $0x48] sm:$0xff] %v1078
      %1095 = vst [vmem:[#allocation2 + $0x50] sm:$0xff] %v1079
      %1096 = vst [vmem:[#allocation2 + $0x58] sm:$0xff] %v1080
      %1097 = vst [vmem:[#allocation2 + $0x60] sm:$0xff] %v1081
      %1098 = vst [vmem:[#allocation2 + $0x68] sm:$0xff] %v1082
      %1099 = vst [vmem:[#allocation2 + $0x70] sm:$0xff] %v1083
      %1100 = vst [vmem:[#allocation2 + $0x78] sm:$0xff] %v1084
    $region53: #{tpu_custom_call.1} parent=1 // pred_fallthru
      _
    %p1101 = scmp.eq.s32.totalorder %s943, 2
    // Predicated region
    $region54: #{tpu_custom_call.1} parent=1 // pred_check
      %p1102 = pneg %p1101
    $region55: #{tpu_custom_call.1} parent=1 // pred_check_branch
      %1104 = sbr.rel (%p1102) target = $region57
    $region56: #{tpu_custom_call.1} parent=1 // pred_region
      %v1105 = vstv %s945
      %v1106 = vmul.f32 %v86, %v1105
      %v1107 = vmul.f32 %v87, %v1105
      %v1108 = vmul.f32 %v88, %v1105
      %v1109 = vmul.f32 %v89, %v1105
      %v1110 = vmul.f32 %v90, %v1105
      %v1111 = vmul.f32 %v91, %v1105
      %v1112 = vmul.f32 %v92, %v1105
      %v1113 = vmul.f32 %v93, %v1105
      %v1114 = vmul.f32 %v94, %v1105
      %v1115 = vmul.f32 %v95, %v1105
      %v1116 = vmul.f32 %v96, %v1105
      %v1117 = vmul.f32 %v97, %v1105
      %v1118 = vmul.f32 %v98, %v1105
      %v1119 = vmul.f32 %v99, %v1105
      %v1120 = vmul.f32 %v100, %v1105
      %v1121 = vmul.f32 %v101, %v1105
      %v1122 = vfloor.f32 %v1106
      %v1123 = vfloor.f32 %v1107
      %v1124 = vfloor.f32 %v1108
      %v1125 = vfloor.f32 %v1109
      %v1126 = vfloor.f32 %v1110
      %v1127 = vfloor.f32 %v1111
      %v1128 = vfloor.f32 %v1112
      %v1129 = vfloor.f32 %v1113
      %v1130 = vfloor.f32 %v1114
      %v1131 = vfloor.f32 %v1115
      %v1132 = vfloor.f32 %v1116
      %v1133 = vfloor.f32 %v1117
      %v1134 = vfloor.f32 %v1118
      %v1135 = vfloor.f32 %v1119
      %v1136 = vfloor.f32 %v1120
      %v1137 = vfloor.f32 %v1121
      %v1138 = vstv %s944
      %v1139 = vmul.f32 %v1122, %v1138
      %v1140 = vmul.f32 %v1123, %v1138
      %v1141 = vmul.f32 %v1124, %v1138
      %v1142 = vmul.f32 %v1125, %v1138
      %v1143 = vmul.f32 %v1126, %v1138
      %v1144 = vmul.f32 %v1127, %v1138
      %v1145 = vmul.f32 %v1128, %v1138
      %v1146 = vmul.f32 %v1129, %v1138
      %v1147 = vmul.f32 %v1130, %v1138
      %v1148 = vmul.f32 %v1131, %v1138
      %v1149 = vmul.f32 %v1132, %v1138
      %v1150 = vmul.f32 %v1133, %v1138
      %v1151 = vmul.f32 %v1134, %v1138
      %v1152 = vmul.f32 %v1135, %v1138
      %v1153 = vmul.f32 %v1136, %v1138
      %v1154 = vmul.f32 %v1137, %v1138
      %1155 = vst [vmem:[#allocation2] sm:$0xff] %v1139
      %1156 = vst [vmem:[#allocation2 + $0x8] sm:$0xff] %v1140
      %1157 = vst [vmem:[#allocation2 + $0x10] sm:$0xff] %v1141
      %1158 = vst [vmem:[#allocation2 + $0x18] sm:$0xff] %v1142
      %1159 = vst [vmem:[#allocation2 + $0x20] sm:$0xff] %v1143
      %1160 = vst [vmem:[#allocation2 + $0x28] sm:$0xff] %v1144
      %1161 = vst [vmem:[#allocation2 + $0x30] sm:$0xff] %v1145
      %1162 = vst [vmem:[#allocation2 + $0x38] sm:$0xff] %v1146
      %1163 = vst [vmem:[#allocation2 + $0x40] sm:$0xff] %v1147
      %1164 = vst [vmem:[#allocation2 + $0x48] sm:$0xff] %v1148
      %1165 = vst [vmem:[#allocation2 + $0x50] sm:$0xff] %v1149
      %1166 = vst [vmem:[#allocation2 + $0x58] sm:$0xff] %v1150
      %1167 = vst [vmem:[#allocation2 + $0x60] sm:$0xff] %v1151
      %1168 = vst [vmem:[#allocation2 + $0x68] sm:$0xff] %v1152
      %1169 = vst [vmem:[#allocation2 + $0x70] sm:$0xff] %v1153
      %1170 = vst [vmem:[#allocation2 + $0x78] sm:$0xff] %v1154
    $region57: #{tpu_custom_call.1} parent=1 // pred_fallthru
      _
    %s1171 = sld [smem:[#allocation6 + $0x81]]
    %s1172 = sld [smem:[#allocation7 + $0x81]]
    %s1173 = sld [smem:[#allocation8 + $0x81]]
    %p1174 = scmp.gt.s32.totalorder %s942, 1
    %p1175 = scmp.eq.s32.totalorder %s1171, 0
    %p1176 = pnand %p1174, %p1175
    %p1177 = pneg %p1176
    // Predicated region
    $region58: #{tpu_custom_call.1} parent=1 // pred_check
      _
    $region59: #{tpu_custom_call.1} parent=1 // pred_check_branch
      %1179 = sbr.rel (%p1176) target = $region61
    $region60: #{tpu_custom_call.1} parent=1 // pred_region
      %v1180 = vld [vmem:[#allocation2] sm:$0xff]
      %v1181 = vld [vmem:[#allocation2 + $0x8] sm:$0xff]
      %v1182 = vld [vmem:[#allocation2 + $0x10] sm:$0xff]
      %v1183 = vld [vmem:[#allocation2 + $0x18] sm:$0xff]
      %v1184 = vld [vmem:[#allocation2 + $0x20] sm:$0xff]
      %v1185 = vld [vmem:[#allocation2 + $0x28] sm:$0xff]
      %v1186 = vld [vmem:[#allocation2 + $0x30] sm:$0xff]
      %v1187 = vld [vmem:[#allocation2 + $0x38] sm:$0xff]
      %v1188 = vld [vmem:[#allocation2 + $0x40] sm:$0xff]
      %v1189 = vld [vmem:[#allocation2 + $0x48] sm:$0xff]
      %v1190 = vld [vmem:[#allocation2 + $0x50] sm:$0xff]
      %v1191 = vld [vmem:[#allocation2 + $0x58] sm:$0xff]
      %v1192 = vld [vmem:[#allocation2 + $0x60] sm:$0xff]
      %v1193 = vld [vmem:[#allocation2 + $0x68] sm:$0xff]
      %v1194 = vld [vmem:[#allocation2 + $0x70] sm:$0xff]
      %v1195 = vld [vmem:[#allocation2 + $0x78] sm:$0xff]
      %v1196 = vstv %s1172
      %v1197 = vmul.f32 %v1180, %v1196
      %v1198 = vmul.f32 %v1181, %v1196
      %v1199 = vmul.f32 %v1182, %v1196
      %v1200 = vmul.f32 %v1183, %v1196
      %v1201 = vmul.f32 %v1184, %v1196
      %v1202 = vmul.f32 %v1185, %v1196
      %v1203 = vmul.f32 %v1186, %v1196
      %v1204 = vmul.f32 %v1187, %v1196
      %v1205 = vmul.f32 %v1188, %v1196
      %v1206 = vmul.f32 %v1189, %v1196
      %v1207 = vmul.f32 %v1190, %v1196
      %v1208 = vmul.f32 %v1191, %v1196
      %v1209 = vmul.f32 %v1192, %v1196
      %v1210 = vmul.f32 %v1193, %v1196
      %v1211 = vmul.f32 %v1194, %v1196
      %v1212 = vmul.f32 %v1195, %v1196
      %v1213 = vstv %s1173
      %v1214 = vadd.f32 %v1197, %v1213
      %v1215 = vadd.f32 %v1198, %v1213
      %v1216 = vadd.f32 %v1199, %v1213
      %v1217 = vadd.f32 %v1200, %v1213
      %v1218 = vadd.f32 %v1201, %v1213
      %v1219 = vadd.f32 %v1202, %v1213
      %v1220 = vadd.f32 %v1203, %v1213
      %v1221 = vadd.f32 %v1204, %v1213
      %v1222 = vadd.f32 %v1205, %v1213
      %v1223 = vadd.f32 %v1206, %v1213
      %v1224 = vadd.f32 %v1207, %v1213
      %v1225 = vadd.f32 %v1208, %v1213
      %v1226 = vadd.f32 %v1209, %v1213
      %v1227 = vadd.f32 %v1210, %v1213
      %v1228 = vadd.f32 %v1211, %v1213
      %v1229 = vadd.f32 %v1212, %v1213
      %v1230 = vmax.f32 %v1214, 0.0
      %v1231 = vmax.f32 %v1215, 0.0
      %v1232 = vmax.f32 %v1216, 0.0
      %v1233 = vmax.f32 %v1217, 0.0
      %v1234 = vmax.f32 %v1218, 0.0
      %v1235 = vmax.f32 %v1219, 0.0
      %v1236 = vmax.f32 %v1220, 0.0
      %v1237 = vmax.f32 %v1221, 0.0
      %v1238 = vmax.f32 %v1222, 0.0
      %v1239 = vmax.f32 %v1223, 0.0
      %v1240 = vmax.f32 %v1224, 0.0
      %v1241 = vmax.f32 %v1225, 0.0
      %v1242 = vmax.f32 %v1226, 0.0
      %v1243 = vmax.f32 %v1227, 0.0
      %v1244 = vmax.f32 %v1228, 0.0
      %v1245 = vmax.f32 %v1229, 0.0
      %v1246 = vmin.f32 %v1230, 255.0
      %v1247 = vmin.f32 %v1231, 255.0
      %v1248 = vmin.f32 %v1232, 255.0
      %v1249 = vmin.f32 %v1233, 255.0
      %v1250 = vmin.f32 %v1234, 255.0
      %v1251 = vmin.f32 %v1235, 255.0
      %v1252 = vmin.f32 %v1236, 255.0
      %v1253 = vmin.f32 %v1237, 255.0
      %v1254 = vmin.f32 %v1238, 255.0
      %v1255 = vmin.f32 %v1239, 255.0
      %v1256 = vmin.f32 %v1240, 255.0
      %v1257 = vmin.f32 %v1241, 255.0
      %v1258 = vmin.f32 %v1242, 255.0
      %v1259 = vmin.f32 %v1243, 255.0
      %v1260 = vmin.f32 %v1244, 255.0
      %v1261 = vmin.f32 %v1245, 255.0
      %1262 = vst [vmem:[#allocation2] sm:$0xff] %v1246
      %1263 = vst [vmem:[#allocation2 + $0x8] sm:$0xff] %v1247
      %1264 = vst [vmem:[#allocation2 + $0x10] sm:$0xff] %v1248
      %1265 = vst [vmem:[#allocation2 + $0x18] sm:$0xff] %v1249
      %1266 = vst [vmem:[#allocation2 + $0x20] sm:$0xff] %v1250
      %1267 = vst [vmem:[#allocation2 + $0x28] sm:$0xff] %v1251
      %1268 = vst [vmem:[#allocation2 + $0x30] sm:$0xff] %v1252
      %1269 = vst [vmem:[#allocation2 + $0x38] sm:$0xff] %v1253
      %1270 = vst [vmem:[#allocation2 + $0x40] sm:$0xff] %v1254
      %1271 = vst [vmem:[#allocation2 + $0x48] sm:$0xff] %v1255
      %1272 = vst [vmem:[#allocation2 + $0x50] sm:$0xff] %v1256
      %1273 = vst [vmem:[#allocation2 + $0x58] sm:$0xff] %v1257
      %1274 = vst [vmem:[#allocation2 + $0x60] sm:$0xff] %v1258
      %1275 = vst [vmem:[#allocation2 + $0x68] sm:$0xff] %v1259
      %1276 = vst [vmem:[#allocation2 + $0x70] sm:$0xff] %v1260
      %1277 = vst [vmem:[#allocation2 + $0x78] sm:$0xff] %v1261
    $region61: #{tpu_custom_call.1} parent=1 // pred_fallthru
      _
    %p1278 = scmp.eq.s32.totalorder %s1171, 1
    %p1279 = pnand %p1174, %p1278
    %p1280 = pneg %p1279
    // Predicated region
    $region62: #{tpu_custom_call.1} parent=1 // pred_check
      _
    $region63: #{tpu_custom_call.1} parent=1 // pred_check_branch
      %1282 = sbr.rel (%p1279) target = $region65
    $region64: #{tpu_custom_call.1} parent=1 // pred_region
      %v1283 = vld [vmem:[#allocation2] sm:$0xff]
      %v1284 = vld [vmem:[#allocation2 + $0x8] sm:$0xff]
      %v1285 = vld [vmem:[#allocation2 + $0x10] sm:$0xff]
      %v1286 = vld [vmem:[#allocation2 + $0x18] sm:$0xff]
      %v1287 = vld [vmem:[#allocation2 + $0x20] sm:$0xff]
      %v1288 = vld [vmem:[#allocation2 + $0x28] sm:$0xff]
      %v1289 = vld [vmem:[#allocation2 + $0x30] sm:$0xff]
      %v1290 = vld [vmem:[#allocation2 + $0x38] sm:$0xff]
      %v1291 = vld [vmem:[#allocation2 + $0x40] sm:$0xff]
      %v1292 = vld [vmem:[#allocation2 + $0x48] sm:$0xff]
      %v1293 = vld [vmem:[#allocation2 + $0x50] sm:$0xff]
      %v1294 = vld [vmem:[#allocation2 + $0x58] sm:$0xff]
      %v1295 = vld [vmem:[#allocation2 + $0x60] sm:$0xff]
      %v1296 = vld [vmem:[#allocation2 + $0x68] sm:$0xff]
      %v1297 = vld [vmem:[#allocation2 + $0x70] sm:$0xff]
      %v1298 = vld [vmem:[#allocation2 + $0x78] sm:$0xff]
      %v1299 = vstv %s1172
      %vm1300 = vcmp.lt.f32.partialorder %v1283, %v1299
      %vm1301 = vcmp.lt.f32.partialorder %v1284, %v1299
      %vm1302 = vcmp.lt.f32.partialorder %v1285, %v1299
      %vm1303 = vcmp.lt.f32.partialorder %v1286, %v1299
      %vm1304 = vcmp.lt.f32.partialorder %v1287, %v1299
      %vm1305 = vcmp.lt.f32.partialorder %v1288, %v1299
      %vm1306 = vcmp.lt.f32.partialorder %v1289, %v1299
      %vm1307 = vcmp.lt.f32.partialorder %v1290, %v1299
      %vm1308 = vcmp.lt.f32.partialorder %v1291, %v1299
      %vm1309 = vcmp.lt.f32.partialorder %v1292, %v1299
      %vm1310 = vcmp.lt.f32.partialorder %v1293, %v1299
      %vm1311 = vcmp.lt.f32.partialorder %v1294, %v1299
      %vm1312 = vcmp.lt.f32.partialorder %v1295, %v1299
      %vm1313 = vcmp.lt.f32.partialorder %v1296, %v1299
      %vm1314 = vcmp.lt.f32.partialorder %v1297, %v1299
      %vm1315 = vcmp.lt.f32.partialorder %v1298, %v1299
      %v1316 = vsub.f32 255.0, %v1283
      %v1317 = vsub.f32 255.0, %v1284
      %v1318 = vsub.f32 255.0, %v1285
      %v1319 = vsub.f32 255.0, %v1286
      %v1320 = vsub.f32 255.0, %v1287
      %v1321 = vsub.f32 255.0, %v1288
      %v1322 = vsub.f32 255.0, %v1289
      %v1323 = vsub.f32 255.0, %v1290
      %v1324 = vsub.f32 255.0, %v1291
      %v1325 = vsub.f32 255.0, %v1292
      %v1326 = vsub.f32 255.0, %v1293
      %v1327 = vsub.f32 255.0, %v1294
      %v1328 = vsub.f32 255.0, %v1295
      %v1329 = vsub.f32 255.0, %v1296
      %v1330 = vsub.f32 255.0, %v1297
      %v1331 = vsub.f32 255.0, %v1298
      %v1332 = vsel %vm1300, %v1283, %v1316
      %v1333 = vsel %vm1301, %v1284, %v1317
      %v1334 = vsel %vm1302, %v1285, %v1318
      %v1335 = vsel %vm1303, %v1286, %v1319
      %v1336 = vsel %vm1304, %v1287, %v1320
      %v1337 = vsel %vm1305, %v1288, %v1321
      %v1338 = vsel %vm1306, %v1289, %v1322
      %v1339 = vsel %vm1307, %v1290, %v1323
      %v1340 = vsel %vm1308, %v1291, %v1324
      %v1341 = vsel %vm1309, %v1292, %v1325
      %v1342 = vsel %vm1310, %v1293, %v1326
      %v1343 = vsel %vm1311, %v1294, %v1327
      %v1344 = vsel %vm1312, %v1295, %v1328
      %v1345 = vsel %vm1313, %v1296, %v1329
      %v1346 = vsel %vm1314, %v1297, %v1330
      %v1347 = vsel %vm1315, %v1298, %v1331
      %1348 = vst [vmem:[#allocation2] sm:$0xff] %v1332
      %1349 = vst [vmem:[#allocation2 + $0x8] sm:$0xff] %v1333
      %1350 = vst [vmem:[#allocation2 + $0x10] sm:$0xff] %v1334
      %1351 = vst [vmem:[#allocation2 + $0x18] sm:$0xff] %v1335
      %1352 = vst [vmem:[#allocation2 + $0x20] sm:$0xff] %v1336
      %1353 = vst [vmem:[#allocation2 + $0x28] sm:$0xff] %v1337
      %1354 = vst [vmem:[#allocation2 + $0x30] sm:$0xff] %v1338
      %1355 = vst [vmem:[#allocation2 + $0x38] sm:$0xff] %v1339
      %1356 = vst [vmem:[#allocation2 + $0x40] sm:$0xff] %v1340
      %1357 = vst [vmem:[#allocation2 + $0x48] sm:$0xff] %v1341
      %1358 = vst [vmem:[#allocation2 + $0x50] sm:$0xff] %v1342
      %1359 = vst [vmem:[#allocation2 + $0x58] sm:$0xff] %v1343
      %1360 = vst [vmem:[#allocation2 + $0x60] sm:$0xff] %v1344
      %1361 = vst [vmem:[#allocation2 + $0x68] sm:$0xff] %v1345
      %1362 = vst [vmem:[#allocation2 + $0x70] sm:$0xff] %v1346
      %1363 = vst [vmem:[#allocation2 + $0x78] sm:$0xff] %v1347
    $region65: #{tpu_custom_call.1} parent=1 // pred_fallthru
      _
    %p1364 = scmp.eq.s32.totalorder %s1171, 2
    %p1365 = pnand %p1174, %p1364
    %p1366 = pneg %p1365
    // Predicated region
    $region66: #{tpu_custom_call.1} parent=1 // pred_check
      _
    $region67: #{tpu_custom_call.1} parent=1 // pred_check_branch
      %1368 = sbr.rel (%p1365) target = $region69
    $region68: #{tpu_custom_call.1} parent=1 // pred_region
      %v1369 = vld [vmem:[#allocation2] sm:$0xff]
      %v1370 = vld [vmem:[#allocation2 + $0x8] sm:$0xff]
      %v1371 = vld [vmem:[#allocation2 + $0x10] sm:$0xff]
      %v1372 = vld [vmem:[#allocation2 + $0x18] sm:$0xff]
      %v1373 = vld [vmem:[#allocation2 + $0x20] sm:$0xff]
      %v1374 = vld [vmem:[#allocation2 + $0x28] sm:$0xff]
      %v1375 = vld [vmem:[#allocation2 + $0x30] sm:$0xff]
      %v1376 = vld [vmem:[#allocation2 + $0x38] sm:$0xff]
      %v1377 = vld [vmem:[#allocation2 + $0x40] sm:$0xff]
      %v1378 = vld [vmem:[#allocation2 + $0x48] sm:$0xff]
      %v1379 = vld [vmem:[#allocation2 + $0x50] sm:$0xff]
      %v1380 = vld [vmem:[#allocation2 + $0x58] sm:$0xff]
      %v1381 = vld [vmem:[#allocation2 + $0x60] sm:$0xff]
      %v1382 = vld [vmem:[#allocation2 + $0x68] sm:$0xff]
      %v1383 = vld [vmem:[#allocation2 + $0x70] sm:$0xff]
      %v1384 = vld [vmem:[#allocation2 + $0x78] sm:$0xff]
      %v1385 = vstv %s1173
      %v1386 = vmul.f32 %v1369, %v1385
      %v1387 = vmul.f32 %v1370, %v1385
      %v1388 = vmul.f32 %v1371, %v1385
      %v1389 = vmul.f32 %v1372, %v1385
      %v1390 = vmul.f32 %v1373, %v1385
      %v1391 = vmul.f32 %v1374, %v1385
      %v1392 = vmul.f32 %v1375, %v1385
      %v1393 = vmul.f32 %v1376, %v1385
      %v1394 = vmul.f32 %v1377, %v1385
      %v1395 = vmul.f32 %v1378, %v1385
      %v1396 = vmul.f32 %v1379, %v1385
      %v1397 = vmul.f32 %v1380, %v1385
      %v1398 = vmul.f32 %v1381, %v1385
      %v1399 = vmul.f32 %v1382, %v1385
      %v1400 = vmul.f32 %v1383, %v1385
      %v1401 = vmul.f32 %v1384, %v1385
      %v1402 = vfloor.f32 %v1386
      %v1403 = vfloor.f32 %v1387
      %v1404 = vfloor.f32 %v1388
      %v1405 = vfloor.f32 %v1389
      %v1406 = vfloor.f32 %v1390
      %v1407 = vfloor.f32 %v1391
      %v1408 = vfloor.f32 %v1392
      %v1409 = vfloor.f32 %v1393
      %v1410 = vfloor.f32 %v1394
      %v1411 = vfloor.f32 %v1395
      %v1412 = vfloor.f32 %v1396
      %v1413 = vfloor.f32 %v1397
      %v1414 = vfloor.f32 %v1398
      %v1415 = vfloor.f32 %v1399
      %v1416 = vfloor.f32 %v1400
      %v1417 = vfloor.f32 %v1401
      %v1418 = vstv %s1172
      %v1419 = vmul.f32 %v1402, %v1418
      %v1420 = vmul.f32 %v1403, %v1418
      %v1421 = vmul.f32 %v1404, %v1418
      %v1422 = vmul.f32 %v1405, %v1418
      %v1423 = vmul.f32 %v1406, %v1418
      %v1424 = vmul.f32 %v1407, %v1418
      %v1425 = vmul.f32 %v1408, %v1418
      %v1426 = vmul.f32 %v1409, %v1418
      %v1427 = vmul.f32 %v1410, %v1418
      %v1428 = vmul.f32 %v1411, %v1418
      %v1429 = vmul.f32 %v1412, %v1418
      %v1430 = vmul.f32 %v1413, %v1418
      %v1431 = vmul.f32 %v1414, %v1418
      %v1432 = vmul.f32 %v1415, %v1418
      %v1433 = vmul.f32 %v1416, %v1418
      %v1434 = vmul.f32 %v1417, %v1418
      %1435 = vst [vmem:[#allocation2] sm:$0xff] %v1419
      %1436 = vst [vmem:[#allocation2 + $0x8] sm:$0xff] %v1420
      %1437 = vst [vmem:[#allocation2 + $0x10] sm:$0xff] %v1421
      %1438 = vst [vmem:[#allocation2 + $0x18] sm:$0xff] %v1422
      %1439 = vst [vmem:[#allocation2 + $0x20] sm:$0xff] %v1423
      %1440 = vst [vmem:[#allocation2 + $0x28] sm:$0xff] %v1424
      %1441 = vst [vmem:[#allocation2 + $0x30] sm:$0xff] %v1425
      %1442 = vst [vmem:[#allocation2 + $0x38] sm:$0xff] %v1426
      %1443 = vst [vmem:[#allocation2 + $0x40] sm:$0xff] %v1427
      %1444 = vst [vmem:[#allocation2 + $0x48] sm:$0xff] %v1428
      %1445 = vst [vmem:[#allocation2 + $0x50] sm:$0xff] %v1429
      %1446 = vst [vmem:[#allocation2 + $0x58] sm:$0xff] %v1430
      %1447 = vst [vmem:[#allocation2 + $0x60] sm:$0xff] %v1431
      %1448 = vst [vmem:[#allocation2 + $0x68] sm:$0xff] %v1432
      %1449 = vst [vmem:[#allocation2 + $0x70] sm:$0xff] %v1433
      %1450 = vst [vmem:[#allocation2 + $0x78] sm:$0xff] %v1434
    $region69: #{tpu_custom_call.1} parent=1 // pred_fallthru
      _
    %s1451 = sld [smem:[#allocation6 + $0x82]]
    %s1452 = sld [smem:[#allocation7 + $0x82]]
    %s1453 = sld [smem:[#allocation8 + $0x82]]
    %p1454 = scmp.gt.s32.totalorder %s942, 2
    %p1455 = scmp.eq.s32.totalorder %s1451, 0
    %p1456 = pnand %p1454, %p1455
    %p1457 = pneg %p1456
    // Predicated region
    $region70: #{tpu_custom_call.1} parent=1 // pred_check
      _
    $region71: #{tpu_custom_call.1} parent=1 // pred_check_branch
      %1459 = sbr.rel (%p1456) target = $region73
    $region72: #{tpu_custom_call.1} parent=1 // pred_region
      %v1460 = vld [vmem:[#allocation2] sm:$0xff]
      %v1461 = vld [vmem:[#allocation2 + $0x8] sm:$0xff]
      %v1462 = vld [vmem:[#allocation2 + $0x10] sm:$0xff]
      %v1463 = vld [vmem:[#allocation2 + $0x18] sm:$0xff]
      %v1464 = vld [vmem:[#allocation2 + $0x20] sm:$0xff]
      %v1465 = vld [vmem:[#allocation2 + $0x28] sm:$0xff]
      %v1466 = vld [vmem:[#allocation2 + $0x30] sm:$0xff]
      %v1467 = vld [vmem:[#allocation2 + $0x38] sm:$0xff]
      %v1468 = vld [vmem:[#allocation2 + $0x40] sm:$0xff]
      %v1469 = vld [vmem:[#allocation2 + $0x48] sm:$0xff]
      %v1470 = vld [vmem:[#allocation2 + $0x50] sm:$0xff]
      %v1471 = vld [vmem:[#allocation2 + $0x58] sm:$0xff]
      %v1472 = vld [vmem:[#allocation2 + $0x60] sm:$0xff]
      %v1473 = vld [vmem:[#allocation2 + $0x68] sm:$0xff]
      %v1474 = vld [vmem:[#allocation2 + $0x70] sm:$0xff]
      %v1475 = vld [vmem:[#allocation2 + $0x78] sm:$0xff]
      %v1476 = vstv %s1452
      %v1477 = vmul.f32 %v1460, %v1476
      %v1478 = vmul.f32 %v1461, %v1476
      %v1479 = vmul.f32 %v1462, %v1476
      %v1480 = vmul.f32 %v1463, %v1476
      %v1481 = vmul.f32 %v1464, %v1476
      %v1482 = vmul.f32 %v1465, %v1476
      %v1483 = vmul.f32 %v1466, %v1476
      %v1484 = vmul.f32 %v1467, %v1476
      %v1485 = vmul.f32 %v1468, %v1476
      %v1486 = vmul.f32 %v1469, %v1476
      %v1487 = vmul.f32 %v1470, %v1476
      %v1488 = vmul.f32 %v1471, %v1476
      %v1489 = vmul.f32 %v1472, %v1476
      %v1490 = vmul.f32 %v1473, %v1476
      %v1491 = vmul.f32 %v1474, %v1476
      %v1492 = vmul.f32 %v1475, %v1476
      %v1493 = vstv %s1453
      %v1494 = vadd.f32 %v1477, %v1493
      %v1495 = vadd.f32 %v1478, %v1493
      %v1496 = vadd.f32 %v1479, %v1493
      %v1497 = vadd.f32 %v1480, %v1493
      %v1498 = vadd.f32 %v1481, %v1493
      %v1499 = vadd.f32 %v1482, %v1493
      %v1500 = vadd.f32 %v1483, %v1493
      %v1501 = vadd.f32 %v1484, %v1493
      %v1502 = vadd.f32 %v1485, %v1493
      %v1503 = vadd.f32 %v1486, %v1493
      %v1504 = vadd.f32 %v1487, %v1493
      %v1505 = vadd.f32 %v1488, %v1493
      %v1506 = vadd.f32 %v1489, %v1493
      %v1507 = vadd.f32 %v1490, %v1493
      %v1508 = vadd.f32 %v1491, %v1493
      %v1509 = vadd.f32 %v1492, %v1493
      %v1510 = vmax.f32 %v1494, 0.0
      %v1511 = vmax.f32 %v1495, 0.0
      %v1512 = vmax.f32 %v1496, 0.0
      %v1513 = vmax.f32 %v1497, 0.0
      %v1514 = vmax.f32 %v1498, 0.0
      %v1515 = vmax.f32 %v1499, 0.0
      %v1516 = vmax.f32 %v1500, 0.0
      %v1517 = vmax.f32 %v1501, 0.0
      %v1518 = vmax.f32 %v1502, 0.0
      %v1519 = vmax.f32 %v1503, 0.0
      %v1520 = vmax.f32 %v1504, 0.0
      %v1521 = vmax.f32 %v1505, 0.0
      %v1522 = vmax.f32 %v1506, 0.0
      %v1523 = vmax.f32 %v1507, 0.0
      %v1524 = vmax.f32 %v1508, 0.0
      %v1525 = vmax.f32 %v1509, 0.0
      %v1526 = vmin.f32 %v1510, 255.0
      %v1527 = vmin.f32 %v1511, 255.0
      %v1528 = vmin.f32 %v1512, 255.0
      %v1529 = vmin.f32 %v1513, 255.0
      %v1530 = vmin.f32 %v1514, 255.0
      %v1531 = vmin.f32 %v1515, 255.0
      %v1532 = vmin.f32 %v1516, 255.0
      %v1533 = vmin.f32 %v1517, 255.0
      %v1534 = vmin.f32 %v1518, 255.0
      %v1535 = vmin.f32 %v1519, 255.0
      %v1536 = vmin.f32 %v1520, 255.0
      %v1537 = vmin.f32 %v1521, 255.0
      %v1538 = vmin.f32 %v1522, 255.0
      %v1539 = vmin.f32 %v1523, 255.0
      %v1540 = vmin.f32 %v1524, 255.0
      %v1541 = vmin.f32 %v1525, 255.0
      %1542 = vst [vmem:[#allocation2] sm:$0xff] %v1526
      %1543 = vst [vmem:[#allocation2 + $0x8] sm:$0xff] %v1527
      %1544 = vst [vmem:[#allocation2 + $0x10] sm:$0xff] %v1528
      %1545 = vst [vmem:[#allocation2 + $0x18] sm:$0xff] %v1529
      %1546 = vst [vmem:[#allocation2 + $0x20] sm:$0xff] %v1530
      %1547 = vst [vmem:[#allocation2 + $0x28] sm:$0xff] %v1531
      %1548 = vst [vmem:[#allocation2 + $0x30] sm:$0xff] %v1532
      %1549 = vst [vmem:[#allocation2 + $0x38] sm:$0xff] %v1533
      %1550 = vst [vmem:[#allocation2 + $0x40] sm:$0xff] %v1534
      %1551 = vst [vmem:[#allocation2 + $0x48] sm:$0xff] %v1535
      %1552 = vst [vmem:[#allocation2 + $0x50] sm:$0xff] %v1536
      %1553 = vst [vmem:[#allocation2 + $0x58] sm:$0xff] %v1537
      %1554 = vst [vmem:[#allocation2 + $0x60] sm:$0xff] %v1538
      %1555 = vst [vmem:[#allocation2 + $0x68] sm:$0xff] %v1539
      %1556 = vst [vmem:[#allocation2 + $0x70] sm:$0xff] %v1540
      %1557 = vst [vmem:[#allocation2 + $0x78] sm:$0xff] %v1541
    $region73: #{tpu_custom_call.1} parent=1 // pred_fallthru
      _
    %p1558 = scmp.eq.s32.totalorder %s1451, 1
    %p1559 = pnand %p1454, %p1558
    %p1560 = pneg %p1559
    // Predicated region
    $region74: #{tpu_custom_call.1} parent=1 // pred_check
      _
    $region75: #{tpu_custom_call.1} parent=1 // pred_check_branch
      %1562 = sbr.rel (%p1559) target = $region77
    $region76: #{tpu_custom_call.1} parent=1 // pred_region
      %v1563 = vld [vmem:[#allocation2] sm:$0xff]
      %v1564 = vld [vmem:[#allocation2 + $0x8] sm:$0xff]
      %v1565 = vld [vmem:[#allocation2 + $0x10] sm:$0xff]
      %v1566 = vld [vmem:[#allocation2 + $0x18] sm:$0xff]
      %v1567 = vld [vmem:[#allocation2 + $0x20] sm:$0xff]
      %v1568 = vld [vmem:[#allocation2 + $0x28] sm:$0xff]
      %v1569 = vld [vmem:[#allocation2 + $0x30] sm:$0xff]
      %v1570 = vld [vmem:[#allocation2 + $0x38] sm:$0xff]
      %v1571 = vld [vmem:[#allocation2 + $0x40] sm:$0xff]
      %v1572 = vld [vmem:[#allocation2 + $0x48] sm:$0xff]
      %v1573 = vld [vmem:[#allocation2 + $0x50] sm:$0xff]
      %v1574 = vld [vmem:[#allocation2 + $0x58] sm:$0xff]
      %v1575 = vld [vmem:[#allocation2 + $0x60] sm:$0xff]
      %v1576 = vld [vmem:[#allocation2 + $0x68] sm:$0xff]
      %v1577 = vld [vmem:[#allocation2 + $0x70] sm:$0xff]
      %v1578 = vld [vmem:[#allocation2 + $0x78] sm:$0xff]
      %v1579 = vstv %s1452
      %vm1580 = vcmp.lt.f32.partialorder %v1563, %v1579
      %vm1581 = vcmp.lt.f32.partialorder %v1564, %v1579
      %vm1582 = vcmp.lt.f32.partialorder %v1565, %v1579
      %vm1583 = vcmp.lt.f32.partialorder %v1566, %v1579
      %vm1584 = vcmp.lt.f32.partialorder %v1567, %v1579
      %vm1585 = vcmp.lt.f32.partialorder %v1568, %v1579
      %vm1586 = vcmp.lt.f32.partialorder %v1569, %v1579
      %vm1587 = vcmp.lt.f32.partialorder %v1570, %v1579
      %vm1588 = vcmp.lt.f32.partialorder %v1571, %v1579
      %vm1589 = vcmp.lt.f32.partialorder %v1572, %v1579
      %vm1590 = vcmp.lt.f32.partialorder %v1573, %v1579
      %vm1591 = vcmp.lt.f32.partialorder %v1574, %v1579
      %vm1592 = vcmp.lt.f32.partialorder %v1575, %v1579
      %vm1593 = vcmp.lt.f32.partialorder %v1576, %v1579
      %vm1594 = vcmp.lt.f32.partialorder %v1577, %v1579
      %vm1595 = vcmp.lt.f32.partialorder %v1578, %v1579
      %v1596 = vsub.f32 255.0, %v1563
      %v1597 = vsub.f32 255.0, %v1564
      %v1598 = vsub.f32 255.0, %v1565
      %v1599 = vsub.f32 255.0, %v1566
      %v1600 = vsub.f32 255.0, %v1567
      %v1601 = vsub.f32 255.0, %v1568
      %v1602 = vsub.f32 255.0, %v1569
      %v1603 = vsub.f32 255.0, %v1570
      %v1604 = vsub.f32 255.0, %v1571
      %v1605 = vsub.f32 255.0, %v1572
      %v1606 = vsub.f32 255.0, %v1573
      %v1607 = vsub.f32 255.0, %v1574
      %v1608 = vsub.f32 255.0, %v1575
      %v1609 = vsub.f32 255.0, %v1576
      %v1610 = vsub.f32 255.0, %v1577
      %v1611 = vsub.f32 255.0, %v1578
      %v1612 = vsel %vm1580, %v1563, %v1596
      %v1613 = vsel %vm1581, %v1564, %v1597
      %v1614 = vsel %vm1582, %v1565, %v1598
      %v1615 = vsel %vm1583, %v1566, %v1599
      %v1616 = vsel %vm1584, %v1567, %v1600
      %v1617 = vsel %vm1585, %v1568, %v1601
      %v1618 = vsel %vm1586, %v1569, %v1602
      %v1619 = vsel %vm1587, %v1570, %v1603
      %v1620 = vsel %vm1588, %v1571, %v1604
      %v1621 = vsel %vm1589, %v1572, %v1605
      %v1622 = vsel %vm1590, %v1573, %v1606
      %v1623 = vsel %vm1591, %v1574, %v1607
      %v1624 = vsel %vm1592, %v1575, %v1608
      %v1625 = vsel %vm1593, %v1576, %v1609
      %v1626 = vsel %vm1594, %v1577, %v1610
      %v1627 = vsel %vm1595, %v1578, %v1611
      %1628 = vst [vmem:[#allocation2] sm:$0xff] %v1612
      %1629 = vst [vmem:[#allocation2 + $0x8] sm:$0xff] %v1613
      %1630 = vst [vmem:[#allocation2 + $0x10] sm:$0xff] %v1614
      %1631 = vst [vmem:[#allocation2 + $0x18] sm:$0xff] %v1615
      %1632 = vst [vmem:[#allocation2 + $0x20] sm:$0xff] %v1616
      %1633 = vst [vmem:[#allocation2 + $0x28] sm:$0xff] %v1617
      %1634 = vst [vmem:[#allocation2 + $0x30] sm:$0xff] %v1618
      %1635 = vst [vmem:[#allocation2 + $0x38] sm:$0xff] %v1619
      %1636 = vst [vmem:[#allocation2 + $0x40] sm:$0xff] %v1620
      %1637 = vst [vmem:[#allocation2 + $0x48] sm:$0xff] %v1621
      %1638 = vst [vmem:[#allocation2 + $0x50] sm:$0xff] %v1622
      %1639 = vst [vmem:[#allocation2 + $0x58] sm:$0xff] %v1623
      %1640 = vst [vmem:[#allocation2 + $0x60] sm:$0xff] %v1624
      %1641 = vst [vmem:[#allocation2 + $0x68] sm:$0xff] %v1625
      %1642 = vst [vmem:[#allocation2 + $0x70] sm:$0xff] %v1626
      %1643 = vst [vmem:[#allocation2 + $0x78] sm:$0xff] %v1627
    $region77: #{tpu_custom_call.1} parent=1 // pred_fallthru
      _
    %p1644 = scmp.eq.s32.totalorder %s1451, 2
    %p1645 = pnand %p1454, %p1644
    %p1646 = pneg %p1645
    // Predicated region
    $region78: #{tpu_custom_call.1} parent=1 // pred_check
      _
    $region79: #{tpu_custom_call.1} parent=1 // pred_check_branch
      %1648 = sbr.rel (%p1645) target = $region81
    $region80: #{tpu_custom_call.1} parent=1 // pred_region
      %v1649 = vld [vmem:[#allocation2] sm:$0xff]
      %v1650 = vld [vmem:[#allocation2 + $0x8] sm:$0xff]
      %v1651 = vld [vmem:[#allocation2 + $0x10] sm:$0xff]
      %v1652 = vld [vmem:[#allocation2 + $0x18] sm:$0xff]
      %v1653 = vld [vmem:[#allocation2 + $0x20] sm:$0xff]
      %v1654 = vld [vmem:[#allocation2 + $0x28] sm:$0xff]
      %v1655 = vld [vmem:[#allocation2 + $0x30] sm:$0xff]
      %v1656 = vld [vmem:[#allocation2 + $0x38] sm:$0xff]
      %v1657 = vld [vmem:[#allocation2 + $0x40] sm:$0xff]
      %v1658 = vld [vmem:[#allocation2 + $0x48] sm:$0xff]
      %v1659 = vld [vmem:[#allocation2 + $0x50] sm:$0xff]
      %v1660 = vld [vmem:[#allocation2 + $0x58] sm:$0xff]
      %v1661 = vld [vmem:[#allocation2 + $0x60] sm:$0xff]
      %v1662 = vld [vmem:[#allocation2 + $0x68] sm:$0xff]
      %v1663 = vld [vmem:[#allocation2 + $0x70] sm:$0xff]
      %v1664 = vld [vmem:[#allocation2 + $0x78] sm:$0xff]
      %v1665 = vstv %s1453
      %v1666 = vmul.f32 %v1649, %v1665
      %v1667 = vmul.f32 %v1650, %v1665
      %v1668 = vmul.f32 %v1651, %v1665
      %v1669 = vmul.f32 %v1652, %v1665
      %v1670 = vmul.f32 %v1653, %v1665
      %v1671 = vmul.f32 %v1654, %v1665
      %v1672 = vmul.f32 %v1655, %v1665
      %v1673 = vmul.f32 %v1656, %v1665
      %v1674 = vmul.f32 %v1657, %v1665
      %v1675 = vmul.f32 %v1658, %v1665
      %v1676 = vmul.f32 %v1659, %v1665
      %v1677 = vmul.f32 %v1660, %v1665
      %v1678 = vmul.f32 %v1661, %v1665
      %v1679 = vmul.f32 %v1662, %v1665
      %v1680 = vmul.f32 %v1663, %v1665
      %v1681 = vmul.f32 %v1664, %v1665
      %v1682 = vfloor.f32 %v1666
      %v1683 = vfloor.f32 %v1667
      %v1684 = vfloor.f32 %v1668
      %v1685 = vfloor.f32 %v1669
      %v1686 = vfloor.f32 %v1670
      %v1687 = vfloor.f32 %v1671
      %v1688 = vfloor.f32 %v1672
      %v1689 = vfloor.f32 %v1673
      %v1690 = vfloor.f32 %v1674
      %v1691 = vfloor.f32 %v1675
      %v1692 = vfloor.f32 %v1676
      %v1693 = vfloor.f32 %v1677
      %v1694 = vfloor.f32 %v1678
      %v1695 = vfloor.f32 %v1679
      %v1696 = vfloor.f32 %v1680
      %v1697 = vfloor.f32 %v1681
      %v1698 = vstv %s1452
      %v1699 = vmul.f32 %v1682, %v1698
      %v1700 = vmul.f32 %v1683, %v1698
      %v1701 = vmul.f32 %v1684, %v1698
      %v1702 = vmul.f32 %v1685, %v1698
      %v1703 = vmul.f32 %v1686, %v1698
      %v1704 = vmul.f32 %v1687, %v1698
      %v1705 = vmul.f32 %v1688, %v1698
      %v1706 = vmul.f32 %v1689, %v1698
      %v1707 = vmul.f32 %v1690, %v1698
      %v1708 = vmul.f32 %v1691, %v1698
      %v1709 = vmul.f32 %v1692, %v1698
      %v1710 = vmul.f32 %v1693, %v1698
      %v1711 = vmul.f32 %v1694, %v1698
      %v1712 = vmul.f32 %v1695, %v1698
      %v1713 = vmul.f32 %v1696, %v1698
      %v1714 = vmul.f32 %v1697, %v1698
      %1715 = vst [vmem:[#allocation2] sm:$0xff] %v1699
      %1716 = vst [vmem:[#allocation2 + $0x8] sm:$0xff] %v1700
      %1717 = vst [vmem:[#allocation2 + $0x10] sm:$0xff] %v1701
      %1718 = vst [vmem:[#allocation2 + $0x18] sm:$0xff] %v1702
      %1719 = vst [vmem:[#allocation2 + $0x20] sm:$0xff] %v1703
      %1720 = vst [vmem:[#allocation2 + $0x28] sm:$0xff] %v1704
      %1721 = vst [vmem:[#allocation2 + $0x30] sm:$0xff] %v1705
      %1722 = vst [vmem:[#allocation2 + $0x38] sm:$0xff] %v1706
      %1723 = vst [vmem:[#allocation2 + $0x40] sm:$0xff] %v1707
      %1724 = vst [vmem:[#allocation2 + $0x48] sm:$0xff] %v1708
      %1725 = vst [vmem:[#allocation2 + $0x50] sm:$0xff] %v1709
      %1726 = vst [vmem:[#allocation2 + $0x58] sm:$0xff] %v1710
      %1727 = vst [vmem:[#allocation2 + $0x60] sm:$0xff] %v1711
      %1728 = vst [vmem:[#allocation2 + $0x68] sm:$0xff] %v1712
      %1729 = vst [vmem:[#allocation2 + $0x70] sm:$0xff] %v1713
      %1730 = vst [vmem:[#allocation2 + $0x78] sm:$0xff] %v1714
    $region81: #{tpu_custom_call.1} parent=1 // pred_fallthru
      _
    %s1731 = sld [smem:[#allocation9 + $0x1]]
    %v1732 = vld [vmem:[#allocation2] sm:$0xff]
    %v1733 = vld [vmem:[#allocation2 + $0x8] sm:$0xff]
    %v1734 = vld [vmem:[#allocation2 + $0x10] sm:$0xff]
    %v1735 = vld [vmem:[#allocation2 + $0x18] sm:$0xff]
    %v1736 = vld [vmem:[#allocation2 + $0x20] sm:$0xff]
    %v1737 = vld [vmem:[#allocation2 + $0x28] sm:$0xff]
    %v1738 = vld [vmem:[#allocation2 + $0x30] sm:$0xff]
    %v1739 = vld [vmem:[#allocation2 + $0x38] sm:$0xff]
    %v1740 = vld [vmem:[#allocation2 + $0x40] sm:$0xff]
    %v1741 = vld [vmem:[#allocation2 + $0x48] sm:$0xff]
    %v1742 = vld [vmem:[#allocation2 + $0x50] sm:$0xff]
    %v1743 = vld [vmem:[#allocation2 + $0x58] sm:$0xff]
    %v1744 = vld [vmem:[#allocation2 + $0x60] sm:$0xff]
    %v1745 = vld [vmem:[#allocation2 + $0x68] sm:$0xff]
    %v1746 = vld [vmem:[#allocation2 + $0x70] sm:$0xff]
    %v1747 = vld [vmem:[#allocation2 + $0x78] sm:$0xff]
    %v1748 = vstv %s1731
    %v1749 = vmul.f32 %v1748, %v1732
    %v1750 = vmul.f32 %v1748, %v1733
    %v1751 = vmul.f32 %v1748, %v1734
    %v1752 = vmul.f32 %v1748, %v1735
    %v1753 = vmul.f32 %v1748, %v1736
    %v1754 = vmul.f32 %v1748, %v1737
    %v1755 = vmul.f32 %v1748, %v1738
    %v1756 = vmul.f32 %v1748, %v1739
    %v1757 = vmul.f32 %v1748, %v1740
    %v1758 = vmul.f32 %v1748, %v1741
    %v1759 = vmul.f32 %v1748, %v1742
    %v1760 = vmul.f32 %v1748, %v1743
    %v1761 = vmul.f32 %v1748, %v1744
    %v1762 = vmul.f32 %v1748, %v1745
    %v1763 = vmul.f32 %v1748, %v1746
    %v1764 = vmul.f32 %v1748, %v1747
    %v1765 = vld [vmem:[#allocation3] sm:$0xff]
    %v1766 = vld [vmem:[#allocation3 + $0x8] sm:$0xff]
    %v1767 = vld [vmem:[#allocation3 + $0x10] sm:$0xff]
    %v1768 = vld [vmem:[#allocation3 + $0x18] sm:$0xff]
    %v1769 = vld [vmem:[#allocation3 + $0x20] sm:$0xff]
    %v1770 = vld [vmem:[#allocation3 + $0x28] sm:$0xff]
    %v1771 = vld [vmem:[#allocation3 + $0x30] sm:$0xff]
    %v1772 = vld [vmem:[#allocation3 + $0x38] sm:$0xff]
    %v1773 = vld [vmem:[#allocation3 + $0x40] sm:$0xff]
    %v1774 = vld [vmem:[#allocation3 + $0x48] sm:$0xff]
    %v1775 = vld [vmem:[#allocation3 + $0x50] sm:$0xff]
    %v1776 = vld [vmem:[#allocation3 + $0x58] sm:$0xff]
    %v1777 = vld [vmem:[#allocation3 + $0x60] sm:$0xff]
    %v1778 = vld [vmem:[#allocation3 + $0x68] sm:$0xff]
    %v1779 = vld [vmem:[#allocation3 + $0x70] sm:$0xff]
    %v1780 = vld [vmem:[#allocation3 + $0x78] sm:$0xff]
    %v1781 = vadd.f32 %v1765, %v1749
    %v1782 = vadd.f32 %v1766, %v1750
    %v1783 = vadd.f32 %v1767, %v1751
    %v1784 = vadd.f32 %v1768, %v1752
    %v1785 = vadd.f32 %v1769, %v1753
    %v1786 = vadd.f32 %v1770, %v1754
    %v1787 = vadd.f32 %v1771, %v1755
    %v1788 = vadd.f32 %v1772, %v1756
    %v1789 = vadd.f32 %v1773, %v1757
    %v1790 = vadd.f32 %v1774, %v1758
    %v1791 = vadd.f32 %v1775, %v1759
    %v1792 = vadd.f32 %v1776, %v1760
    %v1793 = vadd.f32 %v1777, %v1761
    %v1794 = vadd.f32 %v1778, %v1762
    %v1795 = vadd.f32 %v1779, %v1763
    %v1796 = vadd.f32 %v1780, %v1764
    %1797 = vst [vmem:[#allocation3] sm:$0xff] %v1781
    %1798 = vst [vmem:[#allocation3 + $0x8] sm:$0xff] %v1782
    %1799 = vst [vmem:[#allocation3 + $0x10] sm:$0xff] %v1783
    %1800 = vst [vmem:[#allocation3 + $0x18] sm:$0xff] %v1784
    %1801 = vst [vmem:[#allocation3 + $0x20] sm:$0xff] %v1785
    %1802 = vst [vmem:[#allocation3 + $0x28] sm:$0xff] %v1786
    %1803 = vst [vmem:[#allocation3 + $0x30] sm:$0xff] %v1787
    %1804 = vst [vmem:[#allocation3 + $0x38] sm:$0xff] %v1788
    %1805 = vst [vmem:[#allocation3 + $0x40] sm:$0xff] %v1789
    %1806 = vst [vmem:[#allocation3 + $0x48] sm:$0xff] %v1790
    %1807 = vst [vmem:[#allocation3 + $0x50] sm:$0xff] %v1791
    %1808 = vst [vmem:[#allocation3 + $0x58] sm:$0xff] %v1792
    %1809 = vst [vmem:[#allocation3 + $0x60] sm:$0xff] %v1793
    %1810 = vst [vmem:[#allocation3 + $0x68] sm:$0xff] %v1794
    %1811 = vst [vmem:[#allocation3 + $0x70] sm:$0xff] %v1795
    %1812 = vst [vmem:[#allocation3 + $0x78] sm:$0xff] %v1796
    %s1813 = sld [smem:[#allocation5 + $0x2]]
    %s1814 = sld [smem:[#allocation6 + $0x100]]
    %s1815 = sld [smem:[#allocation7 + $0x100]]
    %s1816 = sld [smem:[#allocation8 + $0x100]]
    %p1817 = scmp.eq.s32.totalorder %s1814, 0
    // Predicated region
    $region82: #{tpu_custom_call.1} parent=1 // pred_check
      %p1818 = pneg %p1817
    $region83: #{tpu_custom_call.1} parent=1 // pred_check_branch
      %1820 = sbr.rel (%p1818) target = $region85
    $region84: #{tpu_custom_call.1} parent=1 // pred_region
      %v1821 = vstv %s1815
      %v1822 = vmul.f32 %v86, %v1821
      %v1823 = vmul.f32 %v87, %v1821
      %v1824 = vmul.f32 %v88, %v1821
      %v1825 = vmul.f32 %v89, %v1821
      %v1826 = vmul.f32 %v90, %v1821
      %v1827 = vmul.f32 %v91, %v1821
      %v1828 = vmul.f32 %v92, %v1821
      %v1829 = vmul.f32 %v93, %v1821
      %v1830 = vmul.f32 %v94, %v1821
      %v1831 = vmul.f32 %v95, %v1821
      %v1832 = vmul.f32 %v96, %v1821
      %v1833 = vmul.f32 %v97, %v1821
      %v1834 = vmul.f32 %v98, %v1821
      %v1835 = vmul.f32 %v99, %v1821
      %v1836 = vmul.f32 %v100, %v1821
      %v1837 = vmul.f32 %v101, %v1821
      %v1838 = vstv %s1816
      %v1839 = vadd.f32 %v1822, %v1838
      %v1840 = vadd.f32 %v1823, %v1838
      %v1841 = vadd.f32 %v1824, %v1838
      %v1842 = vadd.f32 %v1825, %v1838
      %v1843 = vadd.f32 %v1826, %v1838
      %v1844 = vadd.f32 %v1827, %v1838
      %v1845 = vadd.f32 %v1828, %v1838
      %v1846 = vadd.f32 %v1829, %v1838
      %v1847 = vadd.f32 %v1830, %v1838
      %v1848 = vadd.f32 %v1831, %v1838
      %v1849 = vadd.f32 %v1832, %v1838
      %v1850 = vadd.f32 %v1833, %v1838
      %v1851 = vadd.f32 %v1834, %v1838
      %v1852 = vadd.f32 %v1835, %v1838
      %v1853 = vadd.f32 %v1836, %v1838
      %v1854 = vadd.f32 %v1837, %v1838
      %v1855 = vmax.f32 %v1839, 0.0
      %v1856 = vmax.f32 %v1840, 0.0
      %v1857 = vmax.f32 %v1841, 0.0
      %v1858 = vmax.f32 %v1842, 0.0
      %v1859 = vmax.f32 %v1843, 0.0
      %v1860 = vmax.f32 %v1844, 0.0
      %v1861 = vmax.f32 %v1845, 0.0
      %v1862 = vmax.f32 %v1846, 0.0
      %v1863 = vmax.f32 %v1847, 0.0
      %v1864 = vmax.f32 %v1848, 0.0
      %v1865 = vmax.f32 %v1849, 0.0
      %v1866 = vmax.f32 %v1850, 0.0
      %v1867 = vmax.f32 %v1851, 0.0
      %v1868 = vmax.f32 %v1852, 0.0
      %v1869 = vmax.f32 %v1853, 0.0
      %v1870 = vmax.f32 %v1854, 0.0
      %v1871 = vmin.f32 %v1855, 255.0
      %v1872 = vmin.f32 %v1856, 255.0
      %v1873 = vmin.f32 %v1857, 255.0
      %v1874 = vmin.f32 %v1858, 255.0
      %v1875 = vmin.f32 %v1859, 255.0
      %v1876 = vmin.f32 %v1860, 255.0
      %v1877 = vmin.f32 %v1861, 255.0
      %v1878 = vmin.f32 %v1862, 255.0
      %v1879 = vmin.f32 %v1863, 255.0
      %v1880 = vmin.f32 %v1864, 255.0
      %v1881 = vmin.f32 %v1865, 255.0
      %v1882 = vmin.f32 %v1866, 255.0
      %v1883 = vmin.f32 %v1867, 255.0
      %v1884 = vmin.f32 %v1868, 255.0
      %v1885 = vmin.f32 %v1869, 255.0
      %v1886 = vmin.f32 %v1870, 255.0
      %1887 = vst [vmem:[#allocation2] sm:$0xff] %v1871
      %1888 = vst [vmem:[#allocation2 + $0x8] sm:$0xff] %v1872
      %1889 = vst [vmem:[#allocation2 + $0x10] sm:$0xff] %v1873
      %1890 = vst [vmem:[#allocation2 + $0x18] sm:$0xff] %v1874
      %1891 = vst [vmem:[#allocation2 + $0x20] sm:$0xff] %v1875
      %1892 = vst [vmem:[#allocation2 + $0x28] sm:$0xff] %v1876
      %1893 = vst [vmem:[#allocation2 + $0x30] sm:$0xff] %v1877
      %1894 = vst [vmem:[#allocation2 + $0x38] sm:$0xff] %v1878
      %1895 = vst [vmem:[#allocation2 + $0x40] sm:$0xff] %v1879
      %1896 = vst [vmem:[#allocation2 + $0x48] sm:$0xff] %v1880
      %1897 = vst [vmem:[#allocation2 + $0x50] sm:$0xff] %v1881
      %1898 = vst [vmem:[#allocation2 + $0x58] sm:$0xff] %v1882
      %1899 = vst [vmem:[#allocation2 + $0x60] sm:$0xff] %v1883
      %1900 = vst [vmem:[#allocation2 + $0x68] sm:$0xff] %v1884
      %1901 = vst [vmem:[#allocation2 + $0x70] sm:$0xff] %v1885
      %1902 = vst [vmem:[#allocation2 + $0x78] sm:$0xff] %v1886
    $region85: #{tpu_custom_call.1} parent=1 // pred_fallthru
      _
    %p1903 = scmp.eq.s32.totalorder %s1814, 1
    // Predicated region
    $region86: #{tpu_custom_call.1} parent=1 // pred_check
      %p1904 = pneg %p1903
    $region87: #{tpu_custom_call.1} parent=1 // pred_check_branch
      %1906 = sbr.rel (%p1904) target = $region89
    $region88: #{tpu_custom_call.1} parent=1 // pred_region
      %v1907 = vstv %s1815
      %vm1908 = vcmp.lt.f32.partialorder %v86, %v1907
      %vm1909 = vcmp.lt.f32.partialorder %v87, %v1907
      %vm1910 = vcmp.lt.f32.partialorder %v88, %v1907
      %vm1911 = vcmp.lt.f32.partialorder %v89, %v1907
      %vm1912 = vcmp.lt.f32.partialorder %v90, %v1907
      %vm1913 = vcmp.lt.f32.partialorder %v91, %v1907
      %vm1914 = vcmp.lt.f32.partialorder %v92, %v1907
      %vm1915 = vcmp.lt.f32.partialorder %v93, %v1907
      %vm1916 = vcmp.lt.f32.partialorder %v94, %v1907
      %vm1917 = vcmp.lt.f32.partialorder %v95, %v1907
      %vm1918 = vcmp.lt.f32.partialorder %v96, %v1907
      %vm1919 = vcmp.lt.f32.partialorder %v97, %v1907
      %vm1920 = vcmp.lt.f32.partialorder %v98, %v1907
      %vm1921 = vcmp.lt.f32.partialorder %v99, %v1907
      %vm1922 = vcmp.lt.f32.partialorder %v100, %v1907
      %vm1923 = vcmp.lt.f32.partialorder %v101, %v1907
      %v1924 = vsub.f32 255.0, %v86
      %v1925 = vsub.f32 255.0, %v87
      %v1926 = vsub.f32 255.0, %v88
      %v1927 = vsub.f32 255.0, %v89
      %v1928 = vsub.f32 255.0, %v90
      %v1929 = vsub.f32 255.0, %v91
      %v1930 = vsub.f32 255.0, %v92
      %v1931 = vsub.f32 255.0, %v93
      %v1932 = vsub.f32 255.0, %v94
      %v1933 = vsub.f32 255.0, %v95
      %v1934 = vsub.f32 255.0, %v96
      %v1935 = vsub.f32 255.0, %v97
      %v1936 = vsub.f32 255.0, %v98
      %v1937 = vsub.f32 255.0, %v99
      %v1938 = vsub.f32 255.0, %v100
      %v1939 = vsub.f32 255.0, %v101
      %v1940 = vsel %vm1908, %v86, %v1924
      %v1941 = vsel %vm1909, %v87, %v1925
      %v1942 = vsel %vm1910, %v88, %v1926
      %v1943 = vsel %vm1911, %v89, %v1927
      %v1944 = vsel %vm1912, %v90, %v1928
      %v1945 = vsel %vm1913, %v91, %v1929
      %v1946 = vsel %vm1914, %v92, %v1930
      %v1947 = vsel %vm1915, %v93, %v1931
      %v1948 = vsel %vm1916, %v94, %v1932
      %v1949 = vsel %vm1917, %v95, %v1933
      %v1950 = vsel %vm1918, %v96, %v1934
      %v1951 = vsel %vm1919, %v97, %v1935
      %v1952 = vsel %vm1920, %v98, %v1936
      %v1953 = vsel %vm1921, %v99, %v1937
      %v1954 = vsel %vm1922, %v100, %v1938
      %v1955 = vsel %vm1923, %v101, %v1939
      %1956 = vst [vmem:[#allocation2] sm:$0xff] %v1940
      %1957 = vst [vmem:[#allocation2 + $0x8] sm:$0xff] %v1941
      %1958 = vst [vmem:[#allocation2 + $0x10] sm:$0xff] %v1942
      %1959 = vst [vmem:[#allocation2 + $0x18] sm:$0xff] %v1943
      %1960 = vst [vmem:[#allocation2 + $0x20] sm:$0xff] %v1944
      %1961 = vst [vmem:[#allocation2 + $0x28] sm:$0xff] %v1945
      %1962 = vst [vmem:[#allocation2 + $0x30] sm:$0xff] %v1946
      %1963 = vst [vmem:[#allocation2 + $0x38] sm:$0xff] %v1947
      %1964 = vst [vmem:[#allocation2 + $0x40] sm:$0xff] %v1948
      %1965 = vst [vmem:[#allocation2 + $0x48] sm:$0xff] %v1949
      %1966 = vst [vmem:[#allocation2 + $0x50] sm:$0xff] %v1950
      %1967 = vst [vmem:[#allocation2 + $0x58] sm:$0xff] %v1951
      %1968 = vst [vmem:[#allocation2 + $0x60] sm:$0xff] %v1952
      %1969 = vst [vmem:[#allocation2 + $0x68] sm:$0xff] %v1953
      %1970 = vst [vmem:[#allocation2 + $0x70] sm:$0xff] %v1954
      %1971 = vst [vmem:[#allocation2 + $0x78] sm:$0xff] %v1955
    $region89: #{tpu_custom_call.1} parent=1 // pred_fallthru
      _
    %p1972 = scmp.eq.s32.totalorder %s1814, 2
    // Predicated region
    $region90: #{tpu_custom_call.1} parent=1 // pred_check
      %p1973 = pneg %p1972
    $region91: #{tpu_custom_call.1} parent=1 // pred_check_branch
      %1975 = sbr.rel (%p1973) target = $region93
    $region92: #{tpu_custom_call.1} parent=1 // pred_region
      %v1976 = vstv %s1816
      %v1977 = vmul.f32 %v86, %v1976
      %v1978 = vmul.f32 %v87, %v1976
      %v1979 = vmul.f32 %v88, %v1976
      %v1980 = vmul.f32 %v89, %v1976
      %v1981 = vmul.f32 %v90, %v1976
      %v1982 = vmul.f32 %v91, %v1976
      %v1983 = vmul.f32 %v92, %v1976
      %v1984 = vmul.f32 %v93, %v1976
      %v1985 = vmul.f32 %v94, %v1976
      %v1986 = vmul.f32 %v95, %v1976
      %v1987 = vmul.f32 %v96, %v1976
      %v1988 = vmul.f32 %v97, %v1976
      %v1989 = vmul.f32 %v98, %v1976
      %v1990 = vmul.f32 %v99, %v1976
      %v1991 = vmul.f32 %v100, %v1976
      %v1992 = vmul.f32 %v101, %v1976
      %v1993 = vfloor.f32 %v1977
      %v1994 = vfloor.f32 %v1978
      %v1995 = vfloor.f32 %v1979
      %v1996 = vfloor.f32 %v1980
      %v1997 = vfloor.f32 %v1981
      %v1998 = vfloor.f32 %v1982
      %v1999 = vfloor.f32 %v1983
      %v2000 = vfloor.f32 %v1984
      %v2001 = vfloor.f32 %v1985
      %v2002 = vfloor.f32 %v1986
      %v2003 = vfloor.f32 %v1987
      %v2004 = vfloor.f32 %v1988
      %v2005 = vfloor.f32 %v1989
      %v2006 = vfloor.f32 %v1990
      %v2007 = vfloor.f32 %v1991
      %v2008 = vfloor.f32 %v1992
      %v2009 = vstv %s1815
      %v2010 = vmul.f32 %v1993, %v2009
      %v2011 = vmul.f32 %v1994, %v2009
      %v2012 = vmul.f32 %v1995, %v2009
      %v2013 = vmul.f32 %v1996, %v2009
      %v2014 = vmul.f32 %v1997, %v2009
      %v2015 = vmul.f32 %v1998, %v2009
      %v2016 = vmul.f32 %v1999, %v2009
      %v2017 = vmul.f32 %v2000, %v2009
      %v2018 = vmul.f32 %v2001, %v2009
      %v2019 = vmul.f32 %v2002, %v2009
      %v2020 = vmul.f32 %v2003, %v2009
      %v2021 = vmul.f32 %v2004, %v2009
      %v2022 = vmul.f32 %v2005, %v2009
      %v2023 = vmul.f32 %v2006, %v2009
      %v2024 = vmul.f32 %v2007, %v2009
      %v2025 = vmul.f32 %v2008, %v2009
      %2026 = vst [vmem:[#allocation2] sm:$0xff] %v2010
      %2027 = vst [vmem:[#allocation2 + $0x8] sm:$0xff] %v2011
      %2028 = vst [vmem:[#allocation2 + $0x10] sm:$0xff] %v2012
      %2029 = vst [vmem:[#allocation2 + $0x18] sm:$0xff] %v2013
      %2030 = vst [vmem:[#allocation2 + $0x20] sm:$0xff] %v2014
      %2031 = vst [vmem:[#allocation2 + $0x28] sm:$0xff] %v2015
      %2032 = vst [vmem:[#allocation2 + $0x30] sm:$0xff] %v2016
      %2033 = vst [vmem:[#allocation2 + $0x38] sm:$0xff] %v2017
      %2034 = vst [vmem:[#allocation2 + $0x40] sm:$0xff] %v2018
      %2035 = vst [vmem:[#allocation2 + $0x48] sm:$0xff] %v2019
      %2036 = vst [vmem:[#allocation2 + $0x50] sm:$0xff] %v2020
      %2037 = vst [vmem:[#allocation2 + $0x58] sm:$0xff] %v2021
      %2038 = vst [vmem:[#allocation2 + $0x60] sm:$0xff] %v2022
      %2039 = vst [vmem:[#allocation2 + $0x68] sm:$0xff] %v2023
      %2040 = vst [vmem:[#allocation2 + $0x70] sm:$0xff] %v2024
      %2041 = vst [vmem:[#allocation2 + $0x78] sm:$0xff] %v2025
    $region93: #{tpu_custom_call.1} parent=1 // pred_fallthru
      _
    %s2042 = sld [smem:[#allocation6 + $0x101]]
    %s2043 = sld [smem:[#allocation7 + $0x101]]
    %s2044 = sld [smem:[#allocation8 + $0x101]]
    %p2045 = scmp.gt.s32.totalorder %s1813, 1
    %p2046 = scmp.eq.s32.totalorder %s2042, 0
    %p2047 = pnand %p2045, %p2046
    %p2048 = pneg %p2047
    // Predicated region
    $region94: #{tpu_custom_call.1} parent=1 // pred_check
      _
    $region95: #{tpu_custom_call.1} parent=1 // pred_check_branch
      %2050 = sbr.rel (%p2047) target = $region97
    $region96: #{tpu_custom_call.1} parent=1 // pred_region
      %v2051 = vld [vmem:[#allocation2] sm:$0xff]
      %v2052 = vld [vmem:[#allocation2 + $0x8] sm:$0xff]
      %v2053 = vld [vmem:[#allocation2 + $0x10] sm:$0xff]
      %v2054 = vld [vmem:[#allocation2 + $0x18] sm:$0xff]
      %v2055 = vld [vmem:[#allocation2 + $0x20] sm:$0xff]
      %v2056 = vld [vmem:[#allocation2 + $0x28] sm:$0xff]
      %v2057 = vld [vmem:[#allocation2 + $0x30] sm:$0xff]
      %v2058 = vld [vmem:[#allocation2 + $0x38] sm:$0xff]
      %v2059 = vld [vmem:[#allocation2 + $0x40] sm:$0xff]
      %v2060 = vld [vmem:[#allocation2 + $0x48] sm:$0xff]
      %v2061 = vld [vmem:[#allocation2 + $0x50] sm:$0xff]
      %v2062 = vld [vmem:[#allocation2 + $0x58] sm:$0xff]
      %v2063 = vld [vmem:[#allocation2 + $0x60] sm:$0xff]
      %v2064 = vld [vmem:[#allocation2 + $0x68] sm:$0xff]
      %v2065 = vld [vmem:[#allocation2 + $0x70] sm:$0xff]
      %v2066 = vld [vmem:[#allocation2 + $0x78] sm:$0xff]
      %v2067 = vstv %s2043
      %v2068 = vmul.f32 %v2051, %v2067
      %v2069 = vmul.f32 %v2052, %v2067
      %v2070 = vmul.f32 %v2053, %v2067
      %v2071 = vmul.f32 %v2054, %v2067
      %v2072 = vmul.f32 %v2055, %v2067
      %v2073 = vmul.f32 %v2056, %v2067
      %v2074 = vmul.f32 %v2057, %v2067
      %v2075 = vmul.f32 %v2058, %v2067
      %v2076 = vmul.f32 %v2059, %v2067
      %v2077 = vmul.f32 %v2060, %v2067
      %v2078 = vmul.f32 %v2061, %v2067
      %v2079 = vmul.f32 %v2062, %v2067
      %v2080 = vmul.f32 %v2063, %v2067
      %v2081 = vmul.f32 %v2064, %v2067
      %v2082 = vmul.f32 %v2065, %v2067
      %v2083 = vmul.f32 %v2066, %v2067
      %v2084 = vstv %s2044
      %v2085 = vadd.f32 %v2068, %v2084
      %v2086 = vadd.f32 %v2069, %v2084
      %v2087 = vadd.f32 %v2070, %v2084
      %v2088 = vadd.f32 %v2071, %v2084
      %v2089 = vadd.f32 %v2072, %v2084
      %v2090 = vadd.f32 %v2073, %v2084
      %v2091 = vadd.f32 %v2074, %v2084
      %v2092 = vadd.f32 %v2075, %v2084
      %v2093 = vadd.f32 %v2076, %v2084
      %v2094 = vadd.f32 %v2077, %v2084
      %v2095 = vadd.f32 %v2078, %v2084
      %v2096 = vadd.f32 %v2079, %v2084
      %v2097 = vadd.f32 %v2080, %v2084
      %v2098 = vadd.f32 %v2081, %v2084
      %v2099 = vadd.f32 %v2082, %v2084
      %v2100 = vadd.f32 %v2083, %v2084
      %v2101 = vmax.f32 %v2085, 0.0
      %v2102 = vmax.f32 %v2086, 0.0
      %v2103 = vmax.f32 %v2087, 0.0
      %v2104 = vmax.f32 %v2088, 0.0
      %v2105 = vmax.f32 %v2089, 0.0
      %v2106 = vmax.f32 %v2090, 0.0
      %v2107 = vmax.f32 %v2091, 0.0
      %v2108 = vmax.f32 %v2092, 0.0
      %v2109 = vmax.f32 %v2093, 0.0
      %v2110 = vmax.f32 %v2094, 0.0
      %v2111 = vmax.f32 %v2095, 0.0
      %v2112 = vmax.f32 %v2096, 0.0
      %v2113 = vmax.f32 %v2097, 0.0
      %v2114 = vmax.f32 %v2098, 0.0
      %v2115 = vmax.f32 %v2099, 0.0
      %v2116 = vmax.f32 %v2100, 0.0
      %v2117 = vmin.f32 %v2101, 255.0
      %v2118 = vmin.f32 %v2102, 255.0
      %v2119 = vmin.f32 %v2103, 255.0
      %v2120 = vmin.f32 %v2104, 255.0
      %v2121 = vmin.f32 %v2105, 255.0
      %v2122 = vmin.f32 %v2106, 255.0
      %v2123 = vmin.f32 %v2107, 255.0
      %v2124 = vmin.f32 %v2108, 255.0
      %v2125 = vmin.f32 %v2109, 255.0
      %v2126 = vmin.f32 %v2110, 255.0
      %v2127 = vmin.f32 %v2111, 255.0
      %v2128 = vmin.f32 %v2112, 255.0
      %v2129 = vmin.f32 %v2113, 255.0
      %v2130 = vmin.f32 %v2114, 255.0
      %v2131 = vmin.f32 %v2115, 255.0
      %v2132 = vmin.f32 %v2116, 255.0
      %2133 = vst [vmem:[#allocation2] sm:$0xff] %v2117
      %2134 = vst [vmem:[#allocation2 + $0x8] sm:$0xff] %v2118
      %2135 = vst [vmem:[#allocation2 + $0x10] sm:$0xff] %v2119
      %2136 = vst [vmem:[#allocation2 + $0x18] sm:$0xff] %v2120
      %2137 = vst [vmem:[#allocation2 + $0x20] sm:$0xff] %v2121
      %2138 = vst [vmem:[#allocation2 + $0x28] sm:$0xff] %v2122
      %2139 = vst [vmem:[#allocation2 + $0x30] sm:$0xff] %v2123
      %2140 = vst [vmem:[#allocation2 + $0x38] sm:$0xff] %v2124
      %2141 = vst [vmem:[#allocation2 + $0x40] sm:$0xff] %v2125
      %2142 = vst [vmem:[#allocation2 + $0x48] sm:$0xff] %v2126
      %2143 = vst [vmem:[#allocation2 + $0x50] sm:$0xff] %v2127
      %2144 = vst [vmem:[#allocation2 + $0x58] sm:$0xff] %v2128
      %2145 = vst [vmem:[#allocation2 + $0x60] sm:$0xff] %v2129
      %2146 = vst [vmem:[#allocation2 + $0x68] sm:$0xff] %v2130
      %2147 = vst [vmem:[#allocation2 + $0x70] sm:$0xff] %v2131
      %2148 = vst [vmem:[#allocation2 + $0x78] sm:$0xff] %v2132
    $region97: #{tpu_custom_call.1} parent=1 // pred_fallthru
      _
    %p2149 = scmp.eq.s32.totalorder %s2042, 1
    %p2150 = pnand %p2045, %p2149
    %p2151 = pneg %p2150
    // Predicated region
    $region98: #{tpu_custom_call.1} parent=1 // pred_check
      _
    $region99: #{tpu_custom_call.1} parent=1 // pred_check_branch
      %2153 = sbr.rel (%p2150) target = $region101
    $region100: #{tpu_custom_call.1} parent=1 // pred_region
      %v2154 = vld [vmem:[#allocation2] sm:$0xff]
      %v2155 = vld [vmem:[#allocation2 + $0x8] sm:$0xff]
      %v2156 = vld [vmem:[#allocation2 + $0x10] sm:$0xff]
      %v2157 = vld [vmem:[#allocation2 + $0x18] sm:$0xff]
      %v2158 = vld [vmem:[#allocation2 + $0x20] sm:$0xff]
      %v2159 = vld [vmem:[#allocation2 + $0x28] sm:$0xff]
      %v2160 = vld [vmem:[#allocation2 + $0x30] sm:$0xff]
      %v2161 = vld [vmem:[#allocation2 + $0x38] sm:$0xff]
      %v2162 = vld [vmem:[#allocation2 + $0x40] sm:$0xff]
      %v2163 = vld [vmem:[#allocation2 + $0x48] sm:$0xff]
      %v2164 = vld [vmem:[#allocation2 + $0x50] sm:$0xff]
      %v2165 = vld [vmem:[#allocation2 + $0x58] sm:$0xff]
      %v2166 = vld [vmem:[#allocation2 + $0x60] sm:$0xff]
      %v2167 = vld [vmem:[#allocation2 + $0x68] sm:$0xff]
      %v2168 = vld [vmem:[#allocation2 + $0x70] sm:$0xff]
      %v2169 = vld [vmem:[#allocation2 + $0x78] sm:$0xff]
      %v2170 = vstv %s2043
      %vm2171 = vcmp.lt.f32.partialorder %v2154, %v2170
      %vm2172 = vcmp.lt.f32.partialorder %v2155, %v2170
      %vm2173 = vcmp.lt.f32.partialorder %v2156, %v2170
      %vm2174 = vcmp.lt.f32.partialorder %v2157, %v2170
      %vm2175 = vcmp.lt.f32.partialorder %v2158, %v2170
      %vm2176 = vcmp.lt.f32.partialorder %v2159, %v2170
      %vm2177 = vcmp.lt.f32.partialorder %v2160, %v2170
      %vm2178 = vcmp.lt.f32.partialorder %v2161, %v2170
      %vm2179 = vcmp.lt.f32.partialorder %v2162, %v2170
      %vm2180 = vcmp.lt.f32.partialorder %v2163, %v2170
      %vm2181 = vcmp.lt.f32.partialorder %v2164, %v2170
      %vm2182 = vcmp.lt.f32.partialorder %v2165, %v2170
      %vm2183 = vcmp.lt.f32.partialorder %v2166, %v2170
      %vm2184 = vcmp.lt.f32.partialorder %v2167, %v2170
      %vm2185 = vcmp.lt.f32.partialorder %v2168, %v2170
      %vm2186 = vcmp.lt.f32.partialorder %v2169, %v2170
      %v2187 = vsub.f32 255.0, %v2154
      %v2188 = vsub.f32 255.0, %v2155
      %v2189 = vsub.f32 255.0, %v2156
      %v2190 = vsub.f32 255.0, %v2157
      %v2191 = vsub.f32 255.0, %v2158
      %v2192 = vsub.f32 255.0, %v2159
      %v2193 = vsub.f32 255.0, %v2160
      %v2194 = vsub.f32 255.0, %v2161
      %v2195 = vsub.f32 255.0, %v2162
      %v2196 = vsub.f32 255.0, %v2163
      %v2197 = vsub.f32 255.0, %v2164
      %v2198 = vsub.f32 255.0, %v2165
      %v2199 = vsub.f32 255.0, %v2166
      %v2200 = vsub.f32 255.0, %v2167
      %v2201 = vsub.f32 255.0, %v2168
      %v2202 = vsub.f32 255.0, %v2169
      %v2203 = vsel %vm2171, %v2154, %v2187
      %v2204 = vsel %vm2172, %v2155, %v2188
      %v2205 = vsel %vm2173, %v2156, %v2189
      %v2206 = vsel %vm2174, %v2157, %v2190
      %v2207 = vsel %vm2175, %v2158, %v2191
      %v2208 = vsel %vm2176, %v2159, %v2192
      %v2209 = vsel %vm2177, %v2160, %v2193
      %v2210 = vsel %vm2178, %v2161, %v2194
      %v2211 = vsel %vm2179, %v2162, %v2195
      %v2212 = vsel %vm2180, %v2163, %v2196
      %v2213 = vsel %vm2181, %v2164, %v2197
      %v2214 = vsel %vm2182, %v2165, %v2198
      %v2215 = vsel %vm2183, %v2166, %v2199
      %v2216 = vsel %vm2184, %v2167, %v2200
      %v2217 = vsel %vm2185, %v2168, %v2201
      %v2218 = vsel %vm2186, %v2169, %v2202
      %2219 = vst [vmem:[#allocation2] sm:$0xff] %v2203
      %2220 = vst [vmem:[#allocation2 + $0x8] sm:$0xff] %v2204
      %2221 = vst [vmem:[#allocation2 + $0x10] sm:$0xff] %v2205
      %2222 = vst [vmem:[#allocation2 + $0x18] sm:$0xff] %v2206
      %2223 = vst [vmem:[#allocation2 + $0x20] sm:$0xff] %v2207
      %2224 = vst [vmem:[#allocation2 + $0x28] sm:$0xff] %v2208
      %2225 = vst [vmem:[#allocation2 + $0x30] sm:$0xff] %v2209
      %2226 = vst [vmem:[#allocation2 + $0x38] sm:$0xff] %v2210
      %2227 = vst [vmem:[#allocation2 + $0x40] sm:$0xff] %v2211
      %2228 = vst [vmem:[#allocation2 + $0x48] sm:$0xff] %v2212
      %2229 = vst [vmem:[#allocation2 + $0x50] sm:$0xff] %v2213
      %2230 = vst [vmem:[#allocation2 + $0x58] sm:$0xff] %v2214
      %2231 = vst [vmem:[#allocation2 + $0x60] sm:$0xff] %v2215
      %2232 = vst [vmem:[#allocation2 + $0x68] sm:$0xff] %v2216
      %2233 = vst [vmem:[#allocation2 + $0x70] sm:$0xff] %v2217
      %2234 = vst [vmem:[#allocation2 + $0x78] sm:$0xff] %v2218
    $region101: #{tpu_custom_call.1} parent=1 // pred_fallthru
      _
    %p2235 = scmp.eq.s32.totalorder %s2042, 2
    %p2236 = pnand %p2045, %p2235
    %p2237 = pneg %p2236
    // Predicated region
    $region102: #{tpu_custom_call.1} parent=1 // pred_check
      _
    $region103: #{tpu_custom_call.1} parent=1 // pred_check_branch
      %2239 = sbr.rel (%p2236) target = $region105
    $region104: #{tpu_custom_call.1} parent=1 // pred_region
      %v2240 = vld [vmem:[#allocation2] sm:$0xff]
      %v2241 = vld [vmem:[#allocation2 + $0x8] sm:$0xff]
      %v2242 = vld [vmem:[#allocation2 + $0x10] sm:$0xff]
      %v2243 = vld [vmem:[#allocation2 + $0x18] sm:$0xff]
      %v2244 = vld [vmem:[#allocation2 + $0x20] sm:$0xff]
      %v2245 = vld [vmem:[#allocation2 + $0x28] sm:$0xff]
      %v2246 = vld [vmem:[#allocation2 + $0x30] sm:$0xff]
      %v2247 = vld [vmem:[#allocation2 + $0x38] sm:$0xff]
      %v2248 = vld [vmem:[#allocation2 + $0x40] sm:$0xff]
      %v2249 = vld [vmem:[#allocation2 + $0x48] sm:$0xff]
      %v2250 = vld [vmem:[#allocation2 + $0x50] sm:$0xff]
      %v2251 = vld [vmem:[#allocation2 + $0x58] sm:$0xff]
      %v2252 = vld [vmem:[#allocation2 + $0x60] sm:$0xff]
      %v2253 = vld [vmem:[#allocation2 + $0x68] sm:$0xff]
      %v2254 = vld [vmem:[#allocation2 + $0x70] sm:$0xff]
      %v2255 = vld [vmem:[#allocation2 + $0x78] sm:$0xff]
      %v2256 = vstv %s2044
      %v2257 = vmul.f32 %v2240, %v2256
      %v2258 = vmul.f32 %v2241, %v2256
      %v2259 = vmul.f32 %v2242, %v2256
      %v2260 = vmul.f32 %v2243, %v2256
      %v2261 = vmul.f32 %v2244, %v2256
      %v2262 = vmul.f32 %v2245, %v2256
      %v2263 = vmul.f32 %v2246, %v2256
      %v2264 = vmul.f32 %v2247, %v2256
      %v2265 = vmul.f32 %v2248, %v2256
      %v2266 = vmul.f32 %v2249, %v2256
      %v2267 = vmul.f32 %v2250, %v2256
      %v2268 = vmul.f32 %v2251, %v2256
      %v2269 = vmul.f32 %v2252, %v2256
      %v2270 = vmul.f32 %v2253, %v2256
      %v2271 = vmul.f32 %v2254, %v2256
      %v2272 = vmul.f32 %v2255, %v2256
      %v2273 = vfloor.f32 %v2257
      %v2274 = vfloor.f32 %v2258
      %v2275 = vfloor.f32 %v2259
      %v2276 = vfloor.f32 %v2260
      %v2277 = vfloor.f32 %v2261
      %v2278 = vfloor.f32 %v2262
      %v2279 = vfloor.f32 %v2263
      %v2280 = vfloor.f32 %v2264
      %v2281 = vfloor.f32 %v2265
      %v2282 = vfloor.f32 %v2266
      %v2283 = vfloor.f32 %v2267
      %v2284 = vfloor.f32 %v2268
      %v2285 = vfloor.f32 %v2269
      %v2286 = vfloor.f32 %v2270
      %v2287 = vfloor.f32 %v2271
      %v2288 = vfloor.f32 %v2272
      %v2289 = vstv %s2043
      %v2290 = vmul.f32 %v2273, %v2289
      %v2291 = vmul.f32 %v2274, %v2289
      %v2292 = vmul.f32 %v2275, %v2289
      %v2293 = vmul.f32 %v2276, %v2289
      %v2294 = vmul.f32 %v2277, %v2289
      %v2295 = vmul.f32 %v2278, %v2289
      %v2296 = vmul.f32 %v2279, %v2289
      %v2297 = vmul.f32 %v2280, %v2289
      %v2298 = vmul.f32 %v2281, %v2289
      %v2299 = vmul.f32 %v2282, %v2289
      %v2300 = vmul.f32 %v2283, %v2289
      %v2301 = vmul.f32 %v2284, %v2289
      %v2302 = vmul.f32 %v2285, %v2289
      %v2303 = vmul.f32 %v2286, %v2289
      %v2304 = vmul.f32 %v2287, %v2289
      %v2305 = vmul.f32 %v2288, %v2289
      %2306 = vst [vmem:[#allocation2] sm:$0xff] %v2290
      %2307 = vst [vmem:[#allocation2 + $0x8] sm:$0xff] %v2291
      %2308 = vst [vmem:[#allocation2 + $0x10] sm:$0xff] %v2292
      %2309 = vst [vmem:[#allocation2 + $0x18] sm:$0xff] %v2293
      %2310 = vst [vmem:[#allocation2 + $0x20] sm:$0xff] %v2294
      %2311 = vst [vmem:[#allocation2 + $0x28] sm:$0xff] %v2295
      %2312 = vst [vmem:[#allocation2 + $0x30] sm:$0xff] %v2296
      %2313 = vst [vmem:[#allocation2 + $0x38] sm:$0xff] %v2297
      %2314 = vst [vmem:[#allocation2 + $0x40] sm:$0xff] %v2298
      %2315 = vst [vmem:[#allocation2 + $0x48] sm:$0xff] %v2299
      %2316 = vst [vmem:[#allocation2 + $0x50] sm:$0xff] %v2300
      %2317 = vst [vmem:[#allocation2 + $0x58] sm:$0xff] %v2301
      %2318 = vst [vmem:[#allocation2 + $0x60] sm:$0xff] %v2302
      %2319 = vst [vmem:[#allocation2 + $0x68] sm:$0xff] %v2303
      %2320 = vst [vmem:[#allocation2 + $0x70] sm:$0xff] %v2304
      %2321 = vst [vmem:[#allocation2 + $0x78] sm:$0xff] %v2305
    $region105: #{tpu_custom_call.1} parent=1 // pred_fallthru
      _
    %s2322 = sld [smem:[#allocation6 + $0x102]]
    %s2323 = sld [smem:[#allocation7 + $0x102]]
    %s2324 = sld [smem:[#allocation8 + $0x102]]
    %p2325 = scmp.gt.s32.totalorder %s1813, 2
    %p2326 = scmp.eq.s32.totalorder %s2322, 0
    %p2327 = pnand %p2325, %p2326
    %p2328 = pneg %p2327
    // Predicated region
    $region106: #{tpu_custom_call.1} parent=1 // pred_check
      _
    $region107: #{tpu_custom_call.1} parent=1 // pred_check_branch
      %2330 = sbr.rel (%p2327) target = $region109
    $region108: #{tpu_custom_call.1} parent=1 // pred_region
      %v2331 = vld [vmem:[#allocation2] sm:$0xff]
      %v2332 = vld [vmem:[#allocation2 + $0x8] sm:$0xff]
      %v2333 = vld [vmem:[#allocation2 + $0x10] sm:$0xff]
      %v2334 = vld [vmem:[#allocation2 + $0x18] sm:$0xff]
      %v2335 = vld [vmem:[#allocation2 + $0x20] sm:$0xff]
      %v2336 = vld [vmem:[#allocation2 + $0x28] sm:$0xff]
      %v2337 = vld [vmem:[#allocation2 + $0x30] sm:$0xff]
      %v2338 = vld [vmem:[#allocation2 + $0x38] sm:$0xff]
      %v2339 = vld [vmem:[#allocation2 + $0x40] sm:$0xff]
      %v2340 = vld [vmem:[#allocation2 + $0x48] sm:$0xff]
      %v2341 = vld [vmem:[#allocation2 + $0x50] sm:$0xff]
      %v2342 = vld [vmem:[#allocation2 + $0x58] sm:$0xff]
      %v2343 = vld [vmem:[#allocation2 + $0x60] sm:$0xff]
      %v2344 = vld [vmem:[#allocation2 + $0x68] sm:$0xff]
      %v2345 = vld [vmem:[#allocation2 + $0x70] sm:$0xff]
      %v2346 = vld [vmem:[#allocation2 + $0x78] sm:$0xff]
      %v2347 = vstv %s2323
      %v2348 = vmul.f32 %v2331, %v2347
      %v2349 = vmul.f32 %v2332, %v2347
      %v2350 = vmul.f32 %v2333, %v2347
      %v2351 = vmul.f32 %v2334, %v2347
      %v2352 = vmul.f32 %v2335, %v2347
      %v2353 = vmul.f32 %v2336, %v2347
      %v2354 = vmul.f32 %v2337, %v2347
      %v2355 = vmul.f32 %v2338, %v2347
      %v2356 = vmul.f32 %v2339, %v2347
      %v2357 = vmul.f32 %v2340, %v2347
      %v2358 = vmul.f32 %v2341, %v2347
      %v2359 = vmul.f32 %v2342, %v2347
      %v2360 = vmul.f32 %v2343, %v2347
      %v2361 = vmul.f32 %v2344, %v2347
      %v2362 = vmul.f32 %v2345, %v2347
      %v2363 = vmul.f32 %v2346, %v2347
      %v2364 = vstv %s2324
      %v2365 = vadd.f32 %v2348, %v2364
      %v2366 = vadd.f32 %v2349, %v2364
      %v2367 = vadd.f32 %v2350, %v2364
      %v2368 = vadd.f32 %v2351, %v2364
      %v2369 = vadd.f32 %v2352, %v2364
      %v2370 = vadd.f32 %v2353, %v2364
      %v2371 = vadd.f32 %v2354, %v2364
      %v2372 = vadd.f32 %v2355, %v2364
      %v2373 = vadd.f32 %v2356, %v2364
      %v2374 = vadd.f32 %v2357, %v2364
      %v2375 = vadd.f32 %v2358, %v2364
      %v2376 = vadd.f32 %v2359, %v2364
      %v2377 = vadd.f32 %v2360, %v2364
      %v2378 = vadd.f32 %v2361, %v2364
      %v2379 = vadd.f32 %v2362, %v2364
      %v2380 = vadd.f32 %v2363, %v2364
      %v2381 = vmax.f32 %v2365, 0.0
      %v2382 = vmax.f32 %v2366, 0.0
      %v2383 = vmax.f32 %v2367, 0.0
      %v2384 = vmax.f32 %v2368, 0.0
      %v2385 = vmax.f32 %v2369, 0.0
      %v2386 = vmax.f32 %v2370, 0.0
      %v2387 = vmax.f32 %v2371, 0.0
      %v2388 = vmax.f32 %v2372, 0.0
      %v2389 = vmax.f32 %v2373, 0.0
      %v2390 = vmax.f32 %v2374, 0.0
      %v2391 = vmax.f32 %v2375, 0.0
      %v2392 = vmax.f32 %v2376, 0.0
      %v2393 = vmax.f32 %v2377, 0.0
      %v2394 = vmax.f32 %v2378, 0.0
      %v2395 = vmax.f32 %v2379, 0.0
      %v2396 = vmax.f32 %v2380, 0.0
      %v2397 = vmin.f32 %v2381, 255.0
      %v2398 = vmin.f32 %v2382, 255.0
      %v2399 = vmin.f32 %v2383, 255.0
      %v2400 = vmin.f32 %v2384, 255.0
      %v2401 = vmin.f32 %v2385, 255.0
      %v2402 = vmin.f32 %v2386, 255.0
      %v2403 = vmin.f32 %v2387, 255.0
      %v2404 = vmin.f32 %v2388, 255.0
      %v2405 = vmin.f32 %v2389, 255.0
      %v2406 = vmin.f32 %v2390, 255.0
      %v2407 = vmin.f32 %v2391, 255.0
      %v2408 = vmin.f32 %v2392, 255.0
      %v2409 = vmin.f32 %v2393, 255.0
      %v2410 = vmin.f32 %v2394, 255.0
      %v2411 = vmin.f32 %v2395, 255.0
      %v2412 = vmin.f32 %v2396, 255.0
      %2413 = vst [vmem:[#allocation2] sm:$0xff] %v2397
      %2414 = vst [vmem:[#allocation2 + $0x8] sm:$0xff] %v2398
      %2415 = vst [vmem:[#allocation2 + $0x10] sm:$0xff] %v2399
      %2416 = vst [vmem:[#allocation2 + $0x18] sm:$0xff] %v2400
      %2417 = vst [vmem:[#allocation2 + $0x20] sm:$0xff] %v2401
      %2418 = vst [vmem:[#allocation2 + $0x28] sm:$0xff] %v2402
      %2419 = vst [vmem:[#allocation2 + $0x30] sm:$0xff] %v2403
      %2420 = vst [vmem:[#allocation2 + $0x38] sm:$0xff] %v2404
      %2421 = vst [vmem:[#allocation2 + $0x40] sm:$0xff] %v2405
      %2422 = vst [vmem:[#allocation2 + $0x48] sm:$0xff] %v2406
      %2423 = vst [vmem:[#allocation2 + $0x50] sm:$0xff] %v2407
      %2424 = vst [vmem:[#allocation2 + $0x58] sm:$0xff] %v2408
      %2425 = vst [vmem:[#allocation2 + $0x60] sm:$0xff] %v2409
      %2426 = vst [vmem:[#allocation2 + $0x68] sm:$0xff] %v2410
      %2427 = vst [vmem:[#allocation2 + $0x70] sm:$0xff] %v2411
      %2428 = vst [vmem:[#allocation2 + $0x78] sm:$0xff] %v2412
    $region109: #{tpu_custom_call.1} parent=1 // pred_fallthru
      _
    %p2429 = scmp.eq.s32.totalorder %s2322, 1
    %p2430 = pnand %p2325, %p2429
    %p2431 = pneg %p2430
    // Predicated region
    $region110: #{tpu_custom_call.1} parent=1 // pred_check
      _
    $region111: #{tpu_custom_call.1} parent=1 // pred_check_branch
      %2433 = sbr.rel (%p2430) target = $region113
    $region112: #{tpu_custom_call.1} parent=1 // pred_region
      %v2434 = vld [vmem:[#allocation2] sm:$0xff]
      %v2435 = vld [vmem:[#allocation2 + $0x8] sm:$0xff]
      %v2436 = vld [vmem:[#allocation2 + $0x10] sm:$0xff]
      %v2437 = vld [vmem:[#allocation2 + $0x18] sm:$0xff]
      %v2438 = vld [vmem:[#allocation2 + $0x20] sm:$0xff]
      %v2439 = vld [vmem:[#allocation2 + $0x28] sm:$0xff]
      %v2440 = vld [vmem:[#allocation2 + $0x30] sm:$0xff]
      %v2441 = vld [vmem:[#allocation2 + $0x38] sm:$0xff]
      %v2442 = vld [vmem:[#allocation2 + $0x40] sm:$0xff]
      %v2443 = vld [vmem:[#allocation2 + $0x48] sm:$0xff]
      %v2444 = vld [vmem:[#allocation2 + $0x50] sm:$0xff]
      %v2445 = vld [vmem:[#allocation2 + $0x58] sm:$0xff]
      %v2446 = vld [vmem:[#allocation2 + $0x60] sm:$0xff]
      %v2447 = vld [vmem:[#allocation2 + $0x68] sm:$0xff]
      %v2448 = vld [vmem:[#allocation2 + $0x70] sm:$0xff]
      %v2449 = vld [vmem:[#allocation2 + $0x78] sm:$0xff]
      %v2450 = vstv %s2323
      %vm2451 = vcmp.lt.f32.partialorder %v2434, %v2450
      %vm2452 = vcmp.lt.f32.partialorder %v2435, %v2450
      %vm2453 = vcmp.lt.f32.partialorder %v2436, %v2450
      %vm2454 = vcmp.lt.f32.partialorder %v2437, %v2450
      %vm2455 = vcmp.lt.f32.partialorder %v2438, %v2450
      %vm2456 = vcmp.lt.f32.partialorder %v2439, %v2450
      %vm2457 = vcmp.lt.f32.partialorder %v2440, %v2450
      %vm2458 = vcmp.lt.f32.partialorder %v2441, %v2450
      %vm2459 = vcmp.lt.f32.partialorder %v2442, %v2450
      %vm2460 = vcmp.lt.f32.partialorder %v2443, %v2450
      %vm2461 = vcmp.lt.f32.partialorder %v2444, %v2450
      %vm2462 = vcmp.lt.f32.partialorder %v2445, %v2450
      %vm2463 = vcmp.lt.f32.partialorder %v2446, %v2450
      %vm2464 = vcmp.lt.f32.partialorder %v2447, %v2450
      %vm2465 = vcmp.lt.f32.partialorder %v2448, %v2450
      %vm2466 = vcmp.lt.f32.partialorder %v2449, %v2450
      %v2467 = vsub.f32 255.0, %v2434
      %v2468 = vsub.f32 255.0, %v2435
      %v2469 = vsub.f32 255.0, %v2436
      %v2470 = vsub.f32 255.0, %v2437
      %v2471 = vsub.f32 255.0, %v2438
      %v2472 = vsub.f32 255.0, %v2439
      %v2473 = vsub.f32 255.0, %v2440
      %v2474 = vsub.f32 255.0, %v2441
      %v2475 = vsub.f32 255.0, %v2442
      %v2476 = vsub.f32 255.0, %v2443
      %v2477 = vsub.f32 255.0, %v2444
      %v2478 = vsub.f32 255.0, %v2445
      %v2479 = vsub.f32 255.0, %v2446
      %v2480 = vsub.f32 255.0, %v2447
      %v2481 = vsub.f32 255.0, %v2448
      %v2482 = vsub.f32 255.0, %v2449
      %v2483 = vsel %vm2451, %v2434, %v2467
      %v2484 = vsel %vm2452, %v2435, %v2468
      %v2485 = vsel %vm2453, %v2436, %v2469
      %v2486 = vsel %vm2454, %v2437, %v2470
      %v2487 = vsel %vm2455, %v2438, %v2471
      %v2488 = vsel %vm2456, %v2439, %v2472
      %v2489 = vsel %vm2457, %v2440, %v2473
      %v2490 = vsel %vm2458, %v2441, %v2474
      %v2491 = vsel %vm2459, %v2442, %v2475
      %v2492 = vsel %vm2460, %v2443, %v2476
      %v2493 = vsel %vm2461, %v2444, %v2477
      %v2494 = vsel %vm2462, %v2445, %v2478
      %v2495 = vsel %vm2463, %v2446, %v2479
      %v2496 = vsel %vm2464, %v2447, %v2480
      %v2497 = vsel %vm2465, %v2448, %v2481
      %v2498 = vsel %vm2466, %v2449, %v2482
      %2499 = vst [vmem:[#allocation2] sm:$0xff] %v2483
      %2500 = vst [vmem:[#allocation2 + $0x8] sm:$0xff] %v2484
      %2501 = vst [vmem:[#allocation2 + $0x10] sm:$0xff] %v2485
      %2502 = vst [vmem:[#allocation2 + $0x18] sm:$0xff] %v2486
      %2503 = vst [vmem:[#allocation2 + $0x20] sm:$0xff] %v2487
      %2504 = vst [vmem:[#allocation2 + $0x28] sm:$0xff] %v2488
      %2505 = vst [vmem:[#allocation2 + $0x30] sm:$0xff] %v2489
      %2506 = vst [vmem:[#allocation2 + $0x38] sm:$0xff] %v2490
      %2507 = vst [vmem:[#allocation2 + $0x40] sm:$0xff] %v2491
      %2508 = vst [vmem:[#allocation2 + $0x48] sm:$0xff] %v2492
      %2509 = vst [vmem:[#allocation2 + $0x50] sm:$0xff] %v2493
      %2510 = vst [vmem:[#allocation2 + $0x58] sm:$0xff] %v2494
      %2511 = vst [vmem:[#allocation2 + $0x60] sm:$0xff] %v2495
      %2512 = vst [vmem:[#allocation2 + $0x68] sm:$0xff] %v2496
      %2513 = vst [vmem:[#allocation2 + $0x70] sm:$0xff] %v2497
      %2514 = vst [vmem:[#allocation2 + $0x78] sm:$0xff] %v2498
    $region113: #{tpu_custom_call.1} parent=1 // pred_fallthru
      _
    %p2515 = scmp.eq.s32.totalorder %s2322, 2
    %p2516 = pnand %p2325, %p2515
    %p2517 = pneg %p2516
    // Predicated region
    $region114: #{tpu_custom_call.1} parent=1 // pred_check
      _
    $region115: #{tpu_custom_call.1} parent=1 // pred_check_branch
      %2519 = sbr.rel (%p2516) target = $region117
    $region116: #{tpu_custom_call.1} parent=1 // pred_region
      %v2520 = vld [vmem:[#allocation2] sm:$0xff]
      %v2521 = vld [vmem:[#allocation2 + $0x8] sm:$0xff]
      %v2522 = vld [vmem:[#allocation2 + $0x10] sm:$0xff]
      %v2523 = vld [vmem:[#allocation2 + $0x18] sm:$0xff]
      %v2524 = vld [vmem:[#allocation2 + $0x20] sm:$0xff]
      %v2525 = vld [vmem:[#allocation2 + $0x28] sm:$0xff]
      %v2526 = vld [vmem:[#allocation2 + $0x30] sm:$0xff]
      %v2527 = vld [vmem:[#allocation2 + $0x38] sm:$0xff]
      %v2528 = vld [vmem:[#allocation2 + $0x40] sm:$0xff]
      %v2529 = vld [vmem:[#allocation2 + $0x48] sm:$0xff]
      %v2530 = vld [vmem:[#allocation2 + $0x50] sm:$0xff]
      %v2531 = vld [vmem:[#allocation2 + $0x58] sm:$0xff]
      %v2532 = vld [vmem:[#allocation2 + $0x60] sm:$0xff]
      %v2533 = vld [vmem:[#allocation2 + $0x68] sm:$0xff]
      %v2534 = vld [vmem:[#allocation2 + $0x70] sm:$0xff]
      %v2535 = vld [vmem:[#allocation2 + $0x78] sm:$0xff]
      %v2536 = vstv %s2324
      %v2537 = vmul.f32 %v2520, %v2536
      %v2538 = vmul.f32 %v2521, %v2536
      %v2539 = vmul.f32 %v2522, %v2536
      %v2540 = vmul.f32 %v2523, %v2536
      %v2541 = vmul.f32 %v2524, %v2536
      %v2542 = vmul.f32 %v2525, %v2536
      %v2543 = vmul.f32 %v2526, %v2536
      %v2544 = vmul.f32 %v2527, %v2536
      %v2545 = vmul.f32 %v2528, %v2536
      %v2546 = vmul.f32 %v2529, %v2536
      %v2547 = vmul.f32 %v2530, %v2536
      %v2548 = vmul.f32 %v2531, %v2536
      %v2549 = vmul.f32 %v2532, %v2536
      %v2550 = vmul.f32 %v2533, %v2536
      %v2551 = vmul.f32 %v2534, %v2536
      %v2552 = vmul.f32 %v2535, %v2536
      %v2553 = vfloor.f32 %v2537
      %v2554 = vfloor.f32 %v2538
      %v2555 = vfloor.f32 %v2539
      %v2556 = vfloor.f32 %v2540
      %v2557 = vfloor.f32 %v2541
      %v2558 = vfloor.f32 %v2542
      %v2559 = vfloor.f32 %v2543
      %v2560 = vfloor.f32 %v2544
      %v2561 = vfloor.f32 %v2545
      %v2562 = vfloor.f32 %v2546
      %v2563 = vfloor.f32 %v2547
      %v2564 = vfloor.f32 %v2548
      %v2565 = vfloor.f32 %v2549
      %v2566 = vfloor.f32 %v2550
      %v2567 = vfloor.f32 %v2551
      %v2568 = vfloor.f32 %v2552
      %v2569 = vstv %s2323
      %v2570 = vmul.f32 %v2553, %v2569
      %v2571 = vmul.f32 %v2554, %v2569
      %v2572 = vmul.f32 %v2555, %v2569
      %v2573 = vmul.f32 %v2556, %v2569
      %v2574 = vmul.f32 %v2557, %v2569
      %v2575 = vmul.f32 %v2558, %v2569
      %v2576 = vmul.f32 %v2559, %v2569
      %v2577 = vmul.f32 %v2560, %v2569
      %v2578 = vmul.f32 %v2561, %v2569
      %v2579 = vmul.f32 %v2562, %v2569
      %v2580 = vmul.f32 %v2563, %v2569
      %v2581 = vmul.f32 %v2564, %v2569
      %v2582 = vmul.f32 %v2565, %v2569
      %v2583 = vmul.f32 %v2566, %v2569
      %v2584 = vmul.f32 %v2567, %v2569
      %v2585 = vmul.f32 %v2568, %v2569
      %2586 = vst [vmem:[#allocation2] sm:$0xff] %v2570
      %2587 = vst [vmem:[#allocation2 + $0x8] sm:$0xff] %v2571
      %2588 = vst [vmem:[#allocation2 + $0x10] sm:$0xff] %v2572
      %2589 = vst [vmem:[#allocation2 + $0x18] sm:$0xff] %v2573
      %2590 = vst [vmem:[#allocation2 + $0x20] sm:$0xff] %v2574
      %2591 = vst [vmem:[#allocation2 + $0x28] sm:$0xff] %v2575
      %2592 = vst [vmem:[#allocation2 + $0x30] sm:$0xff] %v2576
      %2593 = vst [vmem:[#allocation2 + $0x38] sm:$0xff] %v2577
      %2594 = vst [vmem:[#allocation2 + $0x40] sm:$0xff] %v2578
      %2595 = vst [vmem:[#allocation2 + $0x48] sm:$0xff] %v2579
      %2596 = vst [vmem:[#allocation2 + $0x50] sm:$0xff] %v2580
      %2597 = vst [vmem:[#allocation2 + $0x58] sm:$0xff] %v2581
      %2598 = vst [vmem:[#allocation2 + $0x60] sm:$0xff] %v2582
      %2599 = vst [vmem:[#allocation2 + $0x68] sm:$0xff] %v2583
      %2600 = vst [vmem:[#allocation2 + $0x70] sm:$0xff] %v2584
      %2601 = vst [vmem:[#allocation2 + $0x78] sm:$0xff] %v2585
    $region117: #{tpu_custom_call.1} parent=1 // pred_fallthru
      _
    %s2602 = sld [smem:[#allocation9 + $0x2]]
    %v2603 = vld [vmem:[#allocation2] sm:$0xff]
    %v2604 = vld [vmem:[#allocation2 + $0x8] sm:$0xff]
    %v2605 = vld [vmem:[#allocation2 + $0x10] sm:$0xff]
    %v2606 = vld [vmem:[#allocation2 + $0x18] sm:$0xff]
    %v2607 = vld [vmem:[#allocation2 + $0x20] sm:$0xff]
    %v2608 = vld [vmem:[#allocation2 + $0x28] sm:$0xff]
    %v2609 = vld [vmem:[#allocation2 + $0x30] sm:$0xff]
    %v2610 = vld [vmem:[#allocation2 + $0x38] sm:$0xff]
    %v2611 = vld [vmem:[#allocation2 + $0x40] sm:$0xff]
    %v2612 = vld [vmem:[#allocation2 + $0x48] sm:$0xff]
    %v2613 = vld [vmem:[#allocation2 + $0x50] sm:$0xff]
    %v2614 = vld [vmem:[#allocation2 + $0x58] sm:$0xff]
    %v2615 = vld [vmem:[#allocation2 + $0x60] sm:$0xff]
    %v2616 = vld [vmem:[#allocation2 + $0x68] sm:$0xff]
    %v2617 = vld [vmem:[#allocation2 + $0x70] sm:$0xff]
    %v2618 = vld [vmem:[#allocation2 + $0x78] sm:$0xff]
    %v2619 = vstv %s2602
    %v2620 = vmul.f32 %v2619, %v2603
    %v2621 = vmul.f32 %v2619, %v2604
    %v2622 = vmul.f32 %v2619, %v2605
    %v2623 = vmul.f32 %v2619, %v2606
    %v2624 = vmul.f32 %v2619, %v2607
    %v2625 = vmul.f32 %v2619, %v2608
    %v2626 = vmul.f32 %v2619, %v2609
    %v2627 = vmul.f32 %v2619, %v2610
    %v2628 = vmul.f32 %v2619, %v2611
    %v2629 = vmul.f32 %v2619, %v2612
    %v2630 = vmul.f32 %v2619, %v2613
    %v2631 = vmul.f32 %v2619, %v2614
    %v2632 = vmul.f32 %v2619, %v2615
    %v2633 = vmul.f32 %v2619, %v2616
    %v2634 = vmul.f32 %v2619, %v2617
    %v2635 = vmul.f32 %v2619, %v2618
    %v2636 = vld [vmem:[#allocation3] sm:$0xff]
    %v2637 = vld [vmem:[#allocation3 + $0x8] sm:$0xff]
    %v2638 = vld [vmem:[#allocation3 + $0x10] sm:$0xff]
    %v2639 = vld [vmem:[#allocation3 + $0x18] sm:$0xff]
    %v2640 = vld [vmem:[#allocation3 + $0x20] sm:$0xff]
    %v2641 = vld [vmem:[#allocation3 + $0x28] sm:$0xff]
    %v2642 = vld [vmem:[#allocation3 + $0x30] sm:$0xff]
    %v2643 = vld [vmem:[#allocation3 + $0x38] sm:$0xff]
    %v2644 = vld [vmem:[#allocation3 + $0x40] sm:$0xff]
    %v2645 = vld [vmem:[#allocation3 + $0x48] sm:$0xff]
    %v2646 = vld [vmem:[#allocation3 + $0x50] sm:$0xff]
    %v2647 = vld [vmem:[#allocation3 + $0x58] sm:$0xff]
    %v2648 = vld [vmem:[#allocation3 + $0x60] sm:$0xff]
    %v2649 = vld [vmem:[#allocation3 + $0x68] sm:$0xff]
    %v2650 = vld [vmem:[#allocation3 + $0x70] sm:$0xff]
    %v2651 = vld [vmem:[#allocation3 + $0x78] sm:$0xff]
    %v2652 = vadd.f32 %v2636, %v2620
    %v2653 = vadd.f32 %v2637, %v2621
    %v2654 = vadd.f32 %v2638, %v2622
    %v2655 = vadd.f32 %v2639, %v2623
    %v2656 = vadd.f32 %v2640, %v2624
    %v2657 = vadd.f32 %v2641, %v2625
    %v2658 = vadd.f32 %v2642, %v2626
    %v2659 = vadd.f32 %v2643, %v2627
    %v2660 = vadd.f32 %v2644, %v2628
    %v2661 = vadd.f32 %v2645, %v2629
    %v2662 = vadd.f32 %v2646, %v2630
    %v2663 = vadd.f32 %v2647, %v2631
    %v2664 = vadd.f32 %v2648, %v2632
    %v2665 = vadd.f32 %v2649, %v2633
    %v2666 = vadd.f32 %v2650, %v2634
    %v2667 = vadd.f32 %v2651, %v2635
    %s2668 = ssub.f32 1.0, %s102
    %v2669 = vstv %s2668
    %v2670 = vmul.f32 %v2669, %v86
    %v2671 = vmul.f32 %v2669, %v87
    %v2672 = vmul.f32 %v2669, %v88
    %v2673 = vmul.f32 %v2669, %v89
    %v2674 = vmul.f32 %v2669, %v90
    %v2675 = vmul.f32 %v2669, %v91
    %v2676 = vmul.f32 %v2669, %v92
    %v2677 = vmul.f32 %v2669, %v93
    %v2678 = vmul.f32 %v2669, %v94
    %v2679 = vmul.f32 %v2669, %v95
    %v2680 = vmul.f32 %v2669, %v96
    %v2681 = vmul.f32 %v2669, %v97
    %v2682 = vmul.f32 %v2669, %v98
    %v2683 = vmul.f32 %v2669, %v99
    %v2684 = vmul.f32 %v2669, %v100
    %v2685 = vmul.f32 %v2669, %v101
    %v2686 = vstv %s102
    %v2687 = vmul.f32 %v2686, %v2652
    %v2688 = vmul.f32 %v2686, %v2653
    %v2689 = vmul.f32 %v2686, %v2654
    %v2690 = vmul.f32 %v2686, %v2655
    %v2691 = vmul.f32 %v2686, %v2656
    %v2692 = vmul.f32 %v2686, %v2657
    %v2693 = vmul.f32 %v2686, %v2658
    %v2694 = vmul.f32 %v2686, %v2659
    %v2695 = vmul.f32 %v2686, %v2660
    %v2696 = vmul.f32 %v2686, %v2661
    %v2697 = vmul.f32 %v2686, %v2662
    %v2698 = vmul.f32 %v2686, %v2663
    %v2699 = vmul.f32 %v2686, %v2664
    %v2700 = vmul.f32 %v2686, %v2665
    %v2701 = vmul.f32 %v2686, %v2666
    %v2702 = vmul.f32 %v2686, %v2667
    %v2703 = vadd.f32 %v2670, %v2687
    %v2704 = vadd.f32 %v2671, %v2688
    %v2705 = vadd.f32 %v2672, %v2689
    %v2706 = vadd.f32 %v2673, %v2690
    %v2707 = vadd.f32 %v2674, %v2691
    %v2708 = vadd.f32 %v2675, %v2692
    %v2709 = vadd.f32 %v2676, %v2693
    %v2710 = vadd.f32 %v2677, %v2694
    %v2711 = vadd.f32 %v2678, %v2695
    %v2712 = vadd.f32 %v2679, %v2696
    %v2713 = vadd.f32 %v2680, %v2697
    %v2714 = vadd.f32 %v2681, %v2698
    %v2715 = vadd.f32 %v2682, %v2699
    %v2716 = vadd.f32 %v2683, %v2700
    %v2717 = vadd.f32 %v2684, %v2701
    %v2718 = vadd.f32 %v2685, %v2702
    %v2719 = vmax.f32 %v2703, 0.0
    %v2720 = vmax.f32 %v2704, 0.0
    %v2721 = vmax.f32 %v2705, 0.0
    %v2722 = vmax.f32 %v2706, 0.0
    %v2723 = vmax.f32 %v2707, 0.0
    %v2724 = vmax.f32 %v2708, 0.0
    %v2725 = vmax.f32 %v2709, 0.0
    %v2726 = vmax.f32 %v2710, 0.0
    %v2727 = vmax.f32 %v2711, 0.0
    %v2728 = vmax.f32 %v2712, 0.0
    %v2729 = vmax.f32 %v2713, 0.0
    %v2730 = vmax.f32 %v2714, 0.0
    %v2731 = vmax.f32 %v2715, 0.0
    %v2732 = vmax.f32 %v2716, 0.0
    %v2733 = vmax.f32 %v2717, 0.0
    %v2734 = vmax.f32 %v2718, 0.0
    %v2735 = vmin.f32 %v2719, 255.0
    %v2736 = vmin.f32 %v2720, 255.0
    %v2737 = vmin.f32 %v2721, 255.0
    %v2738 = vmin.f32 %v2722, 255.0
    %v2739 = vmin.f32 %v2723, 255.0
    %v2740 = vmin.f32 %v2724, 255.0
    %v2741 = vmin.f32 %v2725, 255.0
    %v2742 = vmin.f32 %v2726, 255.0
    %v2743 = vmin.f32 %v2727, 255.0
    %v2744 = vmin.f32 %v2728, 255.0
    %v2745 = vmin.f32 %v2729, 255.0
    %v2746 = vmin.f32 %v2730, 255.0
    %v2747 = vmin.f32 %v2731, 255.0
    %v2748 = vmin.f32 %v2732, 255.0
    %v2749 = vmin.f32 %v2733, 255.0
    %v2750 = vmin.f32 %v2734, 255.0
    %v2751 = vcvt.f32.s32.to.zero.pseudo %v2735
    %v2752 = vcvt.f32.s32.to.zero.pseudo %v2736
    %v2753 = vcvt.f32.s32.to.zero.pseudo %v2737
    %v2754 = vcvt.f32.s32.to.zero.pseudo %v2738
    %v2755 = vcvt.f32.s32.to.zero.pseudo %v2739
    %v2756 = vcvt.f32.s32.to.zero.pseudo %v2740
    %v2757 = vcvt.f32.s32.to.zero.pseudo %v2741
    %v2758 = vcvt.f32.s32.to.zero.pseudo %v2742
    %v2759 = vcvt.f32.s32.to.zero.pseudo %v2743
    %v2760 = vcvt.f32.s32.to.zero.pseudo %v2744
    %v2761 = vcvt.f32.s32.to.zero.pseudo %v2745
    %v2762 = vcvt.f32.s32.to.zero.pseudo %v2746
    %v2763 = vcvt.f32.s32.to.zero.pseudo %v2747
    %v2764 = vcvt.f32.s32.to.zero.pseudo %v2748
    %v2765 = vcvt.f32.s32.to.zero.pseudo %v2749
    %v2766 = vcvt.f32.s32.to.zero.pseudo %v2750
    %v2767 = vpack.c.b16 %v2755, %v2751
    %v2768 = vpack.c.b16 %v2763, %v2759
    %v2769 = vpack.c.b8 %v2768, %v2767
    %v2770 = vpack.c.b16 %v2756, %v2752
    %v2771 = vpack.c.b16 %v2764, %v2760
    %v2772 = vpack.c.b8 %v2771, %v2770
    %v2773 = vpack.c.b16 %v2757, %v2753
    %v2774 = vpack.c.b16 %v2765, %v2761
    %v2775 = vpack.c.b8 %v2774, %v2773
    %v2776 = vpack.c.b16 %v2758, %v2754
    %v2777 = vpack.c.b16 %v2766, %v2762
    %v2778 = vpack.c.b8 %v2777, %v2776
    %2779 = vst [vmem:[#allocation14] sm:$0xff] %v2769
    %2780 = vst [vmem:[#allocation14 + $0x8] sm:$0xff] %v2772
    %2781 = vst [vmem:[#allocation14 + $0x10] sm:$0xff] %v2775
    %2782 = vst [vmem:[#allocation14 + $0x18] sm:$0xff] %v2778
    // Predicated region
    $region118: #{tpu_custom_call.1} parent=1 // pred_check
      _
    $region119: #{tpu_custom_call.1} parent=1 // pred_check_branch
      %2784 = sbr.rel (0) target = $region121
    $region120: #{tpu_custom_call.1} parent=1 // pred_region
      %s2786 = ssub.s32 512, 512
      %2787 = vsyncadd [#allocation13], %s2786
      %s2789 = sshll.u32 [#allocation14], 4
      %s2790 = int_to_ptr.vmem [resolvable:$true] %s2789
      %2792 = dma.vmem_to_hbm [thread:$0]  %s2790, 512, %s7, [#allocation13]
    $region121: #{tpu_custom_call.1} parent=1 // pred_fallthru
      _
    // Predicated region
    $region122: #{tpu_custom_call.1} parent=1 // pred_check
      _
    $region123: #{tpu_custom_call.1} parent=1 // pred_check_branch
      %2794 = sbr.rel (0) target = $region125
    $region124: #{tpu_custom_call.1} parent=1 // pred_region
      %2795 = dma.done [#allocation13], 512
    $region125: #{tpu_custom_call.1} parent=1 // pred_fallthru
      _
    %2796 = vsyncpa [#allocation12], 1
    %2797 = vsyncpa [#allocation13], 1

</llo_original>
